<compile_context>
chip_gen: v5e
topology: v5e:2x2
jax: 0.10.0
libtpu: 0.0.40
codegen_flags: <defaults>
</compile_context>

<pallas_src>
import jax
import jax.numpy as jnp
from jax import lax
from jax.experimental import pallas as pl
from jax.experimental.pallas import tpu as pltpu


def _conv3x3_im2col(src_ref, w_ref, n_imgs, H, W, Cp):
    """3x3 'SAME' conv over a spatially padded (n_imgs, H+2, W+2, Cp) ref.

    Returns (conv_out (M, Cp) f32, centre_tap (M, Cp)) where M = n_imgs*H*W.
    The nine taps are concatenated along the lane axis (K = 9*Cp) so the whole
    conv is a single MXU matmul; dy shifts are outer-dim slices (free), the dx
    shift is sliced once per dx.
    """
    M = n_imgs * H * W
    taps = [[None] * 3 for _ in range(3)]
    for dx in range(3):
        xd = src_ref[:, :, dx:dx + W, :]                 # (n, H+2, W, Cp)
        for dy in range(3):
            taps[dy][dx] = xd[:, dy:dy + H, :, :].reshape(M, Cp)
    # Column order (dy, dx, cin) must match the (3,3,Cp,Cp)->(9*Cp,Cp) weight
    # reshape done in the wrapper.
    patch = jnp.concatenate(
        [taps[dy][dx] for dy in range(3) for dx in range(3)], axis=-1)
    out = jnp.dot(patch, w_ref[...], preferred_element_type=jnp.float32)
    return out, taps[1][1]


def basic_block_kernel(xpad_ref, w1_ref, s1_ref, b1_ref,
                       w2_ref, s2_ref, b2_ref, out_ref, mid_ref):
    # xpad_ref : (B, H+2, W+2, Cp)  spatially padded, channel-padded input
    # w1_ref   : (9*Cp, Cp)         conv1 weights, taps folded into K
    # s1/b1    : (1, Cp)            folded BN1 scale / shift
    # w2_ref   : (9*Cp, Cp)         conv2 weights, taps folded into K
    # s2/b2    : (1, Cp)            folded BN2 scale / shift
    # out_ref  : (B, H, W, Cp)
    # mid_ref  : VMEM scratch (B, H+2, W+2, Cp) for the padded intermediate
    B, H, W, Cp = out_ref.shape
    M = B * H * W

    # ---- conv1 (single im2col matmul) + bn1 + relu ----
    acc1, identity = _conv3x3_im2col(xpad_ref, w1_ref, B, H, W, Cp)
    h1 = jnp.maximum(acc1 * s1_ref[...] + b1_ref[...], 0.0)

    # ---- padded intermediate in VMEM scratch ----
    # With the default single grid step this memset happens exactly once; the
    # interior is fully overwritten, the halo must stay zero.
    mid_ref[...] = jnp.zeros_like(mid_ref)
    mid_ref[:, 1:H + 1, 1:W + 1, :] = h1.reshape(B, H, W, Cp)

    # ---- conv2 (single im2col matmul) + bn2 ----
    acc2, _ = _conv3x3_im2col(mid_ref, w2_ref, B, H, W, Cp)
    h2 = acc2 * s2_ref[...] + b2_ref[...]

    # ---- residual add (centre tap of conv1's im2col) + relu ----
    out = jnp.maximum(h2 + identity, 0.0)
    out_ref[...] = out.reshape(B, H, W, Cp).astype(out_ref.dtype)


def basic_block_forward(x_nchw, params, *, block_n=None, eps=1e-5):
    """x_nchw: (N, C, H, W) float32, matching the PyTorch module's input.

    block_n: images per grid step. Default = whole batch (best on 1-TC
    v5e/v6e). On v7x, block_n = N // 2 splits work over the two TensorCores.
    """
    x_nchw = x_nchw.astype(jnp.float32)
    N, Cin, H, W = x_nchw.shape
    Cout = params["conv1_w"].shape[0]
    # stride=1, downsample=None => residual requires matching channels.
    assert params["conv1_w"].shape[1] == Cin
    assert Cin == Cout, "BasicBlock without downsample requires inplanes == planes"
    # TODO(synk): stride > 1 / downsample path not implemented (module default is None).

    Cp = ((max(Cin, Cout) + 127) // 128) * 128   # lane-dense channel padding

    # NCHW -> NHWC, spatial halo (padding=1) and channel zero-pad in one shot.
    x = jnp.transpose(x_nchw, (0, 2, 3, 1))
    xpad = jnp.zeros((N, H + 2, W + 2, Cp), jnp.float32)
    xpad = xpad.at[:, 1:H + 1, 1:W + 1, :Cin].set(x)

    def fold_conv(w_oihw):
        # torch (Cout, Cin, 3, 3) -> HWIO -> channel-pad -> (9*Cp, Cp)
        w = jnp.transpose(w_oihw.astype(jnp.float32), (2, 3, 1, 0))
        ci, co = w.shape[2], w.shape[3]
        wp = jnp.zeros((3, 3, Cp, Cp), jnp.float32).at[:, :, :ci, :co].set(w)
        return wp.reshape(9 * Cp, Cp)

    def fold_bn(gamma, beta, mean, var, c):
        s = gamma / jnp.sqrt(var + eps)
        b = beta - mean * s
        s_p = jnp.zeros((1, Cp), jnp.float32).at[0, :c].set(s.astype(jnp.float32))
        b_p = jnp.zeros((1, Cp), jnp.float32).at[0, :c].set(b.astype(jnp.float32))
        return s_p, b_p

    w1 = fold_conv(params["conv1_w"])
    w2 = fold_conv(params["conv2_w"])
    s1, b1 = fold_bn(params["bn1_gamma"], params["bn1_beta"],
                     params["bn1_mean"], params["bn1_var"], Cout)
    s2, b2 = fold_bn(params["bn2_gamma"], params["bn2_beta"],
                     params["bn2_mean"], params["bn2_var"], Cout)

    if block_n is None:
        block_n = N
    assert N % block_n == 0
    grid = (N // block_n,)

    out_padded = pl.pallas_call(
        basic_block_kernel,
        out_shape=jax.ShapeDtypeStruct((N, H, W, Cp), jnp.float32),
        grid_spec=pltpu.PrefetchScalarGridSpec(
            num_scalar_prefetch=0,
            grid=grid,
            in_specs=[
                pl.BlockSpec((block_n, H + 2, W + 2, Cp), lambda i: (i, 0, 0, 0)),
                pl.BlockSpec((9 * Cp, Cp), lambda i: (0, 0)),
                pl.BlockSpec((1, Cp), lambda i: (0, 0)),
                pl.BlockSpec((1, Cp), lambda i: (0, 0)),
                pl.BlockSpec((9 * Cp, Cp), lambda i: (0, 0)),
                pl.BlockSpec((1, Cp), lambda i: (0, 0)),
                pl.BlockSpec((1, Cp), lambda i: (0, 0)),
            ],
            out_specs=pl.BlockSpec((block_n, H, W, Cp), lambda i: (i, 0, 0, 0)),
            scratch_shapes=[pltpu.VMEM((block_n, H + 2, W + 2, Cp), jnp.float32)],
        ),
        compiler_params=pltpu.CompilerParams(
            dimension_semantics=("parallel",)),
    )(xpad, w1, s1, b1, w2, s2, b2)

    # Drop channel padding, back to NCHW to match the PyTorch module.
    out_nhwc = out_padded[..., :Cout]
    return jnp.transpose(out_nhwc, (0, 3, 1, 2))


def _reference_forward(x_nchw, params):
    """Pure-JAX reference (same math) for a correctness check."""
    eps = 1e-5
    x = jnp.transpose(x_nchw, (0, 2, 3, 1))
    w1 = jnp.transpose(params["conv1_w"], (2, 3, 1, 0))
    w2 = jnp.transpose(params["conv2_w"], (2, 3, 1, 0))
    dn = lax.conv_dimension_numbers(x.shape, w1.shape, ("NHWC", "HWIO", "NHWC"))
    s1 = params["bn1_gamma"] / jnp.sqrt(params["bn1_var"] + eps)
    b1 = params["bn1_beta"] - params["bn1_mean"] * s1
    s2 = params["bn2_gamma"] / jnp.sqrt(params["bn2_var"] + eps)
    b2 = params["bn2_beta"] - params["bn2_mean"] * s2
    h = lax.conv_general_dilated(x, w1, (1, 1), "SAME", dimension_numbers=dn)
    h = jnp.maximum(h * s1 + b1, 0.0)
    h = lax.conv_general_dilated(h, w2, (1, 1), "SAME", dimension_numbers=dn)
    h = h * s2 + b2
    out = jnp.maximum(h + x, 0.0)
    return jnp.transpose(out, (0, 3, 1, 2))


if __name__ == "__main__":
    # BasicBlock(inplanes=32, planes=32, stride=1, downsample=None)
    N, C, H, W = 2, 32, 16, 16
    key = jax.random.PRNGKey(0)
    ks = jax.random.split(key, 9)

    x = jax.random.normal(ks[0], (N, C, H, W), jnp.float32)
    params = {
        "conv1_w": 0.1 * jax.random.normal(ks[1], (C, C, 3, 3), jnp.float32),
        "conv2_w": 0.1 * jax.random.normal(ks[2], (C, C, 3, 3), jnp.float32),
        "bn1_gamma": 1.0 + 0.1 * jax.random.normal(ks[3], (C,), jnp.float32),
        "bn1_beta": 0.1 * jax.random.normal(ks[4], (C,), jnp.float32),
        "bn1_mean": 0.05 * jax.random.normal(ks[5], (C,), jnp.float32),
        "bn1_var": jnp.abs(1.0 + 0.1 * jax.random.normal(ks[6], (C,), jnp.float32)),
        "bn2_gamma": 1.0 + 0.1 * jax.random.normal(ks[7], (C,), jnp.float32),
        "bn2_beta": 0.1 * jax.random.normal(ks[8], (C,), jnp.float32),
        "bn2_mean": jnp.zeros((C,), jnp.float32),
        "bn2_var": jnp.ones((C,), jnp.float32),
    }

    out = jax.block_until_ready(basic_block_forward(x, params))
    ref = jax.block_until_ready(_reference_forward(x, params))

    assert out.shape == (N, C, H, W)
    assert jnp.allclose(out, ref, atol=1e-4, rtol=1e-4), "mismatch vs JAX reference"
    print("KERNEL_OK")
</pallas_src>

<mosaic_0001>
module attributes {stable_mosaic.version = 11 : i64} {
  func.func @basic_block_kernel(%arg0: i32, %arg1: memref<2x18x18x128xf32, #tpu.memory_space<vmem>>, %arg2: memref<1152x128xf32, #tpu.memory_space<vmem>>, %arg3: memref<1x128xf32, #tpu.memory_space<vmem>>, %arg4: memref<1x128xf32, #tpu.memory_space<vmem>>, %arg5: memref<1152x128xf32, #tpu.memory_space<vmem>>, %arg6: memref<1x128xf32, #tpu.memory_space<vmem>>, %arg7: memref<1x128xf32, #tpu.memory_space<vmem>>, %arg8: memref<2x16x16x128xf32, #tpu.memory_space<vmem>>, %arg9: memref<2x18x18x128xf32, #tpu.memory_space<vmem>>) attributes {dimension_semantics = [#tpu.dimension_semantics<parallel>], iteration_bounds = array<i64: 1>, scalar_prefetch = 0 : i64, scratch_operands = 1 : i64, tpu.core_type = #tpu.core_type<tc>, window_params = [{transform_indices = @transform_0, window_bounds = array<i64: 2, 18, 18, 128>}, {pipeline_mode = #tpu.pipeline_mode<synchronous>, transform_indices = @transform_1, window_bounds = array<i64: 1152, 128>}, {pipeline_mode = #tpu.pipeline_mode<synchronous>, transform_indices = @transform_2, window_bounds = array<i64: 1, 128>}, {pipeline_mode = #tpu.pipeline_mode<synchronous>, transform_indices = @transform_3, window_bounds = array<i64: 1, 128>}, {pipeline_mode = #tpu.pipeline_mode<synchronous>, transform_indices = @transform_4, window_bounds = array<i64: 1152, 128>}, {pipeline_mode = #tpu.pipeline_mode<synchronous>, transform_indices = @transform_5, window_bounds = array<i64: 1, 128>}, {pipeline_mode = #tpu.pipeline_mode<synchronous>, transform_indices = @transform_6, window_bounds = array<i64: 1, 128>}, {transform_indices = @transform_7, window_bounds = array<i64: 2, 16, 16, 128>}]} {
    %c0 = arith.constant 0 : index
    %c0_0 = arith.constant 0 : index
    %c0_1 = arith.constant 0 : index
    %c0_2 = arith.constant 0 : index
    %0 = vector.load %arg1[%c0, %c0_0, %c0_1, %c0_2] : memref<2x18x18x128xf32, #tpu.memory_space<vmem>>, vector<2x18x16x128xf32>
    %1 = vector.extract_strided_slice %0 {offsets = [0, 0, 0, 0], sizes = [2, 16, 16, 128], strides = [1, 1, 1, 1]} : vector<2x18x16x128xf32> to vector<2x16x16x128xf32>
    %2 = vector.shape_cast %1 : vector<2x16x16x128xf32> to vector<512x128xf32>
    %3 = vector.extract_strided_slice %0 {offsets = [0, 1, 0, 0], sizes = [2, 16, 16, 128], strides = [1, 1, 1, 1]} : vector<2x18x16x128xf32> to vector<2x16x16x128xf32>
    %4 = vector.shape_cast %3 : vector<2x16x16x128xf32> to vector<512x128xf32>
    %5 = vector.extract_strided_slice %0 {offsets = [0, 2, 0, 0], sizes = [2, 16, 16, 128], strides = [1, 1, 1, 1]} : vector<2x18x16x128xf32> to vector<2x16x16x128xf32>
    %6 = vector.shape_cast %5 : vector<2x16x16x128xf32> to vector<512x128xf32>
    %c0_3 = arith.constant 0 : index
    %c0_4 = arith.constant 0 : index
    %c1 = arith.constant 1 : index
    %c0_5 = arith.constant 0 : index
    %7 = vector.load %arg1[%c0_3, %c0_4, %c1, %c0_5] : memref<2x18x18x128xf32, #tpu.memory_space<vmem>>, vector<2x18x16x128xf32>
    %8 = vector.extract_strided_slice %7 {offsets = [0, 0, 0, 0], sizes = [2, 16, 16, 128], strides = [1, 1, 1, 1]} : vector<2x18x16x128xf32> to vector<2x16x16x128xf32>
    %9 = vector.shape_cast %8 : vector<2x16x16x128xf32> to vector<512x128xf32>
    %10 = vector.extract_strided_slice %7 {offsets = [0, 1, 0, 0], sizes = [2, 16, 16, 128], strides = [1, 1, 1, 1]} : vector<2x18x16x128xf32> to vector<2x16x16x128xf32>
    %11 = vector.shape_cast %10 : vector<2x16x16x128xf32> to vector<512x128xf32>
    %12 = vector.extract_strided_slice %7 {offsets = [0, 2, 0, 0], sizes = [2, 16, 16, 128], strides = [1, 1, 1, 1]} : vector<2x18x16x128xf32> to vector<2x16x16x128xf32>
    %13 = vector.shape_cast %12 : vector<2x16x16x128xf32> to vector<512x128xf32>
    %c0_6 = arith.constant 0 : index
    %c0_7 = arith.constant 0 : index
    %c2 = arith.constant 2 : index
    %c0_8 = arith.constant 0 : index
    %14 = vector.load %arg1[%c0_6, %c0_7, %c2, %c0_8] : memref<2x18x18x128xf32, #tpu.memory_space<vmem>>, vector<2x18x16x128xf32>
    %15 = vector.extract_strided_slice %14 {offsets = [0, 0, 0, 0], sizes = [2, 16, 16, 128], strides = [1, 1, 1, 1]} : vector<2x18x16x128xf32> to vector<2x16x16x128xf32>
    %16 = vector.shape_cast %15 : vector<2x16x16x128xf32> to vector<512x128xf32>
    %17 = vector.extract_strided_slice %14 {offsets = [0, 1, 0, 0], sizes = [2, 16, 16, 128], strides = [1, 1, 1, 1]} : vector<2x18x16x128xf32> to vector<2x16x16x128xf32>
    %18 = vector.shape_cast %17 : vector<2x16x16x128xf32> to vector<512x128xf32>
    %19 = vector.extract_strided_slice %14 {offsets = [0, 2, 0, 0], sizes = [2, 16, 16, 128], strides = [1, 1, 1, 1]} : vector<2x18x16x128xf32> to vector<2x16x16x128xf32>
    %20 = vector.shape_cast %19 : vector<2x16x16x128xf32> to vector<512x128xf32>
    %21 = tpu.concatenate %2, %9, %16, %4, %11, %18, %6, %13, %20 in 1 : vector<512x128xf32>, vector<512x128xf32>, vector<512x128xf32>, vector<512x128xf32>, vector<512x128xf32>, vector<512x128xf32>, vector<512x128xf32>, vector<512x128xf32>, vector<512x128xf32> -> vector<512x1152xf32>
    %c0_9 = arith.constant 0 : index
    %c0_10 = arith.constant 0 : index
    %22 = vector.load %arg2[%c0_9, %c0_10] : memref<1152x128xf32, #tpu.memory_space<vmem>>, vector<1152x128xf32>
    %cst = arith.constant dense<0.000000e+00> : vector<512x128xf32>
    %23 = tpu.matmul %21, %22, %cst {dimension_numbers = #tpu.dot_dimension_numbers<[1], [0], [0], [1], [0, 0, 1, 1], [], []>} : vector<512x1152xf32>, vector<1152x128xf32>, vector<512x128xf32> -> vector<512x128xf32>
    %c0_11 = arith.constant 0 : index
    %c0_12 = arith.constant 0 : index
    %24 = vector.load %arg3[%c0_11, %c0_12] : memref<1x128xf32, #tpu.memory_space<vmem>>, vector<1x128xf32>
    %25 = vector.broadcast %24 : vector<1x128xf32> to vector<512x128xf32>
    %26 = arith.mulf %23, %25 : vector<512x128xf32>
    %c0_13 = arith.constant 0 : index
    %c0_14 = arith.constant 0 : index
    %27 = vector.load %arg4[%c0_13, %c0_14] : memref<1x128xf32, #tpu.memory_space<vmem>>, vector<1x128xf32>
    %28 = vector.broadcast %27 : vector<1x128xf32> to vector<512x128xf32>
    %29 = arith.addf %26, %28 : vector<512x128xf32>
    %cst_15 = arith.constant 0.000000e+00 : f32
    %30 = vector.broadcast %cst_15 : f32 to vector<512x128xf32>
    %31 = arith.maximumf %29, %30 : vector<512x128xf32>
    %cst_16 = arith.constant 0.000000e+00 : f32
    %32 = vector.broadcast %cst_16 : f32 to vector<2x18x18x128xf32>
    %c0_17 = arith.constant 0 : index
    %c0_18 = arith.constant 0 : index
    %c0_19 = arith.constant 0 : index
    %c0_20 = arith.constant 0 : index
    %33 = vector.load %arg9[%c0_17, %c0_18, %c0_19, %c0_20] : memref<2x18x18x128xf32, #tpu.memory_space<vmem>>, vector<2x18x18x128xf32>
    tpu.vector_store %arg9[%c0_17, %c0_18, %c0_19, %c0_20], %32 {strides = array<i32>} : memref<2x18x18x128xf32, #tpu.memory_space<vmem>>, vector<2x18x18x128xf32>,
    %34 = vector.shape_cast %31 : vector<512x128xf32> to vector<2x16x16x128xf32>
    %c0_21 = arith.constant 0 : index
    %c1_22 = arith.constant 1 : index
    %c1_23 = arith.constant 1 : index
    %c0_24 = arith.constant 0 : index
    %35 = vector.load %arg9[%c0_21, %c1_22, %c1_23, %c0_24] : memref<2x18x18x128xf32, #tpu.memory_space<vmem>>, vector<2x16x16x128xf32>
    tpu.vector_store %arg9[%c0_21, %c1_22, %c1_23, %c0_24], %34 {strides = array<i32>} : memref<2x18x18x128xf32, #tpu.memory_space<vmem>>, vector<2x16x16x128xf32>,
    %c0_25 = arith.constant 0 : index
    %c0_26 = arith.constant 0 : index
    %c0_27 = arith.constant 0 : index
    %c0_28 = arith.constant 0 : index
    %36 = vector.load %arg9[%c0_25, %c0_26, %c0_27, %c0_28] : memref<2x18x18x128xf32, #tpu.memory_space<vmem>>, vector<2x18x16x128xf32>
    %37 = vector.extract_strided_slice %36 {offsets = [0, 0, 0, 0], sizes = [2, 16, 16, 128], strides = [1, 1, 1, 1]} : vector<2x18x16x128xf32> to vector<2x16x16x128xf32>
    %38 = vector.shape_cast %37 : vector<2x16x16x128xf32> to vector<512x128xf32>
    %39 = vector.extract_strided_slice %36 {offsets = [0, 1, 0, 0], sizes = [2, 16, 16, 128], strides = [1, 1, 1, 1]} : vector<2x18x16x128xf32> to vector<2x16x16x128xf32>
    %40 = vector.shape_cast %39 : vector<2x16x16x128xf32> to vector<512x128xf32>
    %41 = vector.extract_strided_slice %36 {offsets = [0, 2, 0, 0], sizes = [2, 16, 16, 128], strides = [1, 1, 1, 1]} : vector<2x18x16x128xf32> to vector<2x16x16x128xf32>
    %42 = vector.shape_cast %41 : vector<2x16x16x128xf32> to vector<512x128xf32>
    %c0_29 = arith.constant 0 : index
    %c0_30 = arith.constant 0 : index
    %c1_31 = arith.constant 1 : index
    %c0_32 = arith.constant 0 : index
    %43 = vector.load %arg9[%c0_29, %c0_30, %c1_31, %c0_32] : memref<2x18x18x128xf32, #tpu.memory_space<vmem>>, vector<2x18x16x128xf32>
    %44 = vector.extract_strided_slice %43 {offsets = [0, 0, 0, 0], sizes = [2, 16, 16, 128], strides = [1, 1, 1, 1]} : vector<2x18x16x128xf32> to vector<2x16x16x128xf32>
    %45 = vector.shape_cast %44 : vector<2x16x16x128xf32> to vector<512x128xf32>
    %46 = vector.extract_strided_slice %43 {offsets = [0, 1, 0, 0], sizes = [2, 16, 16, 128], strides = [1, 1, 1, 1]} : vector<2x18x16x128xf32> to vector<2x16x16x128xf32>
    %47 = vector.shape_cast %46 : vector<2x16x16x128xf32> to vector<512x128xf32>
    %48 = vector.extract_strided_slice %43 {offsets = [0, 2, 0, 0], sizes = [2, 16, 16, 128], strides = [1, 1, 1, 1]} : vector<2x18x16x128xf32> to vector<2x16x16x128xf32>
    %49 = vector.shape_cast %48 : vector<2x16x16x128xf32> to vector<512x128xf32>
    %c0_33 = arith.constant 0 : index
    %c0_34 = arith.constant 0 : index
    %c2_35 = arith.constant 2 : index
    %c0_36 = arith.constant 0 : index
    %50 = vector.load %arg9[%c0_33, %c0_34, %c2_35, %c0_36] : memref<2x18x18x128xf32, #tpu.memory_space<vmem>>, vector<2x18x16x128xf32>
    %51 = vector.extract_strided_slice %50 {offsets = [0, 0, 0, 0], sizes = [2, 16, 16, 128], strides = [1, 1, 1, 1]} : vector<2x18x16x128xf32> to vector<2x16x16x128xf32>
    %52 = vector.shape_cast %51 : vector<2x16x16x128xf32> to vector<512x128xf32>
    %53 = vector.extract_strided_slice %50 {offsets = [0, 1, 0, 0], sizes = [2, 16, 16, 128], strides = [1, 1, 1, 1]} : vector<2x18x16x128xf32> to vector<2x16x16x128xf32>
    %54 = vector.shape_cast %53 : vector<2x16x16x128xf32> to vector<512x128xf32>
    %55 = vector.extract_strided_slice %50 {offsets = [0, 2, 0, 0], sizes = [2, 16, 16, 128], strides = [1, 1, 1, 1]} : vector<2x18x16x128xf32> to vector<2x16x16x128xf32>
    %56 = vector.shape_cast %55 : vector<2x16x16x128xf32> to vector<512x128xf32>
    %57 = tpu.concatenate %38, %45, %52, %40, %47, %54, %42, %49, %56 in 1 : vector<512x128xf32>, vector<512x128xf32>, vector<512x128xf32>, vector<512x128xf32>, vector<512x128xf32>, vector<512x128xf32>, vector<512x128xf32>, vector<512x128xf32>, vector<512x128xf32> -> vector<512x1152xf32>
    %c0_37 = arith.constant 0 : index
    %c0_38 = arith.constant 0 : index
    %58 = vector.load %arg5[%c0_37, %c0_38] : memref<1152x128xf32, #tpu.memory_space<vmem>>, vector<1152x128xf32>
    %cst_39 = arith.constant dense<0.000000e+00> : vector<512x128xf32>
    %59 = tpu.matmul %57, %58, %cst_39 {dimension_numbers = #tpu.dot_dimension_numbers<[1], [0], [0], [1], [0, 0, 1, 1], [], []>} : vector<512x1152xf32>, vector<1152x128xf32>, vector<512x128xf32> -> vector<512x128xf32>
    %c0_40 = arith.constant 0 : index
    %c0_41 = arith.constant 0 : index
    %60 = vector.load %arg6[%c0_40, %c0_41] : memref<1x128xf32, #tpu.memory_space<vmem>>, vector<1x128xf32>
    %61 = vector.broadcast %60 : vector<1x128xf32> to vector<512x128xf32>
    %62 = arith.mulf %59, %61 : vector<512x128xf32>
    %c0_42 = arith.constant 0 : index
    %c0_43 = arith.constant 0 : index
    %63 = vector.load %arg7[%c0_42, %c0_43] : memref<1x128xf32, #tpu.memory_space<vmem>>, vector<1x128xf32>
    %64 = vector.broadcast %63 : vector<1x128xf32> to vector<512x128xf32>
    %65 = arith.addf %62, %64 : vector<512x128xf32>
    %66 = arith.addf %65, %11 : vector<512x128xf32>
    %cst_44 = arith.constant 0.000000e+00 : f32
    %67 = vector.broadcast %cst_44 : f32 to vector<512x128xf32>
    %68 = arith.maximumf %66, %67 : vector<512x128xf32>
    %69 = vector.shape_cast %68 : vector<512x128xf32> to vector<2x16x16x128xf32>
    %c0_45 = arith.constant 0 : index
    %c0_46 = arith.constant 0 : index
    %c0_47 = arith.constant 0 : index
    %c0_48 = arith.constant 0 : index
    %70 = vector.load %arg8[%c0_45, %c0_46, %c0_47, %c0_48] : memref<2x16x16x128xf32, #tpu.memory_space<vmem>>, vector<2x16x16x128xf32>
    tpu.vector_store %arg8[%c0_45, %c0_46, %c0_47, %c0_48], %69 {strides = array<i32>} : memref<2x16x16x128xf32, #tpu.memory_space<vmem>>, vector<2x16x16x128xf32>,
    return
  }
  func.func @transform_0(%arg0: i32) -> (i32, i32, i32, i32) {
    %c0_i32 = arith.constant 0 : i32
    %c0_i32_0 = arith.constant 0 : i32
    %c0_i32_1 = arith.constant 0 : i32
    %c0_i32_2 = arith.constant 0 : i32
    return %arg0, %c0_i32, %c0_i32_0, %c0_i32_1 : i32, i32, i32, i32
  }
  func.func @transform_1(%arg0: i32) -> (i32, i32) {
    %c0_i32 = arith.constant 0 : i32
    %c0_i32_0 = arith.constant 0 : i32
    %c0_i32_1 = arith.constant 0 : i32
    return %c0_i32, %c0_i32_0 : i32, i32
  }
  func.func @transform_2(%arg0: i32) -> (i32, i32) {
    %c0_i32 = arith.constant 0 : i32
    %c0_i32_0 = arith.constant 0 : i32
    %c0_i32_1 = arith.constant 0 : i32
    return %c0_i32, %c0_i32_0 : i32, i32
  }
  func.func @transform_3(%arg0: i32) -> (i32, i32) {
    %c0_i32 = arith.constant 0 : i32
    %c0_i32_0 = arith.constant 0 : i32
    %c0_i32_1 = arith.constant 0 : i32
    return %c0_i32, %c0_i32_0 : i32, i32
  }
  func.func @transform_4(%arg0: i32) -> (i32, i32) {
    %c0_i32 = arith.constant 0 : i32
    %c0_i32_0 = arith.constant 0 : i32
    %c0_i32_1 = arith.constant 0 : i32
    return %c0_i32, %c0_i32_0 : i32, i32
  }
  func.func @transform_5(%arg0: i32) -> (i32, i32) {
    %c0_i32 = arith.constant 0 : i32
    %c0_i32_0 = arith.constant 0 : i32
    %c0_i32_1 = arith.constant 0 : i32
    return %c0_i32, %c0_i32_0 : i32, i32
  }
  func.func @transform_6(%arg0: i32) -> (i32, i32) {
    %c0_i32 = arith.constant 0 : i32
    %c0_i32_0 = arith.constant 0 : i32
    %c0_i32_1 = arith.constant 0 : i32
    return %c0_i32, %c0_i32_0 : i32, i32
  }
  func.func @transform_7(%arg0: i32) -> (i32, i32, i32, i32) {
    %c0_i32 = arith.constant 0 : i32
    %c0_i32_0 = arith.constant 0 : i32
    %c0_i32_1 = arith.constant 0 : i32
    %c0_i32_2 = arith.constant 0 : i32
    return %arg0, %c0_i32, %c0_i32_0, %c0_i32_1 : i32, i32, i32, i32
  }
}

</mosaic_0001>

<llo_original>
// kernel: tpu_custom_call.1
$region0: #{tpu_custom_call.1}
  #allocation0 [shape = 'u32[]', space=smem, size = 0x4, offset = 0x4, fixed_abs, tag = 'smem constant byte address 0x4 - core index']
  #allocation1 [shape = 'u32[72,128]{1,0:T(1,128)}', space=vmem, size = 0x9000, scoped, tag = 'internal scratch']
  #allocation2 [shape = 'f32[2,18,18,128]{3,2,1,0:T(8,128)}', space=vmem, size = 0x6c000, scoped, tag = 'scratch operand']
  %s0 = inlined_call_operand.vmem [shape: f32[2,18,18,128], index: 0, kind: input, shape index: {}]
  %s1 = inlined_call_operand.vmem [shape: f32[1152,128], index: 1, kind: input, shape index: {}]
  %s2 = inlined_call_operand.vmem [shape: f32[1,128], index: 2, kind: input, shape index: {}]
  %s3 = inlined_call_operand.vmem [shape: f32[1,128], index: 3, kind: input, shape index: {}]
  %s4 = inlined_call_operand.hbm [shape: f32[1152,128], index: 4, kind: input, shape index: {}]
  %s5 = inlined_call_operand.vmem [shape: f32[1,128], index: 5, kind: input, shape index: {}]
  %s6 = inlined_call_operand.vmem [shape: f32[1,128], index: 6, kind: input, shape index: {}]
  %s7 = inlined_call_operand.hbm [shape: f32[2,16,16,128], index: 7, kind: output, shape index: {}]
  %s8 = sld [smem:[#allocation0]]
  $region42: #{tpu_custom_call.1} parent=0
    _
  %s10 = ssub.s32 1, %s8
  %s11 = scalar_select 0, %s10, %s8
  $region1: #{tpu_custom_call.1} parent=0
    #allocation3 [shape = 'u8[589824]{0}', space=vmem, size = 0x90000, scoped, tag = 'input window, operand 4, single buffered']
    #allocation4 [shape = 's32[1]{0}', space=sflag, size = 0x4, scoped, tag = 'scoped memory for tpu_custom_call.1']
    #allocation5 [shape = 's32[1]{0}', space=sflag, size = 0x4, scoped, tag = 'scoped memory for tpu_custom_call.1']
    #allocation6 [shape = 'u8[262144]{0}', space=vmem, size = 0x40000, scoped, tag = 'output window, operand 0, single buffered']
    %12 = vsyncpa [#allocation4], 0
    %13 = vsyncpa [#allocation5], 0
    // Predicated region
    $region2: #{tpu_custom_call.1} parent=1 // pred_check
      _
    $region3: #{tpu_custom_call.1} parent=1 // pred_check_branch
      %15 = sbr.rel (0) target = $region5
    $region4: #{tpu_custom_call.1} parent=1 // pred_region
      _
    $region5: #{tpu_custom_call.1} parent=1 // pred_fallthru
      _
    // Predicated region
    $region6: #{tpu_custom_call.1} parent=1 // pred_check
      _
    $region7: #{tpu_custom_call.1} parent=1 // pred_check_branch
      %17 = sbr.rel (0) target = $region9
    $region8: #{tpu_custom_call.1} parent=1 // pred_region
      _
    $region9: #{tpu_custom_call.1} parent=1 // pred_fallthru
      _
    // Predicated region
    $region10: #{tpu_custom_call.1} parent=1 // pred_check
      _
    $region11: #{tpu_custom_call.1} parent=1 // pred_check_branch
      %19 = sbr.rel (0) target = $region13
    $region12: #{tpu_custom_call.1} parent=1 // pred_region
      _
    $region13: #{tpu_custom_call.1} parent=1 // pred_fallthru
      _
    // Predicated region
    $region14: #{tpu_custom_call.1} parent=1 // pred_check
      _
    $region15: #{tpu_custom_call.1} parent=1 // pred_check_branch
      %21 = sbr.rel (0) target = $region17
    $region16: #{tpu_custom_call.1} parent=1 // pred_region
      _
    $region17: #{tpu_custom_call.1} parent=1 // pred_fallthru
      _
    // Predicated region
    $region18: #{tpu_custom_call.1} parent=1 // pred_check
      _
    $region19: #{tpu_custom_call.1} parent=1 // pred_check_branch
      %23 = sbr.rel (0) target = $region21
    $region20: #{tpu_custom_call.1} parent=1 // pred_region
      %25 = vsyncadd [#allocation4], 0
      %s26 = sshll.u32 %s4, 4
      %s27 = int_to_ptr.hbm [resolvable:$true] %s26
      %s28 = sshll.u32 [#allocation3], 4
      %s29 = int_to_ptr.vmem [resolvable:$true] %s28
      %34 = dma.hbm_to_vmem [thread:$0]  %s27, 18432, %s29, [#allocation4], 128, 128, 8
    $region21: #{tpu_custom_call.1} parent=1 // pred_fallthru
      _
    // Predicated region
    $region22: #{tpu_custom_call.1} parent=1 // pred_check
      _
    $region23: #{tpu_custom_call.1} parent=1 // pred_check_branch
      %36 = sbr.rel (0) target = $region25
    $region24: #{tpu_custom_call.1} parent=1 // pred_region
      _
    $region25: #{tpu_custom_call.1} parent=1 // pred_fallthru
      _
    // Predicated region
    $region26: #{tpu_custom_call.1} parent=1 // pred_check
      _
    $region27: #{tpu_custom_call.1} parent=1 // pred_check_branch
      %38 = sbr.rel (0) target = $region29
    $region28: #{tpu_custom_call.1} parent=1 // pred_region
      _
    $region29: #{tpu_custom_call.1} parent=1 // pred_fallthru
      _
    // Predicated region
    $region30: #{tpu_custom_call.1} parent=1 // pred_check
      _
    $region31: #{tpu_custom_call.1} parent=1 // pred_check_branch
      %40 = sbr.rel (0) target = $region33
    $region32: #{tpu_custom_call.1} parent=1 // pred_region
      %42 = dma.done [#allocation4], 18432
    $region33: #{tpu_custom_call.1} parent=1 // pred_fallthru
      _
    %v43 = vld [vmem:[%s0] sm:$0xff]
    %v44 = vld [vmem:[%s0 + $0x8] sm:$0xff]
    %v45 = vld [vmem:[%s0 + $0x18] sm:$0xff]
    %v46 = vld [vmem:[%s0 + $0x20] sm:$0xff]
    %v47 = vld [vmem:[%s0 + $0x30] sm:$0xff]
    %v48 = vld [vmem:[%s0 + $0x38] sm:$0xff]
    %v49 = vld [vmem:[%s0 + $0x48] sm:$0xff]
    %v50 = vld [vmem:[%s0 + $0x50] sm:$0xff]
    %v51 = vld [vmem:[%s0 + $0x60] sm:$0xff]
    %v52 = vld [vmem:[%s0 + $0x68] sm:$0xff]
    %v53 = vld [vmem:[%s0 + $0x78] sm:$0xff]
    %v54 = vld [vmem:[%s0 + $0x80] sm:$0xff]
    %v55 = vld [vmem:[%s0 + $0x90] sm:$0xff]
    %v56 = vld [vmem:[%s0 + $0x98] sm:$0xff]
    %v57 = vld [vmem:[%s0 + $0xa8] sm:$0xff]
    %v58 = vld [vmem:[%s0 + $0xb0] sm:$0xff]
    %v59 = vld [vmem:[%s0 + $0xc0] sm:$0xff]
    %v60 = vld [vmem:[%s0 + $0xc8] sm:$0xff]
    %v61 = vld [vmem:[%s0 + $0xd8] sm:$0xff]
    %v62 = vld [vmem:[%s0 + $0xe0] sm:$0xff]
    %v63 = vld [vmem:[%s0 + $0xf0] sm:$0xff]
    %v64 = vld [vmem:[%s0 + $0xf8] sm:$0xff]
    %v65 = vld [vmem:[%s0 + $0x108] sm:$0xff]
    %v66 = vld [vmem:[%s0 + $0x110] sm:$0xff]
    %v67 = vld [vmem:[%s0 + $0x120] sm:$0xff]
    %v68 = vld [vmem:[%s0 + $0x128] sm:$0xff]
    %v69 = vld [vmem:[%s0 + $0x138] sm:$0xff]
    %v70 = vld [vmem:[%s0 + $0x140] sm:$0xff]
    %v71 = vld [vmem:[%s0 + $0x150] sm:$0xff]
    %v72 = vld [vmem:[%s0 + $0x158] sm:$0xff]
    %v73 = vld [vmem:[%s0 + $0x168] sm:$0xff]
    %v74 = vld [vmem:[%s0 + $0x170] sm:$0xff]
    %v75 = vld [vmem:[%s0 + $0x180] sm:$0xff]
    %v76 = vld [vmem:[%s0 + $0x188] sm:$0xff]
    %v77 = vld [vmem:[%s0 + $0x198] sm:$0xff]
    %v78 = vld [vmem:[%s0 + $0x1a0] sm:$0xff]
    %v79 = vld [vmem:[%s0 + $0x1b0] sm:$0xff]
    %v80 = vld [vmem:[%s0 + $0x1b8] sm:$0xff]
    %v81 = vld [vmem:[%s0 + $0x1c8] sm:$0xff]
    %v82 = vld [vmem:[%s0 + $0x1d0] sm:$0xff]
    %v83 = vld [vmem:[%s0 + $0x1e0] sm:$0xff]
    %v84 = vld [vmem:[%s0 + $0x1e8] sm:$0xff]
    %v85 = vld [vmem:[%s0 + $0x1f8] sm:$0xff]
    %v86 = vld [vmem:[%s0 + $0x200] sm:$0xff]
    %v87 = vld [vmem:[%s0 + $0x210] sm:$0xff]
    %v88 = vld [vmem:[%s0 + $0x218] sm:$0xff]
    %v89 = vld [vmem:[%s0 + $0x228] sm:$0xff]
    %v90 = vld [vmem:[%s0 + $0x230] sm:$0xff]
    %v91 = vld [vmem:[%s0 + $0x240] sm:$0xff]
    %v92 = vld [vmem:[%s0 + $0x248] sm:$0xff]
    %v93 = vld [vmem:[%s0 + $0x258] sm:$0xff]
    %v94 = vld [vmem:[%s0 + $0x260] sm:$0xff]
    %v95 = vld [vmem:[%s0 + $0x270] sm:$0xff]
    %v96 = vld [vmem:[%s0 + $0x278] sm:$0xff]
    %v97 = vld [vmem:[%s0 + $0x288] sm:$0xff]
    %v98 = vld [vmem:[%s0 + $0x290] sm:$0xff]
    %v99 = vld [vmem:[%s0 + $0x2a0] sm:$0xff]
    %v100 = vld [vmem:[%s0 + $0x2a8] sm:$0xff]
    %v101 = vld [vmem:[%s0 + $0x2b8] sm:$0xff]
    %v102 = vld [vmem:[%s0 + $0x2c0] sm:$0xff]
    %v103 = vld [vmem:[%s0 + $0x2d0] sm:$0xff]
    %v104 = vld [vmem:[%s0 + $0x2d8] sm:$0xff]
    %v105 = vld [vmem:[%s0 + $0x2e8] sm:$0xff]
    %v106 = vld [vmem:[%s0 + $0x2f0] sm:$0xff]
    %v107 = vld [vmem:[%s0 + $0x300] sm:$0xff]
    %v108 = vld [vmem:[%s0 + $0x308] sm:$0xff]
    %v109 = vld [vmem:[%s0 + $0x318] sm:$0xff]
    %v110 = vld [vmem:[%s0 + $0x320] sm:$0xff]
    %v111 = vld [vmem:[%s0 + $0x330] sm:$0xff]
    %v112 = vld [vmem:[%s0 + $0x338] sm:$0xff]
    %v113 = vld [vmem:[%s0 + $0x348] sm:$0xff]
    %v114 = vld [vmem:[%s0 + $0x350] sm:$0xff]
    %v115 = vld [vmem:[%s0 + $0x1] sm:$0xff]
    %v116 = vld [vmem:[%s0 + $0x9] sm:$0xff]
    %v117 = vld [vmem:[%s0 + $0x19] sm:$0xff]
    %v118 = vld [vmem:[%s0 + $0x21] sm:$0xff]
    %v119 = vld [vmem:[%s0 + $0x31] sm:$0xff]
    %v120 = vld [vmem:[%s0 + $0x39] sm:$0xff]
    %v121 = vld [vmem:[%s0 + $0x49] sm:$0xff]
    %v122 = vld [vmem:[%s0 + $0x51] sm:$0xff]
    %v123 = vld [vmem:[%s0 + $0x61] sm:$0xff]
    %v124 = vld [vmem:[%s0 + $0x69] sm:$0xff]
    %v125 = vld [vmem:[%s0 + $0x79] sm:$0xff]
    %v126 = vld [vmem:[%s0 + $0x81] sm:$0xff]
    %v127 = vld [vmem:[%s0 + $0x91] sm:$0xff]
    %v128 = vld [vmem:[%s0 + $0x99] sm:$0xff]
    %v129 = vld [vmem:[%s0 + $0xa9] sm:$0xff]
    %v130 = vld [vmem:[%s0 + $0xb1] sm:$0xff]
    %v131 = vld [vmem:[%s0 + $0xc1] sm:$0xff]
    %v132 = vld [vmem:[%s0 + $0xc9] sm:$0xff]
    %v133 = vld [vmem:[%s0 + $0xd9] sm:$0xff]
    %v134 = vld [vmem:[%s0 + $0xe1] sm:$0xff]
    %v135 = vld [vmem:[%s0 + $0xf1] sm:$0xff]
    %v136 = vld [vmem:[%s0 + $0xf9] sm:$0xff]
    %v137 = vld [vmem:[%s0 + $0x109] sm:$0xff]
    %v138 = vld [vmem:[%s0 + $0x111] sm:$0xff]
    %v139 = vld [vmem:[%s0 + $0x121] sm:$0xff]
    %v140 = vld [vmem:[%s0 + $0x129] sm:$0xff]
    %v141 = vld [vmem:[%s0 + $0x139] sm:$0xff]
    %v142 = vld [vmem:[%s0 + $0x141] sm:$0xff]
    %v143 = vld [vmem:[%s0 + $0x151] sm:$0xff]
    %v144 = vld [vmem:[%s0 + $0x159] sm:$0xff]
    %v145 = vld [vmem:[%s0 + $0x169] sm:$0xff]
    %v146 = vld [vmem:[%s0 + $0x171] sm:$0xff]
    %v147 = vld [vmem:[%s0 + $0x181] sm:$0xff]
    %v148 = vld [vmem:[%s0 + $0x189] sm:$0xff]
    %v149 = vld [vmem:[%s0 + $0x199] sm:$0xff]
    %v150 = vld [vmem:[%s0 + $0x1a1] sm:$0xff]
    %v151 = vld [vmem:[%s0 + $0x1b1] sm:$0xff]
    %v152 = vld [vmem:[%s0 + $0x1b9] sm:$0xff]
    %v153 = vld [vmem:[%s0 + $0x1c9] sm:$0xff]
    %v154 = vld [vmem:[%s0 + $0x1d1] sm:$0xff]
    %v155 = vld [vmem:[%s0 + $0x1e1] sm:$0xff]
    %v156 = vld [vmem:[%s0 + $0x1e9] sm:$0xff]
    %v157 = vld [vmem:[%s0 + $0x1f9] sm:$0xff]
    %v158 = vld [vmem:[%s0 + $0x201] sm:$0xff]
    %v159 = vld [vmem:[%s0 + $0x211] sm:$0xff]
    %v160 = vld [vmem:[%s0 + $0x219] sm:$0xff]
    %v161 = vld [vmem:[%s0 + $0x229] sm:$0xff]
    %v162 = vld [vmem:[%s0 + $0x231] sm:$0xff]
    %v163 = vld [vmem:[%s0 + $0x241] sm:$0xff]
    %v164 = vld [vmem:[%s0 + $0x249] sm:$0xff]
    %v165 = vld [vmem:[%s0 + $0x259] sm:$0xff]
    %v166 = vld [vmem:[%s0 + $0x261] sm:$0xff]
    %v167 = vld [vmem:[%s0 + $0x271] sm:$0xff]
    %v168 = vld [vmem:[%s0 + $0x279] sm:$0xff]
    %v169 = vld [vmem:[%s0 + $0x289] sm:$0xff]
    %v170 = vld [vmem:[%s0 + $0x291] sm:$0xff]
    %v171 = vld [vmem:[%s0 + $0x2a1] sm:$0xff]
    %v172 = vld [vmem:[%s0 + $0x2a9] sm:$0xff]
    %v173 = vld [vmem:[%s0 + $0x2b9] sm:$0xff]
    %v174 = vld [vmem:[%s0 + $0x2c1] sm:$0xff]
    %v175 = vld [vmem:[%s0 + $0x2d1] sm:$0xff]
    %v176 = vld [vmem:[%s0 + $0x2d9] sm:$0xff]
    %v177 = vld [vmem:[%s0 + $0x2e9] sm:$0xff]
    %v178 = vld [vmem:[%s0 + $0x2f1] sm:$0xff]
    %v179 = vld [vmem:[%s0 + $0x301] sm:$0xff]
    %v180 = vld [vmem:[%s0 + $0x309] sm:$0xff]
    %v181 = vld [vmem:[%s0 + $0x319] sm:$0xff]
    %v182 = vld [vmem:[%s0 + $0x321] sm:$0xff]
    %v183 = vld [vmem:[%s0 + $0x331] sm:$0xff]
    %v184 = vld [vmem:[%s0 + $0x339] sm:$0xff]
    %v185 = vld [vmem:[%s0 + $0x349] sm:$0xff]
    %v186 = vld [vmem:[%s0 + $0x351] sm:$0xff]
    %v187 = vld [vmem:[%s0 + $0x2] sm:$0xff]
    %v188 = vld [vmem:[%s0 + $0xa] sm:$0xff]
    %v189 = vld [vmem:[%s0 + $0x1a] sm:$0xff]
    %v190 = vld [vmem:[%s0 + $0x22] sm:$0xff]
    %v191 = vld [vmem:[%s0 + $0x32] sm:$0xff]
    %v192 = vld [vmem:[%s0 + $0x3a] sm:$0xff]
    %v193 = vld [vmem:[%s0 + $0x4a] sm:$0xff]
    %v194 = vld [vmem:[%s0 + $0x52] sm:$0xff]
    %v195 = vld [vmem:[%s0 + $0x62] sm:$0xff]
    %v196 = vld [vmem:[%s0 + $0x6a] sm:$0xff]
    %v197 = vld [vmem:[%s0 + $0x7a] sm:$0xff]
    %v198 = vld [vmem:[%s0 + $0x82] sm:$0xff]
    %v199 = vld [vmem:[%s0 + $0x92] sm:$0xff]
    %v200 = vld [vmem:[%s0 + $0x9a] sm:$0xff]
    %v201 = vld [vmem:[%s0 + $0xaa] sm:$0xff]
    %v202 = vld [vmem:[%s0 + $0xb2] sm:$0xff]
    %v203 = vld [vmem:[%s0 + $0xc2] sm:$0xff]
    %v204 = vld [vmem:[%s0 + $0xca] sm:$0xff]
    %v205 = vld [vmem:[%s0 + $0xda] sm:$0xff]
    %v206 = vld [vmem:[%s0 + $0xe2] sm:$0xff]
    %v207 = vld [vmem:[%s0 + $0xf2] sm:$0xff]
    %v208 = vld [vmem:[%s0 + $0xfa] sm:$0xff]
    %v209 = vld [vmem:[%s0 + $0x10a] sm:$0xff]
    %v210 = vld [vmem:[%s0 + $0x112] sm:$0xff]
    %v211 = vld [vmem:[%s0 + $0x122] sm:$0xff]
    %v212 = vld [vmem:[%s0 + $0x12a] sm:$0xff]
    %v213 = vld [vmem:[%s0 + $0x13a] sm:$0xff]
    %v214 = vld [vmem:[%s0 + $0x142] sm:$0xff]
    %v215 = vld [vmem:[%s0 + $0x152] sm:$0xff]
    %v216 = vld [vmem:[%s0 + $0x15a] sm:$0xff]
    %v217 = vld [vmem:[%s0 + $0x16a] sm:$0xff]
    %v218 = vld [vmem:[%s0 + $0x172] sm:$0xff]
    %v219 = vld [vmem:[%s0 + $0x182] sm:$0xff]
    %v220 = vld [vmem:[%s0 + $0x18a] sm:$0xff]
    %v221 = vld [vmem:[%s0 + $0x19a] sm:$0xff]
    %v222 = vld [vmem:[%s0 + $0x1a2] sm:$0xff]
    %v223 = vld [vmem:[%s0 + $0x1b2] sm:$0xff]
    %v224 = vld [vmem:[%s0 + $0x1ba] sm:$0xff]
    %v225 = vld [vmem:[%s0 + $0x1ca] sm:$0xff]
    %v226 = vld [vmem:[%s0 + $0x1d2] sm:$0xff]
    %v227 = vld [vmem:[%s0 + $0x1e2] sm:$0xff]
    %v228 = vld [vmem:[%s0 + $0x1ea] sm:$0xff]
    %v229 = vld [vmem:[%s0 + $0x1fa] sm:$0xff]
    %v230 = vld [vmem:[%s0 + $0x202] sm:$0xff]
    %v231 = vld [vmem:[%s0 + $0x212] sm:$0xff]
    %v232 = vld [vmem:[%s0 + $0x21a] sm:$0xff]
    %v233 = vld [vmem:[%s0 + $0x22a] sm:$0xff]
    %v234 = vld [vmem:[%s0 + $0x232] sm:$0xff]
    %v235 = vld [vmem:[%s0 + $0x242] sm:$0xff]
    %v236 = vld [vmem:[%s0 + $0x24a] sm:$0xff]
    %v237 = vld [vmem:[%s0 + $0x25a] sm:$0xff]
    %v238 = vld [vmem:[%s0 + $0x262] sm:$0xff]
    %v239 = vld [vmem:[%s0 + $0x272] sm:$0xff]
    %v240 = vld [vmem:[%s0 + $0x27a] sm:$0xff]
    %v241 = vld [vmem:[%s0 + $0x28a] sm:$0xff]
    %v242 = vld [vmem:[%s0 + $0x292] sm:$0xff]
    %v243 = vld [vmem:[%s0 + $0x2a2] sm:$0xff]
    %v244 = vld [vmem:[%s0 + $0x2aa] sm:$0xff]
    %v245 = vld [vmem:[%s0 + $0x2ba] sm:$0xff]
    %v246 = vld [vmem:[%s0 + $0x2c2] sm:$0xff]
    %v247 = vld [vmem:[%s0 + $0x2d2] sm:$0xff]
    %v248 = vld [vmem:[%s0 + $0x2da] sm:$0xff]
    %v249 = vld [vmem:[%s0 + $0x2ea] sm:$0xff]
    %v250 = vld [vmem:[%s0 + $0x2f2] sm:$0xff]
    %v251 = vld [vmem:[%s0 + $0x302] sm:$0xff]
    %v252 = vld [vmem:[%s0 + $0x30a] sm:$0xff]
    %v253 = vld [vmem:[%s0 + $0x31a] sm:$0xff]
    %v254 = vld [vmem:[%s0 + $0x322] sm:$0xff]
    %v255 = vld [vmem:[%s0 + $0x332] sm:$0xff]
    %v256 = vld [vmem:[%s0 + $0x33a] sm:$0xff]
    %v257 = vld [vmem:[%s0 + $0x34a] sm:$0xff]
    %v258 = vld [vmem:[%s0 + $0x352] sm:$0xff]
    %v259 = vld [vmem:[%s1] sm:$0xff]
    %v260 = vld [vmem:[%s1 + $0x8] sm:$0xff]
    %v261 = vld [vmem:[%s1 + $0x10] sm:$0xff]
    %v262 = vld [vmem:[%s1 + $0x18] sm:$0xff]
    %v263 = vld [vmem:[%s1 + $0x20] sm:$0xff]
    %v264 = vld [vmem:[%s1 + $0x28] sm:$0xff]
    %v265 = vld [vmem:[%s1 + $0x30] sm:$0xff]
    %v266 = vld [vmem:[%s1 + $0x38] sm:$0xff]
    %v267 = vld [vmem:[%s1 + $0x40] sm:$0xff]
    %v268 = vld [vmem:[%s1 + $0x48] sm:$0xff]
    %v269 = vld [vmem:[%s1 + $0x50] sm:$0xff]
    %v270 = vld [vmem:[%s1 + $0x58] sm:$0xff]
    %v271 = vld [vmem:[%s1 + $0x60] sm:$0xff]
    %v272 = vld [vmem:[%s1 + $0x68] sm:$0xff]
    %v273 = vld [vmem:[%s1 + $0x70] sm:$0xff]
    %v274 = vld [vmem:[%s1 + $0x78] sm:$0xff]
    %v275 = vld [vmem:[%s1 + $0x80] sm:$0xff]
    %v276 = vld [vmem:[%s1 + $0x88] sm:$0xff]
    %v277 = vld [vmem:[%s1 + $0x90] sm:$0xff]
    %v278 = vld [vmem:[%s1 + $0x98] sm:$0xff]
    %v279 = vld [vmem:[%s1 + $0xa0] sm:$0xff]
    %v280 = vld [vmem:[%s1 + $0xa8] sm:$0xff]
    %v281 = vld [vmem:[%s1 + $0xb0] sm:$0xff]
    %v282 = vld [vmem:[%s1 + $0xb8] sm:$0xff]
    %v283 = vld [vmem:[%s1 + $0xc0] sm:$0xff]
    %v284 = vld [vmem:[%s1 + $0xc8] sm:$0xff]
    %v285 = vld [vmem:[%s1 + $0xd0] sm:$0xff]
    %v286 = vld [vmem:[%s1 + $0xd8] sm:$0xff]
    %v287 = vld [vmem:[%s1 + $0xe0] sm:$0xff]
    %v288 = vld [vmem:[%s1 + $0xe8] sm:$0xff]
    %v289 = vld [vmem:[%s1 + $0xf0] sm:$0xff]
    %v290 = vld [vmem:[%s1 + $0xf8] sm:$0xff]
    %v291 = vld [vmem:[%s1 + $0x100] sm:$0xff]
    %v292 = vld [vmem:[%s1 + $0x108] sm:$0xff]
    %v293 = vld [vmem:[%s1 + $0x110] sm:$0xff]
    %v294 = vld [vmem:[%s1 + $0x118] sm:$0xff]
    %v295 = vld [vmem:[%s1 + $0x120] sm:$0xff]
    %v296 = vld [vmem:[%s1 + $0x128] sm:$0xff]
    %v297 = vld [vmem:[%s1 + $0x130] sm:$0xff]
    %v298 = vld [vmem:[%s1 + $0x138] sm:$0xff]
    %v299 = vld [vmem:[%s1 + $0x140] sm:$0xff]
    %v300 = vld [vmem:[%s1 + $0x148] sm:$0xff]
    %v301 = vld [vmem:[%s1 + $0x150] sm:$0xff]
    %v302 = vld [vmem:[%s1 + $0x158] sm:$0xff]
    %v303 = vld [vmem:[%s1 + $0x160] sm:$0xff]
    %v304 = vld [vmem:[%s1 + $0x168] sm:$0xff]
    %v305 = vld [vmem:[%s1 + $0x170] sm:$0xff]
    %v306 = vld [vmem:[%s1 + $0x178] sm:$0xff]
    %v307 = vld [vmem:[%s1 + $0x180] sm:$0xff]
    %v308 = vld [vmem:[%s1 + $0x188] sm:$0xff]
    %v309 = vld [vmem:[%s1 + $0x190] sm:$0xff]
    %v310 = vld [vmem:[%s1 + $0x198] sm:$0xff]
    %v311 = vld [vmem:[%s1 + $0x1a0] sm:$0xff]
    %v312 = vld [vmem:[%s1 + $0x1a8] sm:$0xff]
    %v313 = vld [vmem:[%s1 + $0x1b0] sm:$0xff]
    %v314 = vld [vmem:[%s1 + $0x1b8] sm:$0xff]
    %v315 = vld [vmem:[%s1 + $0x1c0] sm:$0xff]
    %v316 = vld [vmem:[%s1 + $0x1c8] sm:$0xff]
    %v317 = vld [vmem:[%s1 + $0x1d0] sm:$0xff]
    %v318 = vld [vmem:[%s1 + $0x1d8] sm:$0xff]
    %v319 = vld [vmem:[%s1 + $0x1e0] sm:$0xff]
    %v320 = vld [vmem:[%s1 + $0x1e8] sm:$0xff]
    %v321 = vld [vmem:[%s1 + $0x1f0] sm:$0xff]
    %v322 = vld [vmem:[%s1 + $0x1f8] sm:$0xff]
    %v323 = vld [vmem:[%s1 + $0x200] sm:$0xff]
    %v324 = vld [vmem:[%s1 + $0x208] sm:$0xff]
    %v325 = vld [vmem:[%s1 + $0x210] sm:$0xff]
    %v326 = vld [vmem:[%s1 + $0x218] sm:$0xff]
    %v327 = vld [vmem:[%s1 + $0x220] sm:$0xff]
    %v328 = vld [vmem:[%s1 + $0x228] sm:$0xff]
    %v329 = vld [vmem:[%s1 + $0x230] sm:$0xff]
    %v330 = vld [vmem:[%s1 + $0x238] sm:$0xff]
    %v331 = vld [vmem:[%s1 + $0x240] sm:$0xff]
    %v332 = vld [vmem:[%s1 + $0x248] sm:$0xff]
    %v333 = vld [vmem:[%s1 + $0x250] sm:$0xff]
    %v334 = vld [vmem:[%s1 + $0x258] sm:$0xff]
    %v335 = vld [vmem:[%s1 + $0x260] sm:$0xff]
    %v336 = vld [vmem:[%s1 + $0x268] sm:$0xff]
    %v337 = vld [vmem:[%s1 + $0x270] sm:$0xff]
    %v338 = vld [vmem:[%s1 + $0x278] sm:$0xff]
    %v339 = vld [vmem:[%s1 + $0x280] sm:$0xff]
    %v340 = vld [vmem:[%s1 + $0x288] sm:$0xff]
    %v341 = vld [vmem:[%s1 + $0x290] sm:$0xff]
    %v342 = vld [vmem:[%s1 + $0x298] sm:$0xff]
    %v343 = vld [vmem:[%s1 + $0x2a0] sm:$0xff]
    %v344 = vld [vmem:[%s1 + $0x2a8] sm:$0xff]
    %v345 = vld [vmem:[%s1 + $0x2b0] sm:$0xff]
    %v346 = vld [vmem:[%s1 + $0x2b8] sm:$0xff]
    %v347 = vld [vmem:[%s1 + $0x2c0] sm:$0xff]
    %v348 = vld [vmem:[%s1 + $0x2c8] sm:$0xff]
    %v349 = vld [vmem:[%s1 + $0x2d0] sm:$0xff]
    %v350 = vld [vmem:[%s1 + $0x2d8] sm:$0xff]
    %v351 = vld [vmem:[%s1 + $0x2e0] sm:$0xff]
    %v352 = vld [vmem:[%s1 + $0x2e8] sm:$0xff]
    %v353 = vld [vmem:[%s1 + $0x2f0] sm:$0xff]
    %v354 = vld [vmem:[%s1 + $0x2f8] sm:$0xff]
    %v355 = vld [vmem:[%s1 + $0x300] sm:$0xff]
    %v356 = vld [vmem:[%s1 + $0x308] sm:$0xff]
    %v357 = vld [vmem:[%s1 + $0x310] sm:$0xff]
    %v358 = vld [vmem:[%s1 + $0x318] sm:$0xff]
    %v359 = vld [vmem:[%s1 + $0x320] sm:$0xff]
    %v360 = vld [vmem:[%s1 + $0x328] sm:$0xff]
    %v361 = vld [vmem:[%s1 + $0x330] sm:$0xff]
    %v362 = vld [vmem:[%s1 + $0x338] sm:$0xff]
    %v363 = vld [vmem:[%s1 + $0x340] sm:$0xff]
    %v364 = vld [vmem:[%s1 + $0x348] sm:$0xff]
    %v365 = vld [vmem:[%s1 + $0x350] sm:$0xff]
    %v366 = vld [vmem:[%s1 + $0x358] sm:$0xff]
    %v367 = vld [vmem:[%s1 + $0x360] sm:$0xff]
    %v368 = vld [vmem:[%s1 + $0x368] sm:$0xff]
    %v369 = vld [vmem:[%s1 + $0x370] sm:$0xff]
    %v370 = vld [vmem:[%s1 + $0x378] sm:$0xff]
    %v371 = vld [vmem:[%s1 + $0x380] sm:$0xff]
    %v372 = vld [vmem:[%s1 + $0x388] sm:$0xff]
    %v373 = vld [vmem:[%s1 + $0x390] sm:$0xff]
    %v374 = vld [vmem:[%s1 + $0x398] sm:$0xff]
    %v375 = vld [vmem:[%s1 + $0x3a0] sm:$0xff]
    %v376 = vld [vmem:[%s1 + $0x3a8] sm:$0xff]
    %v377 = vld [vmem:[%s1 + $0x3b0] sm:$0xff]
    %v378 = vld [vmem:[%s1 + $0x3b8] sm:$0xff]
    %v379 = vld [vmem:[%s1 + $0x3c0] sm:$0xff]
    %v380 = vld [vmem:[%s1 + $0x3c8] sm:$0xff]
    %v381 = vld [vmem:[%s1 + $0x3d0] sm:$0xff]
    %v382 = vld [vmem:[%s1 + $0x3d8] sm:$0xff]
    %v383 = vld [vmem:[%s1 + $0x3e0] sm:$0xff]
    %v384 = vld [vmem:[%s1 + $0x3e8] sm:$0xff]
    %v385 = vld [vmem:[%s1 + $0x3f0] sm:$0xff]
    %v386 = vld [vmem:[%s1 + $0x3f8] sm:$0xff]
    %v387 = vld [vmem:[%s1 + $0x400] sm:$0xff]
    %v388 = vld [vmem:[%s1 + $0x408] sm:$0xff]
    %v389 = vld [vmem:[%s1 + $0x410] sm:$0xff]
    %v390 = vld [vmem:[%s1 + $0x418] sm:$0xff]
    %v391 = vld [vmem:[%s1 + $0x420] sm:$0xff]
    %v392 = vld [vmem:[%s1 + $0x428] sm:$0xff]
    %v393 = vld [vmem:[%s1 + $0x430] sm:$0xff]
    %v394 = vld [vmem:[%s1 + $0x438] sm:$0xff]
    %v395 = vld [vmem:[%s1 + $0x440] sm:$0xff]
    %v396 = vld [vmem:[%s1 + $0x448] sm:$0xff]
    %v397 = vld [vmem:[%s1 + $0x450] sm:$0xff]
    %v398 = vld [vmem:[%s1 + $0x458] sm:$0xff]
    %v399 = vld [vmem:[%s1 + $0x460] sm:$0xff]
    %v400 = vld [vmem:[%s1 + $0x468] sm:$0xff]
    %v401 = vld [vmem:[%s1 + $0x470] sm:$0xff]
    %v402 = vld [vmem:[%s1 + $0x478] sm:$0xff]
    %403 = vmatpush.msra.mxu0 %v274
    %404 = vmatpush.msra.mxu0 %v273
    %405 = vmatpush.msra.mxu0 %v272
    %406 = vmatpush.msra.mxu0 %v271
    %407 = vmatpush.msra.mxu0 %v270
    %408 = vmatpush.msra.mxu0 %v269
    %409 = vmatpush.msra.mxu0 %v268
    %410 = vmatpush.msra.mxu0 %v267
    %411 = vmatpush.msra.mxu0 %v266
    %412 = vmatpush.msra.mxu0 %v265
    %413 = vmatpush.msra.mxu0 %v264
    %414 = vmatpush.msra.mxu0 %v263
    %415 = vmatpush.msra.mxu0 %v262
    %416 = vmatpush.msra.mxu0 %v261
    %417 = vmatpush.msra.mxu0 %v260
    %418 = vmatpush.msra.mxu0 %v259
    %419 = vmatmul.f32.gmra.mxu0 %v43
    %v420 = vpop.f32.mrf.mxu0
    %v421 = vadd.f32 0.0, %v420
    %422 = vmatmul.f32.gmra.mxu0 %v44
    %v423 = vpop.f32.mrf.mxu0
    %v424 = vadd.f32 0.0, %v423
    %425 = vmatmul.f32.gmra.mxu0 %v45
    %v426 = vpop.f32.mrf.mxu0
    %v427 = vadd.f32 0.0, %v426
    %428 = vmatmul.f32.gmra.mxu0 %v46
    %v429 = vpop.f32.mrf.mxu0
    %v430 = vadd.f32 0.0, %v429
    %431 = vmatmul.f32.gmra.mxu0 %v47
    %v432 = vpop.f32.mrf.mxu0
    %v433 = vadd.f32 0.0, %v432
    %434 = vmatmul.f32.gmra.mxu0 %v48
    %v435 = vpop.f32.mrf.mxu0
    %v436 = vadd.f32 0.0, %v435
    %437 = vmatmul.f32.gmra.mxu0 %v49
    %v438 = vpop.f32.mrf.mxu0
    %v439 = vadd.f32 0.0, %v438
    %440 = vmatmul.f32.gmra.mxu0 %v50
    %v441 = vpop.f32.mrf.mxu0
    %v442 = vadd.f32 0.0, %v441
    %443 = vmatmul.f32.gmra.mxu0 %v51
    %v444 = vpop.f32.mrf.mxu0
    %v445 = vadd.f32 0.0, %v444
    %446 = vmatmul.f32.gmra.mxu0 %v52
    %v447 = vpop.f32.mrf.mxu0
    %v448 = vadd.f32 0.0, %v447
    %449 = vmatmul.f32.gmra.mxu0 %v53
    %v450 = vpop.f32.mrf.mxu0
    %v451 = vadd.f32 0.0, %v450
    %452 = vmatmul.f32.gmra.mxu0 %v54
    %v453 = vpop.f32.mrf.mxu0
    %v454 = vadd.f32 0.0, %v453
    %455 = vmatmul.f32.gmra.mxu0 %v55
    %v456 = vpop.f32.mrf.mxu0
    %v457 = vadd.f32 0.0, %v456
    %458 = vmatmul.f32.gmra.mxu0 %v56
    %v459 = vpop.f32.mrf.mxu0
    %v460 = vadd.f32 0.0, %v459
    %461 = vmatmul.f32.gmra.mxu0 %v57
    %v462 = vpop.f32.mrf.mxu0
    %v463 = vadd.f32 0.0, %v462
    %464 = vmatmul.f32.gmra.mxu0 %v58
    %v465 = vpop.f32.mrf.mxu0
    %v466 = vadd.f32 0.0, %v465
    %467 = vmatmul.f32.gmra.mxu0 %v59
    %v468 = vpop.f32.mrf.mxu0
    %v469 = vadd.f32 0.0, %v468
    %470 = vmatmul.f32.gmra.mxu0 %v60
    %v471 = vpop.f32.mrf.mxu0
    %v472 = vadd.f32 0.0, %v471
    %473 = vmatmul.f32.gmra.mxu0 %v61
    %v474 = vpop.f32.mrf.mxu0
    %v475 = vadd.f32 0.0, %v474
    %476 = vmatmul.f32.gmra.mxu0 %v62
    %v477 = vpop.f32.mrf.mxu0
    %v478 = vadd.f32 0.0, %v477
    %479 = vmatmul.f32.gmra.mxu0 %v63
    %v480 = vpop.f32.mrf.mxu0
    %v481 = vadd.f32 0.0, %v480
    %482 = vmatmul.f32.gmra.mxu0 %v64
    %v483 = vpop.f32.mrf.mxu0
    %v484 = vadd.f32 0.0, %v483
    %485 = vmatmul.f32.gmra.mxu0 %v65
    %v486 = vpop.f32.mrf.mxu0
    %v487 = vadd.f32 0.0, %v486
    %488 = vmatmul.f32.gmra.mxu0 %v66
    %v489 = vpop.f32.mrf.mxu0
    %v490 = vadd.f32 0.0, %v489
    %491 = vmatmul.f32.gmra.mxu0 %v67
    %v492 = vpop.f32.mrf.mxu0
    %v493 = vadd.f32 0.0, %v492
    %494 = vmatmul.f32.gmra.mxu0 %v68
    %v495 = vpop.f32.mrf.mxu0
    %v496 = vadd.f32 0.0, %v495
    %497 = vmatmul.f32.gmra.mxu0 %v69
    %v498 = vpop.f32.mrf.mxu0
    %v499 = vadd.f32 0.0, %v498
    %500 = vmatmul.f32.gmra.mxu0 %v70
    %v501 = vpop.f32.mrf.mxu0
    %v502 = vadd.f32 0.0, %v501
    %503 = vmatmul.f32.gmra.mxu0 %v71
    %v504 = vpop.f32.mrf.mxu0
    %v505 = vadd.f32 0.0, %v504
    %506 = vmatmul.f32.gmra.mxu0 %v72
    %v507 = vpop.f32.mrf.mxu0
    %v508 = vadd.f32 0.0, %v507
    %509 = vmatmul.f32.gmra.mxu0 %v73
    %v510 = vpop.f32.mrf.mxu0
    %v511 = vadd.f32 0.0, %v510
    %512 = vmatmul.f32.gmra.mxu0 %v74
    %v513 = vpop.f32.mrf.mxu0
    %v514 = vadd.f32 0.0, %v513
    %515 = vmatmul.f32.gmra.mxu0 %v79
    %v516 = vpop.f32.mrf.mxu0
    %v517 = vadd.f32 0.0, %v516
    %518 = vmatmul.f32.gmra.mxu0 %v80
    %v519 = vpop.f32.mrf.mxu0
    %v520 = vadd.f32 0.0, %v519
    %521 = vmatmul.f32.gmra.mxu0 %v81
    %v522 = vpop.f32.mrf.mxu0
    %v523 = vadd.f32 0.0, %v522
    %524 = vmatmul.f32.gmra.mxu0 %v82
    %v525 = vpop.f32.mrf.mxu0
    %v526 = vadd.f32 0.0, %v525
    %527 = vmatmul.f32.gmra.mxu0 %v83
    %v528 = vpop.f32.mrf.mxu0
    %v529 = vadd.f32 0.0, %v528
    %530 = vmatmul.f32.gmra.mxu0 %v84
    %v531 = vpop.f32.mrf.mxu0
    %v532 = vadd.f32 0.0, %v531
    %533 = vmatmul.f32.gmra.mxu0 %v85
    %v534 = vpop.f32.mrf.mxu0
    %v535 = vadd.f32 0.0, %v534
    %536 = vmatmul.f32.gmra.mxu0 %v86
    %v537 = vpop.f32.mrf.mxu0
    %v538 = vadd.f32 0.0, %v537
    %539 = vmatmul.f32.gmra.mxu0 %v87
    %v540 = vpop.f32.mrf.mxu0
    %v541 = vadd.f32 0.0, %v540
    %542 = vmatmul.f32.gmra.mxu0 %v88
    %v543 = vpop.f32.mrf.mxu0
    %v544 = vadd.f32 0.0, %v543
    %545 = vmatmul.f32.gmra.mxu0 %v89
    %v546 = vpop.f32.mrf.mxu0
    %v547 = vadd.f32 0.0, %v546
    %548 = vmatmul.f32.gmra.mxu0 %v90
    %v549 = vpop.f32.mrf.mxu0
    %v550 = vadd.f32 0.0, %v549
    %551 = vmatmul.f32.gmra.mxu0 %v91
    %v552 = vpop.f32.mrf.mxu0
    %v553 = vadd.f32 0.0, %v552
    %554 = vmatmul.f32.gmra.mxu0 %v92
    %v555 = vpop.f32.mrf.mxu0
    %v556 = vadd.f32 0.0, %v555
    %557 = vmatmul.f32.gmra.mxu0 %v93
    %v558 = vpop.f32.mrf.mxu0
    %v559 = vadd.f32 0.0, %v558
    %560 = vmatmul.f32.gmra.mxu0 %v94
    %v561 = vpop.f32.mrf.mxu0
    %v562 = vadd.f32 0.0, %v561
    %563 = vmatmul.f32.gmra.mxu0 %v95
    %v564 = vpop.f32.mrf.mxu0
    %v565 = vadd.f32 0.0, %v564
    %566 = vmatmul.f32.gmra.mxu0 %v96
    %v567 = vpop.f32.mrf.mxu0
    %v568 = vadd.f32 0.0, %v567
    %569 = vmatmul.f32.gmra.mxu0 %v97
    %v570 = vpop.f32.mrf.mxu0
    %v571 = vadd.f32 0.0, %v570
    %572 = vmatmul.f32.gmra.mxu0 %v98
    %v573 = vpop.f32.mrf.mxu0
    %v574 = vadd.f32 0.0, %v573
    %575 = vmatmul.f32.gmra.mxu0 %v99
    %v576 = vpop.f32.mrf.mxu0
    %v577 = vadd.f32 0.0, %v576
    %578 = vmatmul.f32.gmra.mxu0 %v100
    %v579 = vpop.f32.mrf.mxu0
    %v580 = vadd.f32 0.0, %v579
    %581 = vmatmul.f32.gmra.mxu0 %v101
    %v582 = vpop.f32.mrf.mxu0
    %v583 = vadd.f32 0.0, %v582
    %584 = vmatmul.f32.gmra.mxu0 %v102
    %v585 = vpop.f32.mrf.mxu0
    %v586 = vadd.f32 0.0, %v585
    %587 = vmatmul.f32.gmra.mxu0 %v103
    %v588 = vpop.f32.mrf.mxu0
    %v589 = vadd.f32 0.0, %v588
    %590 = vmatmul.f32.gmra.mxu0 %v104
    %v591 = vpop.f32.mrf.mxu0
    %v592 = vadd.f32 0.0, %v591
    %593 = vmatmul.f32.gmra.mxu0 %v105
    %v594 = vpop.f32.mrf.mxu0
    %v595 = vadd.f32 0.0, %v594
    %596 = vmatmul.f32.gmra.mxu0 %v106
    %v597 = vpop.f32.mrf.mxu0
    %v598 = vadd.f32 0.0, %v597
    %599 = vmatmul.f32.gmra.mxu0 %v107
    %v600 = vpop.f32.mrf.mxu0
    %v601 = vadd.f32 0.0, %v600
    %602 = vmatmul.f32.gmra.mxu0 %v108
    %v603 = vpop.f32.mrf.mxu0
    %v604 = vadd.f32 0.0, %v603
    %605 = vmatmul.f32.gmra.mxu0 %v109
    %v606 = vpop.f32.mrf.mxu0
    %v607 = vadd.f32 0.0, %v606
    %608 = vmatmul.f32.gmra.mxu0 %v110
    %v609 = vpop.f32.mrf.mxu0
    %v610 = vadd.f32 0.0, %v609
    %611 = vdwg.mxu0
    %612 = vmatpush.msra.mxu0 %v290
    %613 = vmatpush.msra.mxu0 %v289
    %614 = vmatpush.msra.mxu0 %v288
    %615 = vmatpush.msra.mxu0 %v287
    %616 = vmatpush.msra.mxu0 %v286
    %617 = vmatpush.msra.mxu0 %v285
    %618 = vmatpush.msra.mxu0 %v284
    %619 = vmatpush.msra.mxu0 %v283
    %620 = vmatpush.msra.mxu0 %v282
    %621 = vmatpush.msra.mxu0 %v281
    %622 = vmatpush.msra.mxu0 %v280
    %623 = vmatpush.msra.mxu0 %v279
    %624 = vmatpush.msra.mxu0 %v278
    %625 = vmatpush.msra.mxu0 %v277
    %626 = vmatpush.msra.mxu0 %v276
    %627 = vmatpush.msra.mxu0 %v275
    %628 = vmatmul.f32.gmra.mxu0 %v115
    %v629 = vpop.f32.mrf.mxu0
    %v630 = vadd.f32 %v421, %v629
    %631 = vmatmul.f32.gmra.mxu0 %v116
    %v632 = vpop.f32.mrf.mxu0
    %v633 = vadd.f32 %v424, %v632
    %634 = vmatmul.f32.gmra.mxu0 %v117
    %v635 = vpop.f32.mrf.mxu0
    %v636 = vadd.f32 %v427, %v635
    %637 = vmatmul.f32.gmra.mxu0 %v118
    %v638 = vpop.f32.mrf.mxu0
    %v639 = vadd.f32 %v430, %v638
    %640 = vmatmul.f32.gmra.mxu0 %v119
    %v641 = vpop.f32.mrf.mxu0
    %v642 = vadd.f32 %v433, %v641
    %643 = vmatmul.f32.gmra.mxu0 %v120
    %v644 = vpop.f32.mrf.mxu0
    %v645 = vadd.f32 %v436, %v644
    %646 = vmatmul.f32.gmra.mxu0 %v121
    %v647 = vpop.f32.mrf.mxu0
    %v648 = vadd.f32 %v439, %v647
    %649 = vmatmul.f32.gmra.mxu0 %v122
    %v650 = vpop.f32.mrf.mxu0
    %v651 = vadd.f32 %v442, %v650
    %652 = vmatmul.f32.gmra.mxu0 %v123
    %v653 = vpop.f32.mrf.mxu0
    %v654 = vadd.f32 %v445, %v653
    %655 = vmatmul.f32.gmra.mxu0 %v124
    %v656 = vpop.f32.mrf.mxu0
    %v657 = vadd.f32 %v448, %v656
    %658 = vmatmul.f32.gmra.mxu0 %v125
    %v659 = vpop.f32.mrf.mxu0
    %v660 = vadd.f32 %v451, %v659
    %661 = vmatmul.f32.gmra.mxu0 %v126
    %v662 = vpop.f32.mrf.mxu0
    %v663 = vadd.f32 %v454, %v662
    %664 = vmatmul.f32.gmra.mxu0 %v127
    %v665 = vpop.f32.mrf.mxu0
    %v666 = vadd.f32 %v457, %v665
    %667 = vmatmul.f32.gmra.mxu0 %v128
    %v668 = vpop.f32.mrf.mxu0
    %v669 = vadd.f32 %v460, %v668
    %670 = vmatmul.f32.gmra.mxu0 %v129
    %v671 = vpop.f32.mrf.mxu0
    %v672 = vadd.f32 %v463, %v671
    %673 = vmatmul.f32.gmra.mxu0 %v130
    %v674 = vpop.f32.mrf.mxu0
    %v675 = vadd.f32 %v466, %v674
    %676 = vmatmul.f32.gmra.mxu0 %v131
    %v677 = vpop.f32.mrf.mxu0
    %v678 = vadd.f32 %v469, %v677
    %679 = vmatmul.f32.gmra.mxu0 %v132
    %v680 = vpop.f32.mrf.mxu0
    %v681 = vadd.f32 %v472, %v680
    %682 = vmatmul.f32.gmra.mxu0 %v133
    %v683 = vpop.f32.mrf.mxu0
    %v684 = vadd.f32 %v475, %v683
    %685 = vmatmul.f32.gmra.mxu0 %v134
    %v686 = vpop.f32.mrf.mxu0
    %v687 = vadd.f32 %v478, %v686
    %688 = vmatmul.f32.gmra.mxu0 %v135
    %v689 = vpop.f32.mrf.mxu0
    %v690 = vadd.f32 %v481, %v689
    %691 = vmatmul.f32.gmra.mxu0 %v136
    %v692 = vpop.f32.mrf.mxu0
    %v693 = vadd.f32 %v484, %v692
    %694 = vmatmul.f32.gmra.mxu0 %v137
    %v695 = vpop.f32.mrf.mxu0
    %v696 = vadd.f32 %v487, %v695
    %697 = vmatmul.f32.gmra.mxu0 %v138
    %v698 = vpop.f32.mrf.mxu0
    %v699 = vadd.f32 %v490, %v698
    %700 = vmatmul.f32.gmra.mxu0 %v139
    %v701 = vpop.f32.mrf.mxu0
    %v702 = vadd.f32 %v493, %v701
    %703 = vmatmul.f32.gmra.mxu0 %v140
    %v704 = vpop.f32.mrf.mxu0
    %v705 = vadd.f32 %v496, %v704
    %706 = vmatmul.f32.gmra.mxu0 %v141
    %v707 = vpop.f32.mrf.mxu0
    %v708 = vadd.f32 %v499, %v707
    %709 = vmatmul.f32.gmra.mxu0 %v142
    %v710 = vpop.f32.mrf.mxu0
    %v711 = vadd.f32 %v502, %v710
    %712 = vmatmul.f32.gmra.mxu0 %v143
    %v713 = vpop.f32.mrf.mxu0
    %v714 = vadd.f32 %v505, %v713
    %715 = vmatmul.f32.gmra.mxu0 %v144
    %v716 = vpop.f32.mrf.mxu0
    %v717 = vadd.f32 %v508, %v716
    %718 = vmatmul.f32.gmra.mxu0 %v145
    %v719 = vpop.f32.mrf.mxu0
    %v720 = vadd.f32 %v511, %v719
    %721 = vmatmul.f32.gmra.mxu0 %v146
    %v722 = vpop.f32.mrf.mxu0
    %v723 = vadd.f32 %v514, %v722
    %724 = vmatmul.f32.gmra.mxu0 %v151
    %v725 = vpop.f32.mrf.mxu0
    %v726 = vadd.f32 %v517, %v725
    %727 = vmatmul.f32.gmra.mxu0 %v152
    %v728 = vpop.f32.mrf.mxu0
    %v729 = vadd.f32 %v520, %v728
    %730 = vmatmul.f32.gmra.mxu0 %v153
    %v731 = vpop.f32.mrf.mxu0
    %v732 = vadd.f32 %v523, %v731
    %733 = vmatmul.f32.gmra.mxu0 %v154
    %v734 = vpop.f32.mrf.mxu0
    %v735 = vadd.f32 %v526, %v734
    %736 = vmatmul.f32.gmra.mxu0 %v155
    %v737 = vpop.f32.mrf.mxu0
    %v738 = vadd.f32 %v529, %v737
    %739 = vmatmul.f32.gmra.mxu0 %v156
    %v740 = vpop.f32.mrf.mxu0
    %v741 = vadd.f32 %v532, %v740
    %742 = vmatmul.f32.gmra.mxu0 %v157
    %v743 = vpop.f32.mrf.mxu0
    %v744 = vadd.f32 %v535, %v743
    %745 = vmatmul.f32.gmra.mxu0 %v158
    %v746 = vpop.f32.mrf.mxu0
    %v747 = vadd.f32 %v538, %v746
    %748 = vmatmul.f32.gmra.mxu0 %v159
    %v749 = vpop.f32.mrf.mxu0
    %v750 = vadd.f32 %v541, %v749
    %751 = vmatmul.f32.gmra.mxu0 %v160
    %v752 = vpop.f32.mrf.mxu0
    %v753 = vadd.f32 %v544, %v752
    %754 = vmatmul.f32.gmra.mxu0 %v161
    %v755 = vpop.f32.mrf.mxu0
    %v756 = vadd.f32 %v547, %v755
    %757 = vmatmul.f32.gmra.mxu0 %v162
    %v758 = vpop.f32.mrf.mxu0
    %v759 = vadd.f32 %v550, %v758
    %760 = vmatmul.f32.gmra.mxu0 %v163
    %v761 = vpop.f32.mrf.mxu0
    %v762 = vadd.f32 %v553, %v761
    %763 = vmatmul.f32.gmra.mxu0 %v164
    %v764 = vpop.f32.mrf.mxu0
    %v765 = vadd.f32 %v556, %v764
    %766 = vmatmul.f32.gmra.mxu0 %v165
    %v767 = vpop.f32.mrf.mxu0
    %v768 = vadd.f32 %v559, %v767
    %769 = vmatmul.f32.gmra.mxu0 %v166
    %v770 = vpop.f32.mrf.mxu0
    %v771 = vadd.f32 %v562, %v770
    %772 = vmatmul.f32.gmra.mxu0 %v167
    %v773 = vpop.f32.mrf.mxu0
    %v774 = vadd.f32 %v565, %v773
    %775 = vmatmul.f32.gmra.mxu0 %v168
    %v776 = vpop.f32.mrf.mxu0
    %v777 = vadd.f32 %v568, %v776
    %778 = vmatmul.f32.gmra.mxu0 %v169
    %v779 = vpop.f32.mrf.mxu0
    %v780 = vadd.f32 %v571, %v779
    %781 = vmatmul.f32.gmra.mxu0 %v170
    %v782 = vpop.f32.mrf.mxu0
    %v783 = vadd.f32 %v574, %v782
    %784 = vmatmul.f32.gmra.mxu0 %v171
    %v785 = vpop.f32.mrf.mxu0
    %v786 = vadd.f32 %v577, %v785
    %787 = vmatmul.f32.gmra.mxu0 %v172
    %v788 = vpop.f32.mrf.mxu0
    %v789 = vadd.f32 %v580, %v788
    %790 = vmatmul.f32.gmra.mxu0 %v173
    %v791 = vpop.f32.mrf.mxu0
    %v792 = vadd.f32 %v583, %v791
    %793 = vmatmul.f32.gmra.mxu0 %v174
    %v794 = vpop.f32.mrf.mxu0
    %v795 = vadd.f32 %v586, %v794
    %796 = vmatmul.f32.gmra.mxu0 %v175
    %v797 = vpop.f32.mrf.mxu0
    %v798 = vadd.f32 %v589, %v797
    %799 = vmatmul.f32.gmra.mxu0 %v176
    %v800 = vpop.f32.mrf.mxu0
    %v801 = vadd.f32 %v592, %v800
    %802 = vmatmul.f32.gmra.mxu0 %v177
    %v803 = vpop.f32.mrf.mxu0
    %v804 = vadd.f32 %v595, %v803
    %805 = vmatmul.f32.gmra.mxu0 %v178
    %v806 = vpop.f32.mrf.mxu0
    %v807 = vadd.f32 %v598, %v806
    %808 = vmatmul.f32.gmra.mxu0 %v179
    %v809 = vpop.f32.mrf.mxu0
    %v810 = vadd.f32 %v601, %v809
    %811 = vmatmul.f32.gmra.mxu0 %v180
    %v812 = vpop.f32.mrf.mxu0
    %v813 = vadd.f32 %v604, %v812
    %814 = vmatmul.f32.gmra.mxu0 %v181
    %v815 = vpop.f32.mrf.mxu0
    %v816 = vadd.f32 %v607, %v815
    %817 = vmatmul.f32.gmra.mxu0 %v182
    %v818 = vpop.f32.mrf.mxu0
    %v819 = vadd.f32 %v610, %v818
    %820 = vdwg.mxu0
    %821 = vmatpush.msra.mxu0 %v306
    %822 = vmatpush.msra.mxu0 %v305
    %823 = vmatpush.msra.mxu0 %v304
    %824 = vmatpush.msra.mxu0 %v303
    %825 = vmatpush.msra.mxu0 %v302
    %826 = vmatpush.msra.mxu0 %v301
    %827 = vmatpush.msra.mxu0 %v300
    %828 = vmatpush.msra.mxu0 %v299
    %829 = vmatpush.msra.mxu0 %v298
    %830 = vmatpush.msra.mxu0 %v297
    %831 = vmatpush.msra.mxu0 %v296
    %832 = vmatpush.msra.mxu0 %v295
    %833 = vmatpush.msra.mxu0 %v294
    %834 = vmatpush.msra.mxu0 %v293
    %835 = vmatpush.msra.mxu0 %v292
    %836 = vmatpush.msra.mxu0 %v291
    %837 = vmatmul.f32.gmra.mxu0 %v187
    %v838 = vpop.f32.mrf.mxu0
    %v839 = vadd.f32 %v630, %v838
    %840 = vmatmul.f32.gmra.mxu0 %v188
    %v841 = vpop.f32.mrf.mxu0
    %v842 = vadd.f32 %v633, %v841
    %843 = vmatmul.f32.gmra.mxu0 %v189
    %v844 = vpop.f32.mrf.mxu0
    %v845 = vadd.f32 %v636, %v844
    %846 = vmatmul.f32.gmra.mxu0 %v190
    %v847 = vpop.f32.mrf.mxu0
    %v848 = vadd.f32 %v639, %v847
    %849 = vmatmul.f32.gmra.mxu0 %v191
    %v850 = vpop.f32.mrf.mxu0
    %v851 = vadd.f32 %v642, %v850
    %852 = vmatmul.f32.gmra.mxu0 %v192
    %v853 = vpop.f32.mrf.mxu0
    %v854 = vadd.f32 %v645, %v853
    %855 = vmatmul.f32.gmra.mxu0 %v193
    %v856 = vpop.f32.mrf.mxu0
    %v857 = vadd.f32 %v648, %v856
    %858 = vmatmul.f32.gmra.mxu0 %v194
    %v859 = vpop.f32.mrf.mxu0
    %v860 = vadd.f32 %v651, %v859
    %861 = vmatmul.f32.gmra.mxu0 %v195
    %v862 = vpop.f32.mrf.mxu0
    %v863 = vadd.f32 %v654, %v862
    %864 = vmatmul.f32.gmra.mxu0 %v196
    %v865 = vpop.f32.mrf.mxu0
    %v866 = vadd.f32 %v657, %v865
    %867 = vmatmul.f32.gmra.mxu0 %v197
    %v868 = vpop.f32.mrf.mxu0
    %v869 = vadd.f32 %v660, %v868
    %870 = vmatmul.f32.gmra.mxu0 %v198
    %v871 = vpop.f32.mrf.mxu0
    %v872 = vadd.f32 %v663, %v871
    %873 = vmatmul.f32.gmra.mxu0 %v199
    %v874 = vpop.f32.mrf.mxu0
    %v875 = vadd.f32 %v666, %v874
    %876 = vmatmul.f32.gmra.mxu0 %v200
    %v877 = vpop.f32.mrf.mxu0
    %v878 = vadd.f32 %v669, %v877
    %879 = vmatmul.f32.gmra.mxu0 %v201
    %v880 = vpop.f32.mrf.mxu0
    %v881 = vadd.f32 %v672, %v880
    %882 = vmatmul.f32.gmra.mxu0 %v202
    %v883 = vpop.f32.mrf.mxu0
    %v884 = vadd.f32 %v675, %v883
    %885 = vmatmul.f32.gmra.mxu0 %v203
    %v886 = vpop.f32.mrf.mxu0
    %v887 = vadd.f32 %v678, %v886
    %888 = vmatmul.f32.gmra.mxu0 %v204
    %v889 = vpop.f32.mrf.mxu0
    %v890 = vadd.f32 %v681, %v889
    %891 = vmatmul.f32.gmra.mxu0 %v205
    %v892 = vpop.f32.mrf.mxu0
    %v893 = vadd.f32 %v684, %v892
    %894 = vmatmul.f32.gmra.mxu0 %v206
    %v895 = vpop.f32.mrf.mxu0
    %v896 = vadd.f32 %v687, %v895
    %897 = vmatmul.f32.gmra.mxu0 %v207
    %v898 = vpop.f32.mrf.mxu0
    %v899 = vadd.f32 %v690, %v898
    %900 = vmatmul.f32.gmra.mxu0 %v208
    %v901 = vpop.f32.mrf.mxu0
    %v902 = vadd.f32 %v693, %v901
    %903 = vmatmul.f32.gmra.mxu0 %v209
    %v904 = vpop.f32.mrf.mxu0
    %v905 = vadd.f32 %v696, %v904
    %906 = vmatmul.f32.gmra.mxu0 %v210
    %v907 = vpop.f32.mrf.mxu0
    %v908 = vadd.f32 %v699, %v907
    %909 = vmatmul.f32.gmra.mxu0 %v211
    %v910 = vpop.f32.mrf.mxu0
    %v911 = vadd.f32 %v702, %v910
    %912 = vmatmul.f32.gmra.mxu0 %v212
    %v913 = vpop.f32.mrf.mxu0
    %v914 = vadd.f32 %v705, %v913
    %915 = vmatmul.f32.gmra.mxu0 %v213
    %v916 = vpop.f32.mrf.mxu0
    %v917 = vadd.f32 %v708, %v916
    %918 = vmatmul.f32.gmra.mxu0 %v214
    %v919 = vpop.f32.mrf.mxu0
    %v920 = vadd.f32 %v711, %v919
    %921 = vmatmul.f32.gmra.mxu0 %v215
    %v922 = vpop.f32.mrf.mxu0
    %v923 = vadd.f32 %v714, %v922
    %924 = vmatmul.f32.gmra.mxu0 %v216
    %v925 = vpop.f32.mrf.mxu0
    %v926 = vadd.f32 %v717, %v925
    %927 = vmatmul.f32.gmra.mxu0 %v217
    %v928 = vpop.f32.mrf.mxu0
    %v929 = vadd.f32 %v720, %v928
    %930 = vmatmul.f32.gmra.mxu0 %v218
    %v931 = vpop.f32.mrf.mxu0
    %v932 = vadd.f32 %v723, %v931
    %933 = vmatmul.f32.gmra.mxu0 %v223
    %v934 = vpop.f32.mrf.mxu0
    %v935 = vadd.f32 %v726, %v934
    %936 = vmatmul.f32.gmra.mxu0 %v224
    %v937 = vpop.f32.mrf.mxu0
    %v938 = vadd.f32 %v729, %v937
    %939 = vmatmul.f32.gmra.mxu0 %v225
    %v940 = vpop.f32.mrf.mxu0
    %v941 = vadd.f32 %v732, %v940
    %942 = vmatmul.f32.gmra.mxu0 %v226
    %v943 = vpop.f32.mrf.mxu0
    %v944 = vadd.f32 %v735, %v943
    %945 = vmatmul.f32.gmra.mxu0 %v227
    %v946 = vpop.f32.mrf.mxu0
    %v947 = vadd.f32 %v738, %v946
    %948 = vmatmul.f32.gmra.mxu0 %v228
    %v949 = vpop.f32.mrf.mxu0
    %v950 = vadd.f32 %v741, %v949
    %951 = vmatmul.f32.gmra.mxu0 %v229
    %v952 = vpop.f32.mrf.mxu0
    %v953 = vadd.f32 %v744, %v952
    %954 = vmatmul.f32.gmra.mxu0 %v230
    %v955 = vpop.f32.mrf.mxu0
    %v956 = vadd.f32 %v747, %v955
    %957 = vmatmul.f32.gmra.mxu0 %v231
    %v958 = vpop.f32.mrf.mxu0
    %v959 = vadd.f32 %v750, %v958
    %960 = vmatmul.f32.gmra.mxu0 %v232
    %v961 = vpop.f32.mrf.mxu0
    %v962 = vadd.f32 %v753, %v961
    %963 = vmatmul.f32.gmra.mxu0 %v233
    %v964 = vpop.f32.mrf.mxu0
    %v965 = vadd.f32 %v756, %v964
    %966 = vmatmul.f32.gmra.mxu0 %v234
    %v967 = vpop.f32.mrf.mxu0
    %v968 = vadd.f32 %v759, %v967
    %969 = vmatmul.f32.gmra.mxu0 %v235
    %v970 = vpop.f32.mrf.mxu0
    %v971 = vadd.f32 %v762, %v970
    %972 = vmatmul.f32.gmra.mxu0 %v236
    %v973 = vpop.f32.mrf.mxu0
    %v974 = vadd.f32 %v765, %v973
    %975 = vmatmul.f32.gmra.mxu0 %v237
    %v976 = vpop.f32.mrf.mxu0
    %v977 = vadd.f32 %v768, %v976
    %978 = vmatmul.f32.gmra.mxu0 %v238
    %v979 = vpop.f32.mrf.mxu0
    %v980 = vadd.f32 %v771, %v979
    %981 = vmatmul.f32.gmra.mxu0 %v239
    %v982 = vpop.f32.mrf.mxu0
    %v983 = vadd.f32 %v774, %v982
    %984 = vmatmul.f32.gmra.mxu0 %v240
    %v985 = vpop.f32.mrf.mxu0
    %v986 = vadd.f32 %v777, %v985
    %987 = vmatmul.f32.gmra.mxu0 %v241
    %v988 = vpop.f32.mrf.mxu0
    %v989 = vadd.f32 %v780, %v988
    %990 = vmatmul.f32.gmra.mxu0 %v242
    %v991 = vpop.f32.mrf.mxu0
    %v992 = vadd.f32 %v783, %v991
    %993 = vmatmul.f32.gmra.mxu0 %v243
    %v994 = vpop.f32.mrf.mxu0
    %v995 = vadd.f32 %v786, %v994
    %996 = vmatmul.f32.gmra.mxu0 %v244
    %v997 = vpop.f32.mrf.mxu0
    %v998 = vadd.f32 %v789, %v997
    %999 = vmatmul.f32.gmra.mxu0 %v245
    %v1000 = vpop.f32.mrf.mxu0
    %v1001 = vadd.f32 %v792, %v1000
    %1002 = vmatmul.f32.gmra.mxu0 %v246
    %v1003 = vpop.f32.mrf.mxu0
    %v1004 = vadd.f32 %v795, %v1003
    %1005 = vmatmul.f32.gmra.mxu0 %v247
    %v1006 = vpop.f32.mrf.mxu0
    %v1007 = vadd.f32 %v798, %v1006
    %1008 = vmatmul.f32.gmra.mxu0 %v248
    %v1009 = vpop.f32.mrf.mxu0
    %v1010 = vadd.f32 %v801, %v1009
    %1011 = vmatmul.f32.gmra.mxu0 %v249
    %v1012 = vpop.f32.mrf.mxu0
    %v1013 = vadd.f32 %v804, %v1012
    %1014 = vmatmul.f32.gmra.mxu0 %v250
    %v1015 = vpop.f32.mrf.mxu0
    %v1016 = vadd.f32 %v807, %v1015
    %1017 = vmatmul.f32.gmra.mxu0 %v251
    %v1018 = vpop.f32.mrf.mxu0
    %v1019 = vadd.f32 %v810, %v1018
    %1020 = vmatmul.f32.gmra.mxu0 %v252
    %v1021 = vpop.f32.mrf.mxu0
    %v1022 = vadd.f32 %v813, %v1021
    %1023 = vmatmul.f32.gmra.mxu0 %v253
    %v1024 = vpop.f32.mrf.mxu0
    %v1025 = vadd.f32 %v816, %v1024
    %1026 = vmatmul.f32.gmra.mxu0 %v254
    %v1027 = vpop.f32.mrf.mxu0
    %v1028 = vadd.f32 %v819, %v1027
    %1029 = vdwg.mxu0
    %1030 = vmatpush.msra.mxu0 %v322
    %1031 = vmatpush.msra.mxu0 %v321
    %1032 = vmatpush.msra.mxu0 %v320
    %1033 = vmatpush.msra.mxu0 %v319
    %1034 = vmatpush.msra.mxu0 %v318
    %1035 = vmatpush.msra.mxu0 %v317
    %1036 = vmatpush.msra.mxu0 %v316
    %1037 = vmatpush.msra.mxu0 %v315
    %1038 = vmatpush.msra.mxu0 %v314
    %1039 = vmatpush.msra.mxu0 %v313
    %1040 = vmatpush.msra.mxu0 %v312
    %1041 = vmatpush.msra.mxu0 %v311
    %1042 = vmatpush.msra.mxu0 %v310
    %1043 = vmatpush.msra.mxu0 %v309
    %1044 = vmatpush.msra.mxu0 %v308
    %1045 = vmatpush.msra.mxu0 %v307
    %1046 = vmatmul.f32.gmra.mxu0 %v45
    %v1047 = vpop.f32.mrf.mxu0
    %v1048 = vadd.f32 %v839, %v1047
    %1049 = vmatmul.f32.gmra.mxu0 %v46
    %v1050 = vpop.f32.mrf.mxu0
    %v1051 = vadd.f32 %v842, %v1050
    %1052 = vmatmul.f32.gmra.mxu0 %v47
    %v1053 = vpop.f32.mrf.mxu0
    %v1054 = vadd.f32 %v845, %v1053
    %1055 = vmatmul.f32.gmra.mxu0 %v48
    %v1056 = vpop.f32.mrf.mxu0
    %v1057 = vadd.f32 %v848, %v1056
    %1058 = vmatmul.f32.gmra.mxu0 %v49
    %v1059 = vpop.f32.mrf.mxu0
    %v1060 = vadd.f32 %v851, %v1059
    %1061 = vmatmul.f32.gmra.mxu0 %v50
    %v1062 = vpop.f32.mrf.mxu0
    %v1063 = vadd.f32 %v854, %v1062
    %1064 = vmatmul.f32.gmra.mxu0 %v51
    %v1065 = vpop.f32.mrf.mxu0
    %v1066 = vadd.f32 %v857, %v1065
    %1067 = vmatmul.f32.gmra.mxu0 %v52
    %v1068 = vpop.f32.mrf.mxu0
    %v1069 = vadd.f32 %v860, %v1068
    %1070 = vmatmul.f32.gmra.mxu0 %v53
    %v1071 = vpop.f32.mrf.mxu0
    %v1072 = vadd.f32 %v863, %v1071
    %1073 = vmatmul.f32.gmra.mxu0 %v54
    %v1074 = vpop.f32.mrf.mxu0
    %v1075 = vadd.f32 %v866, %v1074
    %1076 = vmatmul.f32.gmra.mxu0 %v55
    %v1077 = vpop.f32.mrf.mxu0
    %v1078 = vadd.f32 %v869, %v1077
    %1079 = vmatmul.f32.gmra.mxu0 %v56
    %v1080 = vpop.f32.mrf.mxu0
    %v1081 = vadd.f32 %v872, %v1080
    %1082 = vmatmul.f32.gmra.mxu0 %v57
    %v1083 = vpop.f32.mrf.mxu0
    %v1084 = vadd.f32 %v875, %v1083
    %1085 = vmatmul.f32.gmra.mxu0 %v58
    %v1086 = vpop.f32.mrf.mxu0
    %v1087 = vadd.f32 %v878, %v1086
    %1088 = vmatmul.f32.gmra.mxu0 %v59
    %v1089 = vpop.f32.mrf.mxu0
    %v1090 = vadd.f32 %v881, %v1089
    %1091 = vmatmul.f32.gmra.mxu0 %v60
    %v1092 = vpop.f32.mrf.mxu0
    %v1093 = vadd.f32 %v884, %v1092
    %1094 = vmatmul.f32.gmra.mxu0 %v61
    %v1095 = vpop.f32.mrf.mxu0
    %v1096 = vadd.f32 %v887, %v1095
    %1097 = vmatmul.f32.gmra.mxu0 %v62
    %v1098 = vpop.f32.mrf.mxu0
    %v1099 = vadd.f32 %v890, %v1098
    %1100 = vmatmul.f32.gmra.mxu0 %v63
    %v1101 = vpop.f32.mrf.mxu0
    %v1102 = vadd.f32 %v893, %v1101
    %1103 = vmatmul.f32.gmra.mxu0 %v64
    %v1104 = vpop.f32.mrf.mxu0
    %v1105 = vadd.f32 %v896, %v1104
    %1106 = vmatmul.f32.gmra.mxu0 %v65
    %v1107 = vpop.f32.mrf.mxu0
    %v1108 = vadd.f32 %v899, %v1107
    %1109 = vmatmul.f32.gmra.mxu0 %v66
    %v1110 = vpop.f32.mrf.mxu0
    %v1111 = vadd.f32 %v902, %v1110
    %1112 = vmatmul.f32.gmra.mxu0 %v67
    %v1113 = vpop.f32.mrf.mxu0
    %v1114 = vadd.f32 %v905, %v1113
    %1115 = vmatmul.f32.gmra.mxu0 %v68
    %v1116 = vpop.f32.mrf.mxu0
    %v1117 = vadd.f32 %v908, %v1116
    %1118 = vmatmul.f32.gmra.mxu0 %v69
    %v1119 = vpop.f32.mrf.mxu0
    %v1120 = vadd.f32 %v911, %v1119
    %1121 = vmatmul.f32.gmra.mxu0 %v70
    %v1122 = vpop.f32.mrf.mxu0
    %v1123 = vadd.f32 %v914, %v1122
    %1124 = vmatmul.f32.gmra.mxu0 %v71
    %v1125 = vpop.f32.mrf.mxu0
    %v1126 = vadd.f32 %v917, %v1125
    %1127 = vmatmul.f32.gmra.mxu0 %v72
    %v1128 = vpop.f32.mrf.mxu0
    %v1129 = vadd.f32 %v920, %v1128
    %1130 = vmatmul.f32.gmra.mxu0 %v73
    %v1131 = vpop.f32.mrf.mxu0
    %v1132 = vadd.f32 %v923, %v1131
    %1133 = vmatmul.f32.gmra.mxu0 %v74
    %v1134 = vpop.f32.mrf.mxu0
    %v1135 = vadd.f32 %v926, %v1134
    %1136 = vmatmul.f32.gmra.mxu0 %v75
    %v1137 = vpop.f32.mrf.mxu0
    %v1138 = vadd.f32 %v929, %v1137
    %1139 = vmatmul.f32.gmra.mxu0 %v76
    %v1140 = vpop.f32.mrf.mxu0
    %v1141 = vadd.f32 %v932, %v1140
    %1142 = vmatmul.f32.gmra.mxu0 %v81
    %v1143 = vpop.f32.mrf.mxu0
    %v1144 = vadd.f32 %v935, %v1143
    %1145 = vmatmul.f32.gmra.mxu0 %v82
    %v1146 = vpop.f32.mrf.mxu0
    %v1147 = vadd.f32 %v938, %v1146
    %1148 = vmatmul.f32.gmra.mxu0 %v83
    %v1149 = vpop.f32.mrf.mxu0
    %v1150 = vadd.f32 %v941, %v1149
    %1151 = vmatmul.f32.gmra.mxu0 %v84
    %v1152 = vpop.f32.mrf.mxu0
    %v1153 = vadd.f32 %v944, %v1152
    %1154 = vmatmul.f32.gmra.mxu0 %v85
    %v1155 = vpop.f32.mrf.mxu0
    %v1156 = vadd.f32 %v947, %v1155
    %1157 = vmatmul.f32.gmra.mxu0 %v86
    %v1158 = vpop.f32.mrf.mxu0
    %v1159 = vadd.f32 %v950, %v1158
    %1160 = vmatmul.f32.gmra.mxu0 %v87
    %v1161 = vpop.f32.mrf.mxu0
    %v1162 = vadd.f32 %v953, %v1161
    %1163 = vmatmul.f32.gmra.mxu0 %v88
    %v1164 = vpop.f32.mrf.mxu0
    %v1165 = vadd.f32 %v956, %v1164
    %1166 = vmatmul.f32.gmra.mxu0 %v89
    %v1167 = vpop.f32.mrf.mxu0
    %v1168 = vadd.f32 %v959, %v1167
    %1169 = vmatmul.f32.gmra.mxu0 %v90
    %v1170 = vpop.f32.mrf.mxu0
    %v1171 = vadd.f32 %v962, %v1170
    %1172 = vmatmul.f32.gmra.mxu0 %v91
    %v1173 = vpop.f32.mrf.mxu0
    %v1174 = vadd.f32 %v965, %v1173
    %1175 = vmatmul.f32.gmra.mxu0 %v92
    %v1176 = vpop.f32.mrf.mxu0
    %v1177 = vadd.f32 %v968, %v1176
    %1178 = vmatmul.f32.gmra.mxu0 %v93
    %v1179 = vpop.f32.mrf.mxu0
    %v1180 = vadd.f32 %v971, %v1179
    %1181 = vmatmul.f32.gmra.mxu0 %v94
    %v1182 = vpop.f32.mrf.mxu0
    %v1183 = vadd.f32 %v974, %v1182
    %1184 = vmatmul.f32.gmra.mxu0 %v95
    %v1185 = vpop.f32.mrf.mxu0
    %v1186 = vadd.f32 %v977, %v1185
    %1187 = vmatmul.f32.gmra.mxu0 %v96
    %v1188 = vpop.f32.mrf.mxu0
    %v1189 = vadd.f32 %v980, %v1188
    %1190 = vmatmul.f32.gmra.mxu0 %v97
    %v1191 = vpop.f32.mrf.mxu0
    %v1192 = vadd.f32 %v983, %v1191
    %1193 = vmatmul.f32.gmra.mxu0 %v98
    %v1194 = vpop.f32.mrf.mxu0
    %v1195 = vadd.f32 %v986, %v1194
    %1196 = vmatmul.f32.gmra.mxu0 %v99
    %v1197 = vpop.f32.mrf.mxu0
    %v1198 = vadd.f32 %v989, %v1197
    %1199 = vmatmul.f32.gmra.mxu0 %v100
    %v1200 = vpop.f32.mrf.mxu0
    %v1201 = vadd.f32 %v992, %v1200
    %1202 = vmatmul.f32.gmra.mxu0 %v101
    %v1203 = vpop.f32.mrf.mxu0
    %v1204 = vadd.f32 %v995, %v1203
    %1205 = vmatmul.f32.gmra.mxu0 %v102
    %v1206 = vpop.f32.mrf.mxu0
    %v1207 = vadd.f32 %v998, %v1206
    %1208 = vmatmul.f32.gmra.mxu0 %v103
    %v1209 = vpop.f32.mrf.mxu0
    %v1210 = vadd.f32 %v1001, %v1209
    %1211 = vmatmul.f32.gmra.mxu0 %v104
    %v1212 = vpop.f32.mrf.mxu0
    %v1213 = vadd.f32 %v1004, %v1212
    %1214 = vmatmul.f32.gmra.mxu0 %v105
    %v1215 = vpop.f32.mrf.mxu0
    %v1216 = vadd.f32 %v1007, %v1215
    %1217 = vmatmul.f32.gmra.mxu0 %v106
    %v1218 = vpop.f32.mrf.mxu0
    %v1219 = vadd.f32 %v1010, %v1218
    %1220 = vmatmul.f32.gmra.mxu0 %v107
    %v1221 = vpop.f32.mrf.mxu0
    %v1222 = vadd.f32 %v1013, %v1221
    %1223 = vmatmul.f32.gmra.mxu0 %v108
    %v1224 = vpop.f32.mrf.mxu0
    %v1225 = vadd.f32 %v1016, %v1224
    %1226 = vmatmul.f32.gmra.mxu0 %v109
    %v1227 = vpop.f32.mrf.mxu0
    %v1228 = vadd.f32 %v1019, %v1227
    %1229 = vmatmul.f32.gmra.mxu0 %v110
    %v1230 = vpop.f32.mrf.mxu0
    %v1231 = vadd.f32 %v1022, %v1230
    %1232 = vmatmul.f32.gmra.mxu0 %v111
    %v1233 = vpop.f32.mrf.mxu0
    %v1234 = vadd.f32 %v1025, %v1233
    %1235 = vmatmul.f32.gmra.mxu0 %v112
    %v1236 = vpop.f32.mrf.mxu0
    %v1237 = vadd.f32 %v1028, %v1236
    %1238 = vdwg.mxu0
    %1239 = vmatpush.msra.mxu0 %v338
    %1240 = vmatpush.msra.mxu0 %v337
    %1241 = vmatpush.msra.mxu0 %v336
    %1242 = vmatpush.msra.mxu0 %v335
    %1243 = vmatpush.msra.mxu0 %v334
    %1244 = vmatpush.msra.mxu0 %v333
    %1245 = vmatpush.msra.mxu0 %v332
    %1246 = vmatpush.msra.mxu0 %v331
    %1247 = vmatpush.msra.mxu0 %v330
    %1248 = vmatpush.msra.mxu0 %v329
    %1249 = vmatpush.msra.mxu0 %v328
    %1250 = vmatpush.msra.mxu0 %v327
    %1251 = vmatpush.msra.mxu0 %v326
    %1252 = vmatpush.msra.mxu0 %v325
    %1253 = vmatpush.msra.mxu0 %v324
    %1254 = vmatpush.msra.mxu0 %v323
    %1255 = vmatmul.f32.gmra.mxu0 %v117
    %v1256 = vpop.f32.mrf.mxu0
    %v1257 = vadd.f32 %v1048, %v1256
    %1258 = vmatmul.f32.gmra.mxu0 %v118
    %v1259 = vpop.f32.mrf.mxu0
    %v1260 = vadd.f32 %v1051, %v1259
    %1261 = vmatmul.f32.gmra.mxu0 %v119
    %v1262 = vpop.f32.mrf.mxu0
    %v1263 = vadd.f32 %v1054, %v1262
    %1264 = vmatmul.f32.gmra.mxu0 %v120
    %v1265 = vpop.f32.mrf.mxu0
    %v1266 = vadd.f32 %v1057, %v1265
    %1267 = vmatmul.f32.gmra.mxu0 %v121
    %v1268 = vpop.f32.mrf.mxu0
    %v1269 = vadd.f32 %v1060, %v1268
    %1270 = vmatmul.f32.gmra.mxu0 %v122
    %v1271 = vpop.f32.mrf.mxu0
    %v1272 = vadd.f32 %v1063, %v1271
    %1273 = vmatmul.f32.gmra.mxu0 %v123
    %v1274 = vpop.f32.mrf.mxu0
    %v1275 = vadd.f32 %v1066, %v1274
    %1276 = vmatmul.f32.gmra.mxu0 %v124
    %v1277 = vpop.f32.mrf.mxu0
    %v1278 = vadd.f32 %v1069, %v1277
    %1279 = vmatmul.f32.gmra.mxu0 %v125
    %v1280 = vpop.f32.mrf.mxu0
    %v1281 = vadd.f32 %v1072, %v1280
    %1282 = vmatmul.f32.gmra.mxu0 %v126
    %v1283 = vpop.f32.mrf.mxu0
    %v1284 = vadd.f32 %v1075, %v1283
    %1285 = vmatmul.f32.gmra.mxu0 %v127
    %v1286 = vpop.f32.mrf.mxu0
    %v1287 = vadd.f32 %v1078, %v1286
    %1288 = vmatmul.f32.gmra.mxu0 %v128
    %v1289 = vpop.f32.mrf.mxu0
    %v1290 = vadd.f32 %v1081, %v1289
    %1291 = vmatmul.f32.gmra.mxu0 %v129
    %v1292 = vpop.f32.mrf.mxu0
    %v1293 = vadd.f32 %v1084, %v1292
    %1294 = vmatmul.f32.gmra.mxu0 %v130
    %v1295 = vpop.f32.mrf.mxu0
    %v1296 = vadd.f32 %v1087, %v1295
    %1297 = vmatmul.f32.gmra.mxu0 %v131
    %v1298 = vpop.f32.mrf.mxu0
    %v1299 = vadd.f32 %v1090, %v1298
    %1300 = vmatmul.f32.gmra.mxu0 %v132
    %v1301 = vpop.f32.mrf.mxu0
    %v1302 = vadd.f32 %v1093, %v1301
    %1303 = vmatmul.f32.gmra.mxu0 %v133
    %v1304 = vpop.f32.mrf.mxu0
    %v1305 = vadd.f32 %v1096, %v1304
    %1306 = vmatmul.f32.gmra.mxu0 %v134
    %v1307 = vpop.f32.mrf.mxu0
    %v1308 = vadd.f32 %v1099, %v1307
    %1309 = vmatmul.f32.gmra.mxu0 %v135
    %v1310 = vpop.f32.mrf.mxu0
    %v1311 = vadd.f32 %v1102, %v1310
    %1312 = vmatmul.f32.gmra.mxu0 %v136
    %v1313 = vpop.f32.mrf.mxu0
    %v1314 = vadd.f32 %v1105, %v1313
    %1315 = vmatmul.f32.gmra.mxu0 %v137
    %v1316 = vpop.f32.mrf.mxu0
    %v1317 = vadd.f32 %v1108, %v1316
    %1318 = vmatmul.f32.gmra.mxu0 %v138
    %v1319 = vpop.f32.mrf.mxu0
    %v1320 = vadd.f32 %v1111, %v1319
    %1321 = vmatmul.f32.gmra.mxu0 %v139
    %v1322 = vpop.f32.mrf.mxu0
    %v1323 = vadd.f32 %v1114, %v1322
    %1324 = vmatmul.f32.gmra.mxu0 %v140
    %v1325 = vpop.f32.mrf.mxu0
    %v1326 = vadd.f32 %v1117, %v1325
    %1327 = vmatmul.f32.gmra.mxu0 %v141
    %v1328 = vpop.f32.mrf.mxu0
    %v1329 = vadd.f32 %v1120, %v1328
    %1330 = vmatmul.f32.gmra.mxu0 %v142
    %v1331 = vpop.f32.mrf.mxu0
    %v1332 = vadd.f32 %v1123, %v1331
    %1333 = vmatmul.f32.gmra.mxu0 %v143
    %v1334 = vpop.f32.mrf.mxu0
    %v1335 = vadd.f32 %v1126, %v1334
    %1336 = vmatmul.f32.gmra.mxu0 %v144
    %v1337 = vpop.f32.mrf.mxu0
    %v1338 = vadd.f32 %v1129, %v1337
    %1339 = vmatmul.f32.gmra.mxu0 %v145
    %v1340 = vpop.f32.mrf.mxu0
    %v1341 = vadd.f32 %v1132, %v1340
    %1342 = vmatmul.f32.gmra.mxu0 %v146
    %v1343 = vpop.f32.mrf.mxu0
    %v1344 = vadd.f32 %v1135, %v1343
    %1345 = vmatmul.f32.gmra.mxu0 %v147
    %v1346 = vpop.f32.mrf.mxu0
    %v1347 = vadd.f32 %v1138, %v1346
    %1348 = vmatmul.f32.gmra.mxu0 %v148
    %v1349 = vpop.f32.mrf.mxu0
    %v1350 = vadd.f32 %v1141, %v1349
    %1351 = vmatmul.f32.gmra.mxu0 %v153
    %v1352 = vpop.f32.mrf.mxu0
    %v1353 = vadd.f32 %v1144, %v1352
    %1354 = vmatmul.f32.gmra.mxu0 %v154
    %v1355 = vpop.f32.mrf.mxu0
    %v1356 = vadd.f32 %v1147, %v1355
    %1357 = vmatmul.f32.gmra.mxu0 %v155
    %v1358 = vpop.f32.mrf.mxu0
    %v1359 = vadd.f32 %v1150, %v1358
    %1360 = vmatmul.f32.gmra.mxu0 %v156
    %v1361 = vpop.f32.mrf.mxu0
    %v1362 = vadd.f32 %v1153, %v1361
    %1363 = vmatmul.f32.gmra.mxu0 %v157
    %v1364 = vpop.f32.mrf.mxu0
    %v1365 = vadd.f32 %v1156, %v1364
    %1366 = vmatmul.f32.gmra.mxu0 %v158
    %v1367 = vpop.f32.mrf.mxu0
    %v1368 = vadd.f32 %v1159, %v1367
    %1369 = vmatmul.f32.gmra.mxu0 %v159
    %v1370 = vpop.f32.mrf.mxu0
    %v1371 = vadd.f32 %v1162, %v1370
    %1372 = vmatmul.f32.gmra.mxu0 %v160
    %v1373 = vpop.f32.mrf.mxu0
    %v1374 = vadd.f32 %v1165, %v1373
    %1375 = vmatmul.f32.gmra.mxu0 %v161
    %v1376 = vpop.f32.mrf.mxu0
    %v1377 = vadd.f32 %v1168, %v1376
    %1378 = vmatmul.f32.gmra.mxu0 %v162
    %v1379 = vpop.f32.mrf.mxu0
    %v1380 = vadd.f32 %v1171, %v1379
    %1381 = vmatmul.f32.gmra.mxu0 %v163
    %v1382 = vpop.f32.mrf.mxu0
    %v1383 = vadd.f32 %v1174, %v1382
    %1384 = vmatmul.f32.gmra.mxu0 %v164
    %v1385 = vpop.f32.mrf.mxu0
    %v1386 = vadd.f32 %v1177, %v1385
    %1387 = vmatmul.f32.gmra.mxu0 %v165
    %v1388 = vpop.f32.mrf.mxu0
    %v1389 = vadd.f32 %v1180, %v1388
    %1390 = vmatmul.f32.gmra.mxu0 %v166
    %v1391 = vpop.f32.mrf.mxu0
    %v1392 = vadd.f32 %v1183, %v1391
    %1393 = vmatmul.f32.gmra.mxu0 %v167
    %v1394 = vpop.f32.mrf.mxu0
    %v1395 = vadd.f32 %v1186, %v1394
    %1396 = vmatmul.f32.gmra.mxu0 %v168
    %v1397 = vpop.f32.mrf.mxu0
    %v1398 = vadd.f32 %v1189, %v1397
    %1399 = vmatmul.f32.gmra.mxu0 %v169
    %v1400 = vpop.f32.mrf.mxu0
    %v1401 = vadd.f32 %v1192, %v1400
    %1402 = vmatmul.f32.gmra.mxu0 %v170
    %v1403 = vpop.f32.mrf.mxu0
    %v1404 = vadd.f32 %v1195, %v1403
    %1405 = vmatmul.f32.gmra.mxu0 %v171
    %v1406 = vpop.f32.mrf.mxu0
    %v1407 = vadd.f32 %v1198, %v1406
    %1408 = vmatmul.f32.gmra.mxu0 %v172
    %v1409 = vpop.f32.mrf.mxu0
    %v1410 = vadd.f32 %v1201, %v1409
    %1411 = vmatmul.f32.gmra.mxu0 %v173
    %v1412 = vpop.f32.mrf.mxu0
    %v1413 = vadd.f32 %v1204, %v1412
    %1414 = vmatmul.f32.gmra.mxu0 %v174
    %v1415 = vpop.f32.mrf.mxu0
    %v1416 = vadd.f32 %v1207, %v1415
    %1417 = vmatmul.f32.gmra.mxu0 %v175
    %v1418 = vpop.f32.mrf.mxu0
    %v1419 = vadd.f32 %v1210, %v1418
    %1420 = vmatmul.f32.gmra.mxu0 %v176
    %v1421 = vpop.f32.mrf.mxu0
    %v1422 = vadd.f32 %v1213, %v1421
    %1423 = vmatmul.f32.gmra.mxu0 %v177
    %v1424 = vpop.f32.mrf.mxu0
    %v1425 = vadd.f32 %v1216, %v1424
    %1426 = vmatmul.f32.gmra.mxu0 %v178
    %v1427 = vpop.f32.mrf.mxu0
    %v1428 = vadd.f32 %v1219, %v1427
    %1429 = vmatmul.f32.gmra.mxu0 %v179
    %v1430 = vpop.f32.mrf.mxu0
    %v1431 = vadd.f32 %v1222, %v1430
    %1432 = vmatmul.f32.gmra.mxu0 %v180
    %v1433 = vpop.f32.mrf.mxu0
    %v1434 = vadd.f32 %v1225, %v1433
    %1435 = vmatmul.f32.gmra.mxu0 %v181
    %v1436 = vpop.f32.mrf.mxu0
    %v1437 = vadd.f32 %v1228, %v1436
    %1438 = vmatmul.f32.gmra.mxu0 %v182
    %v1439 = vpop.f32.mrf.mxu0
    %v1440 = vadd.f32 %v1231, %v1439
    %1441 = vmatmul.f32.gmra.mxu0 %v183
    %v1442 = vpop.f32.mrf.mxu0
    %v1443 = vadd.f32 %v1234, %v1442
    %1444 = vmatmul.f32.gmra.mxu0 %v184
    %v1445 = vpop.f32.mrf.mxu0
    %v1446 = vadd.f32 %v1237, %v1445
    %1447 = vdwg.mxu0
    %1448 = vmatpush.msra.mxu0 %v354
    %1449 = vmatpush.msra.mxu0 %v353
    %1450 = vmatpush.msra.mxu0 %v352
    %1451 = vmatpush.msra.mxu0 %v351
    %1452 = vmatpush.msra.mxu0 %v350
    %1453 = vmatpush.msra.mxu0 %v349
    %1454 = vmatpush.msra.mxu0 %v348
    %1455 = vmatpush.msra.mxu0 %v347
    %1456 = vmatpush.msra.mxu0 %v346
    %1457 = vmatpush.msra.mxu0 %v345
    %1458 = vmatpush.msra.mxu0 %v344
    %1459 = vmatpush.msra.mxu0 %v343
    %1460 = vmatpush.msra.mxu0 %v342
    %1461 = vmatpush.msra.mxu0 %v341
    %1462 = vmatpush.msra.mxu0 %v340
    %1463 = vmatpush.msra.mxu0 %v339
    %1464 = vmatmul.f32.gmra.mxu0 %v189
    %v1465 = vpop.f32.mrf.mxu0
    %v1466 = vadd.f32 %v1257, %v1465
    %1467 = vmatmul.f32.gmra.mxu0 %v190
    %v1468 = vpop.f32.mrf.mxu0
    %v1469 = vadd.f32 %v1260, %v1468
    %1470 = vmatmul.f32.gmra.mxu0 %v191
    %v1471 = vpop.f32.mrf.mxu0
    %v1472 = vadd.f32 %v1263, %v1471
    %1473 = vmatmul.f32.gmra.mxu0 %v192
    %v1474 = vpop.f32.mrf.mxu0
    %v1475 = vadd.f32 %v1266, %v1474
    %1476 = vmatmul.f32.gmra.mxu0 %v193
    %v1477 = vpop.f32.mrf.mxu0
    %v1478 = vadd.f32 %v1269, %v1477
    %1479 = vmatmul.f32.gmra.mxu0 %v194
    %v1480 = vpop.f32.mrf.mxu0
    %v1481 = vadd.f32 %v1272, %v1480
    %1482 = vmatmul.f32.gmra.mxu0 %v195
    %v1483 = vpop.f32.mrf.mxu0
    %v1484 = vadd.f32 %v1275, %v1483
    %1485 = vmatmul.f32.gmra.mxu0 %v196
    %v1486 = vpop.f32.mrf.mxu0
    %v1487 = vadd.f32 %v1278, %v1486
    %1488 = vmatmul.f32.gmra.mxu0 %v197
    %v1489 = vpop.f32.mrf.mxu0
    %v1490 = vadd.f32 %v1281, %v1489
    %1491 = vmatmul.f32.gmra.mxu0 %v198
    %v1492 = vpop.f32.mrf.mxu0
    %v1493 = vadd.f32 %v1284, %v1492
    %1494 = vmatmul.f32.gmra.mxu0 %v199
    %v1495 = vpop.f32.mrf.mxu0
    %v1496 = vadd.f32 %v1287, %v1495
    %1497 = vmatmul.f32.gmra.mxu0 %v200
    %v1498 = vpop.f32.mrf.mxu0
    %v1499 = vadd.f32 %v1290, %v1498
    %1500 = vmatmul.f32.gmra.mxu0 %v201
    %v1501 = vpop.f32.mrf.mxu0
    %v1502 = vadd.f32 %v1293, %v1501
    %1503 = vmatmul.f32.gmra.mxu0 %v202
    %v1504 = vpop.f32.mrf.mxu0
    %v1505 = vadd.f32 %v1296, %v1504
    %1506 = vmatmul.f32.gmra.mxu0 %v203
    %v1507 = vpop.f32.mrf.mxu0
    %v1508 = vadd.f32 %v1299, %v1507
    %1509 = vmatmul.f32.gmra.mxu0 %v204
    %v1510 = vpop.f32.mrf.mxu0
    %v1511 = vadd.f32 %v1302, %v1510
    %1512 = vmatmul.f32.gmra.mxu0 %v205
    %v1513 = vpop.f32.mrf.mxu0
    %v1514 = vadd.f32 %v1305, %v1513
    %1515 = vmatmul.f32.gmra.mxu0 %v206
    %v1516 = vpop.f32.mrf.mxu0
    %v1517 = vadd.f32 %v1308, %v1516
    %1518 = vmatmul.f32.gmra.mxu0 %v207
    %v1519 = vpop.f32.mrf.mxu0
    %v1520 = vadd.f32 %v1311, %v1519
    %1521 = vmatmul.f32.gmra.mxu0 %v208
    %v1522 = vpop.f32.mrf.mxu0
    %v1523 = vadd.f32 %v1314, %v1522
    %1524 = vmatmul.f32.gmra.mxu0 %v209
    %v1525 = vpop.f32.mrf.mxu0
    %v1526 = vadd.f32 %v1317, %v1525
    %1527 = vmatmul.f32.gmra.mxu0 %v210
    %v1528 = vpop.f32.mrf.mxu0
    %v1529 = vadd.f32 %v1320, %v1528
    %1530 = vmatmul.f32.gmra.mxu0 %v211
    %v1531 = vpop.f32.mrf.mxu0
    %v1532 = vadd.f32 %v1323, %v1531
    %1533 = vmatmul.f32.gmra.mxu0 %v212
    %v1534 = vpop.f32.mrf.mxu0
    %v1535 = vadd.f32 %v1326, %v1534
    %1536 = vmatmul.f32.gmra.mxu0 %v213
    %v1537 = vpop.f32.mrf.mxu0
    %v1538 = vadd.f32 %v1329, %v1537
    %1539 = vmatmul.f32.gmra.mxu0 %v214
    %v1540 = vpop.f32.mrf.mxu0
    %v1541 = vadd.f32 %v1332, %v1540
    %1542 = vmatmul.f32.gmra.mxu0 %v215
    %v1543 = vpop.f32.mrf.mxu0
    %v1544 = vadd.f32 %v1335, %v1543
    %1545 = vmatmul.f32.gmra.mxu0 %v216
    %v1546 = vpop.f32.mrf.mxu0
    %v1547 = vadd.f32 %v1338, %v1546
    %1548 = vmatmul.f32.gmra.mxu0 %v217
    %v1549 = vpop.f32.mrf.mxu0
    %v1550 = vadd.f32 %v1341, %v1549
    %1551 = vmatmul.f32.gmra.mxu0 %v218
    %v1552 = vpop.f32.mrf.mxu0
    %v1553 = vadd.f32 %v1344, %v1552
    %1554 = vmatmul.f32.gmra.mxu0 %v219
    %v1555 = vpop.f32.mrf.mxu0
    %v1556 = vadd.f32 %v1347, %v1555
    %1557 = vmatmul.f32.gmra.mxu0 %v220
    %v1558 = vpop.f32.mrf.mxu0
    %v1559 = vadd.f32 %v1350, %v1558
    %1560 = vmatmul.f32.gmra.mxu0 %v225
    %v1561 = vpop.f32.mrf.mxu0
    %v1562 = vadd.f32 %v1353, %v1561
    %1563 = vmatmul.f32.gmra.mxu0 %v226
    %v1564 = vpop.f32.mrf.mxu0
    %v1565 = vadd.f32 %v1356, %v1564
    %1566 = vmatmul.f32.gmra.mxu0 %v227
    %v1567 = vpop.f32.mrf.mxu0
    %v1568 = vadd.f32 %v1359, %v1567
    %1569 = vmatmul.f32.gmra.mxu0 %v228
    %v1570 = vpop.f32.mrf.mxu0
    %v1571 = vadd.f32 %v1362, %v1570
    %1572 = vmatmul.f32.gmra.mxu0 %v229
    %v1573 = vpop.f32.mrf.mxu0
    %v1574 = vadd.f32 %v1365, %v1573
    %1575 = vmatmul.f32.gmra.mxu0 %v230
    %v1576 = vpop.f32.mrf.mxu0
    %v1577 = vadd.f32 %v1368, %v1576
    %1578 = vmatmul.f32.gmra.mxu0 %v231
    %v1579 = vpop.f32.mrf.mxu0
    %v1580 = vadd.f32 %v1371, %v1579
    %1581 = vmatmul.f32.gmra.mxu0 %v232
    %v1582 = vpop.f32.mrf.mxu0
    %v1583 = vadd.f32 %v1374, %v1582
    %1584 = vmatmul.f32.gmra.mxu0 %v233
    %v1585 = vpop.f32.mrf.mxu0
    %v1586 = vadd.f32 %v1377, %v1585
    %1587 = vmatmul.f32.gmra.mxu0 %v234
    %v1588 = vpop.f32.mrf.mxu0
    %v1589 = vadd.f32 %v1380, %v1588
    %1590 = vmatmul.f32.gmra.mxu0 %v235
    %v1591 = vpop.f32.mrf.mxu0
    %v1592 = vadd.f32 %v1383, %v1591
    %1593 = vmatmul.f32.gmra.mxu0 %v236
    %v1594 = vpop.f32.mrf.mxu0
    %v1595 = vadd.f32 %v1386, %v1594
    %1596 = vmatmul.f32.gmra.mxu0 %v237
    %v1597 = vpop.f32.mrf.mxu0
    %v1598 = vadd.f32 %v1389, %v1597
    %1599 = vmatmul.f32.gmra.mxu0 %v238
    %v1600 = vpop.f32.mrf.mxu0
    %v1601 = vadd.f32 %v1392, %v1600
    %1602 = vmatmul.f32.gmra.mxu0 %v239
    %v1603 = vpop.f32.mrf.mxu0
    %v1604 = vadd.f32 %v1395, %v1603
    %1605 = vmatmul.f32.gmra.mxu0 %v240
    %v1606 = vpop.f32.mrf.mxu0
    %v1607 = vadd.f32 %v1398, %v1606
    %1608 = vmatmul.f32.gmra.mxu0 %v241
    %v1609 = vpop.f32.mrf.mxu0
    %v1610 = vadd.f32 %v1401, %v1609
    %1611 = vmatmul.f32.gmra.mxu0 %v242
    %v1612 = vpop.f32.mrf.mxu0
    %v1613 = vadd.f32 %v1404, %v1612
    %1614 = vmatmul.f32.gmra.mxu0 %v243
    %v1615 = vpop.f32.mrf.mxu0
    %v1616 = vadd.f32 %v1407, %v1615
    %1617 = vmatmul.f32.gmra.mxu0 %v244
    %v1618 = vpop.f32.mrf.mxu0
    %v1619 = vadd.f32 %v1410, %v1618
    %1620 = vmatmul.f32.gmra.mxu0 %v245
    %v1621 = vpop.f32.mrf.mxu0
    %v1622 = vadd.f32 %v1413, %v1621
    %1623 = vmatmul.f32.gmra.mxu0 %v246
    %v1624 = vpop.f32.mrf.mxu0
    %v1625 = vadd.f32 %v1416, %v1624
    %1626 = vmatmul.f32.gmra.mxu0 %v247
    %v1627 = vpop.f32.mrf.mxu0
    %v1628 = vadd.f32 %v1419, %v1627
    %1629 = vmatmul.f32.gmra.mxu0 %v248
    %v1630 = vpop.f32.mrf.mxu0
    %v1631 = vadd.f32 %v1422, %v1630
    %1632 = vmatmul.f32.gmra.mxu0 %v249
    %v1633 = vpop.f32.mrf.mxu0
    %v1634 = vadd.f32 %v1425, %v1633
    %1635 = vmatmul.f32.gmra.mxu0 %v250
    %v1636 = vpop.f32.mrf.mxu0
    %v1637 = vadd.f32 %v1428, %v1636
    %1638 = vmatmul.f32.gmra.mxu0 %v251
    %v1639 = vpop.f32.mrf.mxu0
    %v1640 = vadd.f32 %v1431, %v1639
    %1641 = vmatmul.f32.gmra.mxu0 %v252
    %v1642 = vpop.f32.mrf.mxu0
    %v1643 = vadd.f32 %v1434, %v1642
    %1644 = vmatmul.f32.gmra.mxu0 %v253
    %v1645 = vpop.f32.mrf.mxu0
    %v1646 = vadd.f32 %v1437, %v1645
    %1647 = vmatmul.f32.gmra.mxu0 %v254
    %v1648 = vpop.f32.mrf.mxu0
    %v1649 = vadd.f32 %v1440, %v1648
    %1650 = vmatmul.f32.gmra.mxu0 %v255
    %v1651 = vpop.f32.mrf.mxu0
    %v1652 = vadd.f32 %v1443, %v1651
    %1653 = vmatmul.f32.gmra.mxu0 %v256
    %v1654 = vpop.f32.mrf.mxu0
    %v1655 = vadd.f32 %v1446, %v1654
    %1656 = vdwg.mxu0
    %1657 = vmatpush.msra.mxu0 %v370
    %1658 = vmatpush.msra.mxu0 %v369
    %1659 = vmatpush.msra.mxu0 %v368
    %1660 = vmatpush.msra.mxu0 %v367
    %1661 = vmatpush.msra.mxu0 %v366
    %1662 = vmatpush.msra.mxu0 %v365
    %1663 = vmatpush.msra.mxu0 %v364
    %1664 = vmatpush.msra.mxu0 %v363
    %1665 = vmatpush.msra.mxu0 %v362
    %1666 = vmatpush.msra.mxu0 %v361
    %1667 = vmatpush.msra.mxu0 %v360
    %1668 = vmatpush.msra.mxu0 %v359
    %1669 = vmatpush.msra.mxu0 %v358
    %1670 = vmatpush.msra.mxu0 %v357
    %1671 = vmatpush.msra.mxu0 %v356
    %1672 = vmatpush.msra.mxu0 %v355
    %1673 = vmatmul.f32.gmra.mxu0 %v47
    %v1674 = vpop.f32.mrf.mxu0
    %v1675 = vadd.f32 %v1466, %v1674
    %1676 = vmatmul.f32.gmra.mxu0 %v48
    %v1677 = vpop.f32.mrf.mxu0
    %v1678 = vadd.f32 %v1469, %v1677
    %1679 = vmatmul.f32.gmra.mxu0 %v49
    %v1680 = vpop.f32.mrf.mxu0
    %v1681 = vadd.f32 %v1472, %v1680
    %1682 = vmatmul.f32.gmra.mxu0 %v50
    %v1683 = vpop.f32.mrf.mxu0
    %v1684 = vadd.f32 %v1475, %v1683
    %1685 = vmatmul.f32.gmra.mxu0 %v51
    %v1686 = vpop.f32.mrf.mxu0
    %v1687 = vadd.f32 %v1478, %v1686
    %1688 = vmatmul.f32.gmra.mxu0 %v52
    %v1689 = vpop.f32.mrf.mxu0
    %v1690 = vadd.f32 %v1481, %v1689
    %1691 = vmatmul.f32.gmra.mxu0 %v53
    %v1692 = vpop.f32.mrf.mxu0
    %v1693 = vadd.f32 %v1484, %v1692
    %1694 = vmatmul.f32.gmra.mxu0 %v54
    %v1695 = vpop.f32.mrf.mxu0
    %v1696 = vadd.f32 %v1487, %v1695
    %1697 = vmatmul.f32.gmra.mxu0 %v55
    %v1698 = vpop.f32.mrf.mxu0
    %v1699 = vadd.f32 %v1490, %v1698
    %1700 = vmatmul.f32.gmra.mxu0 %v56
    %v1701 = vpop.f32.mrf.mxu0
    %v1702 = vadd.f32 %v1493, %v1701
    %1703 = vmatmul.f32.gmra.mxu0 %v57
    %v1704 = vpop.f32.mrf.mxu0
    %v1705 = vadd.f32 %v1496, %v1704
    %1706 = vmatmul.f32.gmra.mxu0 %v58
    %v1707 = vpop.f32.mrf.mxu0
    %v1708 = vadd.f32 %v1499, %v1707
    %1709 = vmatmul.f32.gmra.mxu0 %v59
    %v1710 = vpop.f32.mrf.mxu0
    %v1711 = vadd.f32 %v1502, %v1710
    %1712 = vmatmul.f32.gmra.mxu0 %v60
    %v1713 = vpop.f32.mrf.mxu0
    %v1714 = vadd.f32 %v1505, %v1713
    %1715 = vmatmul.f32.gmra.mxu0 %v61
    %v1716 = vpop.f32.mrf.mxu0
    %v1717 = vadd.f32 %v1508, %v1716
    %1718 = vmatmul.f32.gmra.mxu0 %v62
    %v1719 = vpop.f32.mrf.mxu0
    %v1720 = vadd.f32 %v1511, %v1719
    %1721 = vmatmul.f32.gmra.mxu0 %v63
    %v1722 = vpop.f32.mrf.mxu0
    %v1723 = vadd.f32 %v1514, %v1722
    %1724 = vmatmul.f32.gmra.mxu0 %v64
    %v1725 = vpop.f32.mrf.mxu0
    %v1726 = vadd.f32 %v1517, %v1725
    %1727 = vmatmul.f32.gmra.mxu0 %v65
    %v1728 = vpop.f32.mrf.mxu0
    %v1729 = vadd.f32 %v1520, %v1728
    %1730 = vmatmul.f32.gmra.mxu0 %v66
    %v1731 = vpop.f32.mrf.mxu0
    %v1732 = vadd.f32 %v1523, %v1731
    %1733 = vmatmul.f32.gmra.mxu0 %v67
    %v1734 = vpop.f32.mrf.mxu0
    %v1735 = vadd.f32 %v1526, %v1734
    %1736 = vmatmul.f32.gmra.mxu0 %v68
    %v1737 = vpop.f32.mrf.mxu0
    %v1738 = vadd.f32 %v1529, %v1737
    %1739 = vmatmul.f32.gmra.mxu0 %v69
    %v1740 = vpop.f32.mrf.mxu0
    %v1741 = vadd.f32 %v1532, %v1740
    %1742 = vmatmul.f32.gmra.mxu0 %v70
    %v1743 = vpop.f32.mrf.mxu0
    %v1744 = vadd.f32 %v1535, %v1743
    %1745 = vmatmul.f32.gmra.mxu0 %v71
    %v1746 = vpop.f32.mrf.mxu0
    %v1747 = vadd.f32 %v1538, %v1746
    %1748 = vmatmul.f32.gmra.mxu0 %v72
    %v1749 = vpop.f32.mrf.mxu0
    %v1750 = vadd.f32 %v1541, %v1749
    %1751 = vmatmul.f32.gmra.mxu0 %v73
    %v1752 = vpop.f32.mrf.mxu0
    %v1753 = vadd.f32 %v1544, %v1752
    %1754 = vmatmul.f32.gmra.mxu0 %v74
    %v1755 = vpop.f32.mrf.mxu0
    %v1756 = vadd.f32 %v1547, %v1755
    %1757 = vmatmul.f32.gmra.mxu0 %v75
    %v1758 = vpop.f32.mrf.mxu0
    %v1759 = vadd.f32 %v1550, %v1758
    %1760 = vmatmul.f32.gmra.mxu0 %v76
    %v1761 = vpop.f32.mrf.mxu0
    %v1762 = vadd.f32 %v1553, %v1761
    %1763 = vmatmul.f32.gmra.mxu0 %v77
    %v1764 = vpop.f32.mrf.mxu0
    %v1765 = vadd.f32 %v1556, %v1764
    %1766 = vmatmul.f32.gmra.mxu0 %v78
    %v1767 = vpop.f32.mrf.mxu0
    %v1768 = vadd.f32 %v1559, %v1767
    %1769 = vmatmul.f32.gmra.mxu0 %v83
    %v1770 = vpop.f32.mrf.mxu0
    %v1771 = vadd.f32 %v1562, %v1770
    %1772 = vmatmul.f32.gmra.mxu0 %v84
    %v1773 = vpop.f32.mrf.mxu0
    %v1774 = vadd.f32 %v1565, %v1773
    %1775 = vmatmul.f32.gmra.mxu0 %v85
    %v1776 = vpop.f32.mrf.mxu0
    %v1777 = vadd.f32 %v1568, %v1776
    %1778 = vmatmul.f32.gmra.mxu0 %v86
    %v1779 = vpop.f32.mrf.mxu0
    %v1780 = vadd.f32 %v1571, %v1779
    %1781 = vmatmul.f32.gmra.mxu0 %v87
    %v1782 = vpop.f32.mrf.mxu0
    %v1783 = vadd.f32 %v1574, %v1782
    %1784 = vmatmul.f32.gmra.mxu0 %v88
    %v1785 = vpop.f32.mrf.mxu0
    %v1786 = vadd.f32 %v1577, %v1785
    %1787 = vmatmul.f32.gmra.mxu0 %v89
    %v1788 = vpop.f32.mrf.mxu0
    %v1789 = vadd.f32 %v1580, %v1788
    %1790 = vmatmul.f32.gmra.mxu0 %v90
    %v1791 = vpop.f32.mrf.mxu0
    %v1792 = vadd.f32 %v1583, %v1791
    %1793 = vmatmul.f32.gmra.mxu0 %v91
    %v1794 = vpop.f32.mrf.mxu0
    %v1795 = vadd.f32 %v1586, %v1794
    %1796 = vmatmul.f32.gmra.mxu0 %v92
    %v1797 = vpop.f32.mrf.mxu0
    %v1798 = vadd.f32 %v1589, %v1797
    %1799 = vmatmul.f32.gmra.mxu0 %v93
    %v1800 = vpop.f32.mrf.mxu0
    %v1801 = vadd.f32 %v1592, %v1800
    %1802 = vmatmul.f32.gmra.mxu0 %v94
    %v1803 = vpop.f32.mrf.mxu0
    %v1804 = vadd.f32 %v1595, %v1803
    %1805 = vmatmul.f32.gmra.mxu0 %v95
    %v1806 = vpop.f32.mrf.mxu0
    %v1807 = vadd.f32 %v1598, %v1806
    %1808 = vmatmul.f32.gmra.mxu0 %v96
    %v1809 = vpop.f32.mrf.mxu0
    %v1810 = vadd.f32 %v1601, %v1809
    %1811 = vmatmul.f32.gmra.mxu0 %v97
    %v1812 = vpop.f32.mrf.mxu0
    %v1813 = vadd.f32 %v1604, %v1812
    %1814 = vmatmul.f32.gmra.mxu0 %v98
    %v1815 = vpop.f32.mrf.mxu0
    %v1816 = vadd.f32 %v1607, %v1815
    %1817 = vmatmul.f32.gmra.mxu0 %v99
    %v1818 = vpop.f32.mrf.mxu0
    %v1819 = vadd.f32 %v1610, %v1818
    %1820 = vmatmul.f32.gmra.mxu0 %v100
    %v1821 = vpop.f32.mrf.mxu0
    %v1822 = vadd.f32 %v1613, %v1821
    %1823 = vmatmul.f32.gmra.mxu0 %v101
    %v1824 = vpop.f32.mrf.mxu0
    %v1825 = vadd.f32 %v1616, %v1824
    %1826 = vmatmul.f32.gmra.mxu0 %v102
    %v1827 = vpop.f32.mrf.mxu0
    %v1828 = vadd.f32 %v1619, %v1827
    %1829 = vmatmul.f32.gmra.mxu0 %v103
    %v1830 = vpop.f32.mrf.mxu0
    %v1831 = vadd.f32 %v1622, %v1830
    %1832 = vmatmul.f32.gmra.mxu0 %v104
    %v1833 = vpop.f32.mrf.mxu0
    %v1834 = vadd.f32 %v1625, %v1833
    %1835 = vmatmul.f32.gmra.mxu0 %v105
    %v1836 = vpop.f32.mrf.mxu0
    %v1837 = vadd.f32 %v1628, %v1836
    %1838 = vmatmul.f32.gmra.mxu0 %v106
    %v1839 = vpop.f32.mrf.mxu0
    %v1840 = vadd.f32 %v1631, %v1839
    %1841 = vmatmul.f32.gmra.mxu0 %v107
    %v1842 = vpop.f32.mrf.mxu0
    %v1843 = vadd.f32 %v1634, %v1842
    %1844 = vmatmul.f32.gmra.mxu0 %v108
    %v1845 = vpop.f32.mrf.mxu0
    %v1846 = vadd.f32 %v1637, %v1845
    %1847 = vmatmul.f32.gmra.mxu0 %v109
    %v1848 = vpop.f32.mrf.mxu0
    %v1849 = vadd.f32 %v1640, %v1848
    %1850 = vmatmul.f32.gmra.mxu0 %v110
    %v1851 = vpop.f32.mrf.mxu0
    %v1852 = vadd.f32 %v1643, %v1851
    %1853 = vmatmul.f32.gmra.mxu0 %v111
    %v1854 = vpop.f32.mrf.mxu0
    %v1855 = vadd.f32 %v1646, %v1854
    %1856 = vmatmul.f32.gmra.mxu0 %v112
    %v1857 = vpop.f32.mrf.mxu0
    %v1858 = vadd.f32 %v1649, %v1857
    %1859 = vmatmul.f32.gmra.mxu0 %v113
    %v1860 = vpop.f32.mrf.mxu0
    %v1861 = vadd.f32 %v1652, %v1860
    %1862 = vmatmul.f32.gmra.mxu0 %v114
    %v1863 = vpop.f32.mrf.mxu0
    %v1864 = vadd.f32 %v1655, %v1863
    %1865 = vdwg.mxu0
    %1866 = vmatpush.msra.mxu0 %v386
    %1867 = vmatpush.msra.mxu0 %v385
    %1868 = vmatpush.msra.mxu0 %v384
    %1869 = vmatpush.msra.mxu0 %v383
    %1870 = vmatpush.msra.mxu0 %v382
    %1871 = vmatpush.msra.mxu0 %v381
    %1872 = vmatpush.msra.mxu0 %v380
    %1873 = vmatpush.msra.mxu0 %v379
    %1874 = vmatpush.msra.mxu0 %v378
    %1875 = vmatpush.msra.mxu0 %v377
    %1876 = vmatpush.msra.mxu0 %v376
    %1877 = vmatpush.msra.mxu0 %v375
    %1878 = vmatpush.msra.mxu0 %v374
    %1879 = vmatpush.msra.mxu0 %v373
    %1880 = vmatpush.msra.mxu0 %v372
    %1881 = vmatpush.msra.mxu0 %v371
    %1882 = vmatmul.f32.gmra.mxu0 %v119
    %v1883 = vpop.f32.mrf.mxu0
    %v1884 = vadd.f32 %v1675, %v1883
    %1885 = vmatmul.f32.gmra.mxu0 %v120
    %v1886 = vpop.f32.mrf.mxu0
    %v1887 = vadd.f32 %v1678, %v1886
    %1888 = vmatmul.f32.gmra.mxu0 %v121
    %v1889 = vpop.f32.mrf.mxu0
    %v1890 = vadd.f32 %v1681, %v1889
    %1891 = vmatmul.f32.gmra.mxu0 %v122
    %v1892 = vpop.f32.mrf.mxu0
    %v1893 = vadd.f32 %v1684, %v1892
    %1894 = vmatmul.f32.gmra.mxu0 %v123
    %v1895 = vpop.f32.mrf.mxu0
    %v1896 = vadd.f32 %v1687, %v1895
    %1897 = vmatmul.f32.gmra.mxu0 %v124
    %v1898 = vpop.f32.mrf.mxu0
    %v1899 = vadd.f32 %v1690, %v1898
    %1900 = vmatmul.f32.gmra.mxu0 %v125
    %v1901 = vpop.f32.mrf.mxu0
    %v1902 = vadd.f32 %v1693, %v1901
    %1903 = vmatmul.f32.gmra.mxu0 %v126
    %v1904 = vpop.f32.mrf.mxu0
    %v1905 = vadd.f32 %v1696, %v1904
    %1906 = vmatmul.f32.gmra.mxu0 %v127
    %v1907 = vpop.f32.mrf.mxu0
    %v1908 = vadd.f32 %v1699, %v1907
    %1909 = vmatmul.f32.gmra.mxu0 %v128
    %v1910 = vpop.f32.mrf.mxu0
    %v1911 = vadd.f32 %v1702, %v1910
    %1912 = vmatmul.f32.gmra.mxu0 %v129
    %v1913 = vpop.f32.mrf.mxu0
    %v1914 = vadd.f32 %v1705, %v1913
    %1915 = vmatmul.f32.gmra.mxu0 %v130
    %v1916 = vpop.f32.mrf.mxu0
    %v1917 = vadd.f32 %v1708, %v1916
    %1918 = vmatmul.f32.gmra.mxu0 %v131
    %v1919 = vpop.f32.mrf.mxu0
    %v1920 = vadd.f32 %v1711, %v1919
    %1921 = vmatmul.f32.gmra.mxu0 %v132
    %v1922 = vpop.f32.mrf.mxu0
    %v1923 = vadd.f32 %v1714, %v1922
    %1924 = vmatmul.f32.gmra.mxu0 %v133
    %v1925 = vpop.f32.mrf.mxu0
    %v1926 = vadd.f32 %v1717, %v1925
    %1927 = vmatmul.f32.gmra.mxu0 %v134
    %v1928 = vpop.f32.mrf.mxu0
    %v1929 = vadd.f32 %v1720, %v1928
    %1930 = vmatmul.f32.gmra.mxu0 %v135
    %v1931 = vpop.f32.mrf.mxu0
    %v1932 = vadd.f32 %v1723, %v1931
    %1933 = vmatmul.f32.gmra.mxu0 %v136
    %v1934 = vpop.f32.mrf.mxu0
    %v1935 = vadd.f32 %v1726, %v1934
    %1936 = vmatmul.f32.gmra.mxu0 %v137
    %v1937 = vpop.f32.mrf.mxu0
    %v1938 = vadd.f32 %v1729, %v1937
    %1939 = vmatmul.f32.gmra.mxu0 %v138
    %v1940 = vpop.f32.mrf.mxu0
    %v1941 = vadd.f32 %v1732, %v1940
    %1942 = vmatmul.f32.gmra.mxu0 %v139
    %v1943 = vpop.f32.mrf.mxu0
    %v1944 = vadd.f32 %v1735, %v1943
    %1945 = vmatmul.f32.gmra.mxu0 %v140
    %v1946 = vpop.f32.mrf.mxu0
    %v1947 = vadd.f32 %v1738, %v1946
    %1948 = vmatmul.f32.gmra.mxu0 %v141
    %v1949 = vpop.f32.mrf.mxu0
    %v1950 = vadd.f32 %v1741, %v1949
    %1951 = vmatmul.f32.gmra.mxu0 %v142
    %v1952 = vpop.f32.mrf.mxu0
    %v1953 = vadd.f32 %v1744, %v1952
    %1954 = vmatmul.f32.gmra.mxu0 %v143
    %v1955 = vpop.f32.mrf.mxu0
    %v1956 = vadd.f32 %v1747, %v1955
    %1957 = vmatmul.f32.gmra.mxu0 %v144
    %v1958 = vpop.f32.mrf.mxu0
    %v1959 = vadd.f32 %v1750, %v1958
    %1960 = vmatmul.f32.gmra.mxu0 %v145
    %v1961 = vpop.f32.mrf.mxu0
    %v1962 = vadd.f32 %v1753, %v1961
    %1963 = vmatmul.f32.gmra.mxu0 %v146
    %v1964 = vpop.f32.mrf.mxu0
    %v1965 = vadd.f32 %v1756, %v1964
    %1966 = vmatmul.f32.gmra.mxu0 %v147
    %v1967 = vpop.f32.mrf.mxu0
    %v1968 = vadd.f32 %v1759, %v1967
    %1969 = vmatmul.f32.gmra.mxu0 %v148
    %v1970 = vpop.f32.mrf.mxu0
    %v1971 = vadd.f32 %v1762, %v1970
    %1972 = vmatmul.f32.gmra.mxu0 %v149
    %v1973 = vpop.f32.mrf.mxu0
    %v1974 = vadd.f32 %v1765, %v1973
    %1975 = vmatmul.f32.gmra.mxu0 %v150
    %v1976 = vpop.f32.mrf.mxu0
    %v1977 = vadd.f32 %v1768, %v1976
    %1978 = vmatmul.f32.gmra.mxu0 %v155
    %v1979 = vpop.f32.mrf.mxu0
    %v1980 = vadd.f32 %v1771, %v1979
    %1981 = vmatmul.f32.gmra.mxu0 %v156
    %v1982 = vpop.f32.mrf.mxu0
    %v1983 = vadd.f32 %v1774, %v1982
    %1984 = vmatmul.f32.gmra.mxu0 %v157
    %v1985 = vpop.f32.mrf.mxu0
    %v1986 = vadd.f32 %v1777, %v1985
    %1987 = vmatmul.f32.gmra.mxu0 %v158
    %v1988 = vpop.f32.mrf.mxu0
    %v1989 = vadd.f32 %v1780, %v1988
    %1990 = vmatmul.f32.gmra.mxu0 %v159
    %v1991 = vpop.f32.mrf.mxu0
    %v1992 = vadd.f32 %v1783, %v1991
    %1993 = vmatmul.f32.gmra.mxu0 %v160
    %v1994 = vpop.f32.mrf.mxu0
    %v1995 = vadd.f32 %v1786, %v1994
    %1996 = vmatmul.f32.gmra.mxu0 %v161
    %v1997 = vpop.f32.mrf.mxu0
    %v1998 = vadd.f32 %v1789, %v1997
    %1999 = vmatmul.f32.gmra.mxu0 %v162
    %v2000 = vpop.f32.mrf.mxu0
    %v2001 = vadd.f32 %v1792, %v2000
    %2002 = vmatmul.f32.gmra.mxu0 %v163
    %v2003 = vpop.f32.mrf.mxu0
    %v2004 = vadd.f32 %v1795, %v2003
    %2005 = vmatmul.f32.gmra.mxu0 %v164
    %v2006 = vpop.f32.mrf.mxu0
    %v2007 = vadd.f32 %v1798, %v2006
    %2008 = vmatmul.f32.gmra.mxu0 %v165
    %v2009 = vpop.f32.mrf.mxu0
    %v2010 = vadd.f32 %v1801, %v2009
    %2011 = vmatmul.f32.gmra.mxu0 %v166
    %v2012 = vpop.f32.mrf.mxu0
    %v2013 = vadd.f32 %v1804, %v2012
    %2014 = vmatmul.f32.gmra.mxu0 %v167
    %v2015 = vpop.f32.mrf.mxu0
    %v2016 = vadd.f32 %v1807, %v2015
    %2017 = vmatmul.f32.gmra.mxu0 %v168
    %v2018 = vpop.f32.mrf.mxu0
    %v2019 = vadd.f32 %v1810, %v2018
    %2020 = vmatmul.f32.gmra.mxu0 %v169
    %v2021 = vpop.f32.mrf.mxu0
    %v2022 = vadd.f32 %v1813, %v2021
    %2023 = vmatmul.f32.gmra.mxu0 %v170
    %v2024 = vpop.f32.mrf.mxu0
    %v2025 = vadd.f32 %v1816, %v2024
    %2026 = vmatmul.f32.gmra.mxu0 %v171
    %v2027 = vpop.f32.mrf.mxu0
    %v2028 = vadd.f32 %v1819, %v2027
    %2029 = vmatmul.f32.gmra.mxu0 %v172
    %v2030 = vpop.f32.mrf.mxu0
    %v2031 = vadd.f32 %v1822, %v2030
    %2032 = vmatmul.f32.gmra.mxu0 %v173
    %v2033 = vpop.f32.mrf.mxu0
    %v2034 = vadd.f32 %v1825, %v2033
    %2035 = vmatmul.f32.gmra.mxu0 %v174
    %v2036 = vpop.f32.mrf.mxu0
    %v2037 = vadd.f32 %v1828, %v2036
    %2038 = vmatmul.f32.gmra.mxu0 %v175
    %v2039 = vpop.f32.mrf.mxu0
    %v2040 = vadd.f32 %v1831, %v2039
    %2041 = vmatmul.f32.gmra.mxu0 %v176
    %v2042 = vpop.f32.mrf.mxu0
    %v2043 = vadd.f32 %v1834, %v2042
    %2044 = vmatmul.f32.gmra.mxu0 %v177
    %v2045 = vpop.f32.mrf.mxu0
    %v2046 = vadd.f32 %v1837, %v2045
    %2047 = vmatmul.f32.gmra.mxu0 %v178
    %v2048 = vpop.f32.mrf.mxu0
    %v2049 = vadd.f32 %v1840, %v2048
    %2050 = vmatmul.f32.gmra.mxu0 %v179
    %v2051 = vpop.f32.mrf.mxu0
    %v2052 = vadd.f32 %v1843, %v2051
    %2053 = vmatmul.f32.gmra.mxu0 %v180
    %v2054 = vpop.f32.mrf.mxu0
    %v2055 = vadd.f32 %v1846, %v2054
    %2056 = vmatmul.f32.gmra.mxu0 %v181
    %v2057 = vpop.f32.mrf.mxu0
    %v2058 = vadd.f32 %v1849, %v2057
    %2059 = vmatmul.f32.gmra.mxu0 %v182
    %v2060 = vpop.f32.mrf.mxu0
    %v2061 = vadd.f32 %v1852, %v2060
    %2062 = vmatmul.f32.gmra.mxu0 %v183
    %v2063 = vpop.f32.mrf.mxu0
    %v2064 = vadd.f32 %v1855, %v2063
    %2065 = vmatmul.f32.gmra.mxu0 %v184
    %v2066 = vpop.f32.mrf.mxu0
    %v2067 = vadd.f32 %v1858, %v2066
    %2068 = vmatmul.f32.gmra.mxu0 %v185
    %v2069 = vpop.f32.mrf.mxu0
    %v2070 = vadd.f32 %v1861, %v2069
    %2071 = vmatmul.f32.gmra.mxu0 %v186
    %v2072 = vpop.f32.mrf.mxu0
    %v2073 = vadd.f32 %v1864, %v2072
    %2074 = vdwg.mxu0
    %2075 = vmatpush.msra.mxu0 %v402
    %2076 = vmatpush.msra.mxu0 %v401
    %2077 = vmatpush.msra.mxu0 %v400
    %2078 = vmatpush.msra.mxu0 %v399
    %2079 = vmatpush.msra.mxu0 %v398
    %2080 = vmatpush.msra.mxu0 %v397
    %2081 = vmatpush.msra.mxu0 %v396
    %2082 = vmatpush.msra.mxu0 %v395
    %2083 = vmatpush.msra.mxu0 %v394
    %2084 = vmatpush.msra.mxu0 %v393
    %2085 = vmatpush.msra.mxu0 %v392
    %2086 = vmatpush.msra.mxu0 %v391
    %2087 = vmatpush.msra.mxu0 %v390
    %2088 = vmatpush.msra.mxu0 %v389
    %2089 = vmatpush.msra.mxu0 %v388
    %2090 = vmatpush.msra.mxu0 %v387
    %2091 = vmatmul.f32.gmra.mxu0 %v191
    %v2092 = vpop.f32.mrf.mxu0
    %v2093 = vadd.f32 %v1884, %v2092
    %2094 = vmatmul.f32.gmra.mxu0 %v192
    %v2095 = vpop.f32.mrf.mxu0
    %v2096 = vadd.f32 %v1887, %v2095
    %2097 = vmatmul.f32.gmra.mxu0 %v193
    %v2098 = vpop.f32.mrf.mxu0
    %v2099 = vadd.f32 %v1890, %v2098
    %2100 = vmatmul.f32.gmra.mxu0 %v194
    %v2101 = vpop.f32.mrf.mxu0
    %v2102 = vadd.f32 %v1893, %v2101
    %2103 = vmatmul.f32.gmra.mxu0 %v195
    %v2104 = vpop.f32.mrf.mxu0
    %v2105 = vadd.f32 %v1896, %v2104
    %2106 = vmatmul.f32.gmra.mxu0 %v196
    %v2107 = vpop.f32.mrf.mxu0
    %v2108 = vadd.f32 %v1899, %v2107
    %2109 = vmatmul.f32.gmra.mxu0 %v197
    %v2110 = vpop.f32.mrf.mxu0
    %v2111 = vadd.f32 %v1902, %v2110
    %2112 = vmatmul.f32.gmra.mxu0 %v198
    %v2113 = vpop.f32.mrf.mxu0
    %v2114 = vadd.f32 %v1905, %v2113
    %2115 = vmatmul.f32.gmra.mxu0 %v199
    %v2116 = vpop.f32.mrf.mxu0
    %v2117 = vadd.f32 %v1908, %v2116
    %2118 = vmatmul.f32.gmra.mxu0 %v200
    %v2119 = vpop.f32.mrf.mxu0
    %v2120 = vadd.f32 %v1911, %v2119
    %2121 = vmatmul.f32.gmra.mxu0 %v201
    %v2122 = vpop.f32.mrf.mxu0
    %v2123 = vadd.f32 %v1914, %v2122
    %2124 = vmatmul.f32.gmra.mxu0 %v202
    %v2125 = vpop.f32.mrf.mxu0
    %v2126 = vadd.f32 %v1917, %v2125
    %2127 = vmatmul.f32.gmra.mxu0 %v203
    %v2128 = vpop.f32.mrf.mxu0
    %v2129 = vadd.f32 %v1920, %v2128
    %2130 = vmatmul.f32.gmra.mxu0 %v204
    %v2131 = vpop.f32.mrf.mxu0
    %v2132 = vadd.f32 %v1923, %v2131
    %2133 = vmatmul.f32.gmra.mxu0 %v205
    %v2134 = vpop.f32.mrf.mxu0
    %v2135 = vadd.f32 %v1926, %v2134
    %2136 = vmatmul.f32.gmra.mxu0 %v206
    %v2137 = vpop.f32.mrf.mxu0
    %v2138 = vadd.f32 %v1929, %v2137
    %2139 = vmatmul.f32.gmra.mxu0 %v207
    %v2140 = vpop.f32.mrf.mxu0
    %v2141 = vadd.f32 %v1932, %v2140
    %2142 = vmatmul.f32.gmra.mxu0 %v208
    %v2143 = vpop.f32.mrf.mxu0
    %v2144 = vadd.f32 %v1935, %v2143
    %2145 = vmatmul.f32.gmra.mxu0 %v209
    %v2146 = vpop.f32.mrf.mxu0
    %v2147 = vadd.f32 %v1938, %v2146
    %2148 = vmatmul.f32.gmra.mxu0 %v210
    %v2149 = vpop.f32.mrf.mxu0
    %v2150 = vadd.f32 %v1941, %v2149
    %2151 = vmatmul.f32.gmra.mxu0 %v211
    %v2152 = vpop.f32.mrf.mxu0
    %v2153 = vadd.f32 %v1944, %v2152
    %2154 = vmatmul.f32.gmra.mxu0 %v212
    %v2155 = vpop.f32.mrf.mxu0
    %v2156 = vadd.f32 %v1947, %v2155
    %2157 = vmatmul.f32.gmra.mxu0 %v213
    %v2158 = vpop.f32.mrf.mxu0
    %v2159 = vadd.f32 %v1950, %v2158
    %2160 = vmatmul.f32.gmra.mxu0 %v214
    %v2161 = vpop.f32.mrf.mxu0
    %v2162 = vadd.f32 %v1953, %v2161
    %2163 = vmatmul.f32.gmra.mxu0 %v215
    %v2164 = vpop.f32.mrf.mxu0
    %v2165 = vadd.f32 %v1956, %v2164
    %2166 = vmatmul.f32.gmra.mxu0 %v216
    %v2167 = vpop.f32.mrf.mxu0
    %v2168 = vadd.f32 %v1959, %v2167
    %2169 = vmatmul.f32.gmra.mxu0 %v217
    %v2170 = vpop.f32.mrf.mxu0
    %v2171 = vadd.f32 %v1962, %v2170
    %2172 = vmatmul.f32.gmra.mxu0 %v218
    %v2173 = vpop.f32.mrf.mxu0
    %v2174 = vadd.f32 %v1965, %v2173
    %2175 = vmatmul.f32.gmra.mxu0 %v219
    %v2176 = vpop.f32.mrf.mxu0
    %v2177 = vadd.f32 %v1968, %v2176
    %2178 = vmatmul.f32.gmra.mxu0 %v220
    %v2179 = vpop.f32.mrf.mxu0
    %v2180 = vadd.f32 %v1971, %v2179
    %2181 = vmatmul.f32.gmra.mxu0 %v221
    %v2182 = vpop.f32.mrf.mxu0
    %v2183 = vadd.f32 %v1974, %v2182
    %2184 = vmatmul.f32.gmra.mxu0 %v222
    %v2185 = vpop.f32.mrf.mxu0
    %v2186 = vadd.f32 %v1977, %v2185
    %2187 = vmatmul.f32.gmra.mxu0 %v227
    %v2188 = vpop.f32.mrf.mxu0
    %v2189 = vadd.f32 %v1980, %v2188
    %2190 = vmatmul.f32.gmra.mxu0 %v228
    %v2191 = vpop.f32.mrf.mxu0
    %v2192 = vadd.f32 %v1983, %v2191
    %2193 = vmatmul.f32.gmra.mxu0 %v229
    %v2194 = vpop.f32.mrf.mxu0
    %v2195 = vadd.f32 %v1986, %v2194
    %2196 = vmatmul.f32.gmra.mxu0 %v230
    %v2197 = vpop.f32.mrf.mxu0
    %v2198 = vadd.f32 %v1989, %v2197
    %2199 = vmatmul.f32.gmra.mxu0 %v231
    %v2200 = vpop.f32.mrf.mxu0
    %v2201 = vadd.f32 %v1992, %v2200
    %2202 = vmatmul.f32.gmra.mxu0 %v232
    %v2203 = vpop.f32.mrf.mxu0
    %v2204 = vadd.f32 %v1995, %v2203
    %2205 = vmatmul.f32.gmra.mxu0 %v233
    %v2206 = vpop.f32.mrf.mxu0
    %v2207 = vadd.f32 %v1998, %v2206
    %2208 = vmatmul.f32.gmra.mxu0 %v234
    %v2209 = vpop.f32.mrf.mxu0
    %v2210 = vadd.f32 %v2001, %v2209
    %2211 = vmatmul.f32.gmra.mxu0 %v235
    %v2212 = vpop.f32.mrf.mxu0
    %v2213 = vadd.f32 %v2004, %v2212
    %2214 = vmatmul.f32.gmra.mxu0 %v236
    %v2215 = vpop.f32.mrf.mxu0
    %v2216 = vadd.f32 %v2007, %v2215
    %2217 = vmatmul.f32.gmra.mxu0 %v237
    %v2218 = vpop.f32.mrf.mxu0
    %v2219 = vadd.f32 %v2010, %v2218
    %2220 = vmatmul.f32.gmra.mxu0 %v238
    %v2221 = vpop.f32.mrf.mxu0
    %v2222 = vadd.f32 %v2013, %v2221
    %2223 = vmatmul.f32.gmra.mxu0 %v239
    %v2224 = vpop.f32.mrf.mxu0
    %v2225 = vadd.f32 %v2016, %v2224
    %2226 = vmatmul.f32.gmra.mxu0 %v240
    %v2227 = vpop.f32.mrf.mxu0
    %v2228 = vadd.f32 %v2019, %v2227
    %2229 = vmatmul.f32.gmra.mxu0 %v241
    %v2230 = vpop.f32.mrf.mxu0
    %v2231 = vadd.f32 %v2022, %v2230
    %2232 = vmatmul.f32.gmra.mxu0 %v242
    %v2233 = vpop.f32.mrf.mxu0
    %v2234 = vadd.f32 %v2025, %v2233
    %2235 = vmatmul.f32.gmra.mxu0 %v243
    %v2236 = vpop.f32.mrf.mxu0
    %v2237 = vadd.f32 %v2028, %v2236
    %2238 = vmatmul.f32.gmra.mxu0 %v244
    %v2239 = vpop.f32.mrf.mxu0
    %v2240 = vadd.f32 %v2031, %v2239
    %2241 = vmatmul.f32.gmra.mxu0 %v245
    %v2242 = vpop.f32.mrf.mxu0
    %v2243 = vadd.f32 %v2034, %v2242
    %2244 = vmatmul.f32.gmra.mxu0 %v246
    %v2245 = vpop.f32.mrf.mxu0
    %v2246 = vadd.f32 %v2037, %v2245
    %2247 = vmatmul.f32.gmra.mxu0 %v247
    %v2248 = vpop.f32.mrf.mxu0
    %v2249 = vadd.f32 %v2040, %v2248
    %2250 = vmatmul.f32.gmra.mxu0 %v248
    %v2251 = vpop.f32.mrf.mxu0
    %v2252 = vadd.f32 %v2043, %v2251
    %2253 = vmatmul.f32.gmra.mxu0 %v249
    %v2254 = vpop.f32.mrf.mxu0
    %v2255 = vadd.f32 %v2046, %v2254
    %2256 = vmatmul.f32.gmra.mxu0 %v250
    %v2257 = vpop.f32.mrf.mxu0
    %v2258 = vadd.f32 %v2049, %v2257
    %2259 = vmatmul.f32.gmra.mxu0 %v251
    %v2260 = vpop.f32.mrf.mxu0
    %v2261 = vadd.f32 %v2052, %v2260
    %2262 = vmatmul.f32.gmra.mxu0 %v252
    %v2263 = vpop.f32.mrf.mxu0
    %v2264 = vadd.f32 %v2055, %v2263
    %2265 = vmatmul.f32.gmra.mxu0 %v253
    %v2266 = vpop.f32.mrf.mxu0
    %v2267 = vadd.f32 %v2058, %v2266
    %2268 = vmatmul.f32.gmra.mxu0 %v254
    %v2269 = vpop.f32.mrf.mxu0
    %v2270 = vadd.f32 %v2061, %v2269
    %2271 = vmatmul.f32.gmra.mxu0 %v255
    %v2272 = vpop.f32.mrf.mxu0
    %v2273 = vadd.f32 %v2064, %v2272
    %2274 = vmatmul.f32.gmra.mxu0 %v256
    %v2275 = vpop.f32.mrf.mxu0
    %v2276 = vadd.f32 %v2067, %v2275
    %2277 = vmatmul.f32.gmra.mxu0 %v257
    %v2278 = vpop.f32.mrf.mxu0
    %v2279 = vadd.f32 %v2070, %v2278
    %2280 = vmatmul.f32.gmra.mxu0 %v258
    %v2281 = vpop.f32.mrf.mxu0
    %v2282 = vadd.f32 %v2073, %v2281
    %2283 = vdwg.mxu0
    %v2284 = vld [vmem:[%s2] sm:$0x1]
    %v2286 = vperm.slane %v2284, 0
    %v2288 = vmul.f32 %v2093, %v2286
    %v2289 = vmul.f32 %v2096, %v2286
    %v2290 = vmul.f32 %v2099, %v2286
    %v2291 = vmul.f32 %v2102, %v2286
    %v2292 = vmul.f32 %v2105, %v2286
    %v2293 = vmul.f32 %v2108, %v2286
    %v2294 = vmul.f32 %v2111, %v2286
    %v2295 = vmul.f32 %v2114, %v2286
    %v2296 = vmul.f32 %v2117, %v2286
    %v2297 = vmul.f32 %v2120, %v2286
    %v2298 = vmul.f32 %v2123, %v2286
    %v2299 = vmul.f32 %v2126, %v2286
    %v2300 = vmul.f32 %v2129, %v2286
    %v2301 = vmul.f32 %v2132, %v2286
    %v2302 = vmul.f32 %v2135, %v2286
    %v2303 = vmul.f32 %v2138, %v2286
    %v2304 = vmul.f32 %v2141, %v2286
    %v2305 = vmul.f32 %v2144, %v2286
    %v2306 = vmul.f32 %v2147, %v2286
    %v2307 = vmul.f32 %v2150, %v2286
    %v2308 = vmul.f32 %v2153, %v2286
    %v2309 = vmul.f32 %v2156, %v2286
    %v2310 = vmul.f32 %v2159, %v2286
    %v2311 = vmul.f32 %v2162, %v2286
    %v2312 = vmul.f32 %v2165, %v2286
    %v2313 = vmul.f32 %v2168, %v2286
    %v2314 = vmul.f32 %v2171, %v2286
    %v2315 = vmul.f32 %v2174, %v2286
    %v2316 = vmul.f32 %v2177, %v2286
    %v2317 = vmul.f32 %v2180, %v2286
    %v2318 = vmul.f32 %v2183, %v2286
    %v2319 = vmul.f32 %v2186, %v2286
    %v2320 = vmul.f32 %v2189, %v2286
    %v2321 = vmul.f32 %v2192, %v2286
    %v2322 = vmul.f32 %v2195, %v2286
    %v2323 = vmul.f32 %v2198, %v2286
    %v2324 = vmul.f32 %v2201, %v2286
    %v2325 = vmul.f32 %v2204, %v2286
    %v2326 = vmul.f32 %v2207, %v2286
    %v2327 = vmul.f32 %v2210, %v2286
    %v2328 = vmul.f32 %v2213, %v2286
    %v2329 = vmul.f32 %v2216, %v2286
    %v2330 = vmul.f32 %v2219, %v2286
    %v2331 = vmul.f32 %v2222, %v2286
    %v2332 = vmul.f32 %v2225, %v2286
    %v2333 = vmul.f32 %v2228, %v2286
    %v2334 = vmul.f32 %v2231, %v2286
    %v2335 = vmul.f32 %v2234, %v2286
    %v2336 = vmul.f32 %v2237, %v2286
    %v2337 = vmul.f32 %v2240, %v2286
    %v2338 = vmul.f32 %v2243, %v2286
    %v2339 = vmul.f32 %v2246, %v2286
    %v2340 = vmul.f32 %v2249, %v2286
    %v2341 = vmul.f32 %v2252, %v2286
    %v2342 = vmul.f32 %v2255, %v2286
    %v2343 = vmul.f32 %v2258, %v2286
    %v2344 = vmul.f32 %v2261, %v2286
    %v2345 = vmul.f32 %v2264, %v2286
    %v2346 = vmul.f32 %v2267, %v2286
    %v2347 = vmul.f32 %v2270, %v2286
    %v2348 = vmul.f32 %v2273, %v2286
    %v2349 = vmul.f32 %v2276, %v2286
    %v2350 = vmul.f32 %v2279, %v2286
    %v2351 = vmul.f32 %v2282, %v2286
    %v2352 = vld [vmem:[%s3] sm:$0x1]
    %v2354 = vperm.slane %v2352, 0
    %v2356 = vadd.f32 %v2288, %v2354
    %v2357 = vadd.f32 %v2289, %v2354
    %v2358 = vadd.f32 %v2290, %v2354
    %v2359 = vadd.f32 %v2291, %v2354
    %v2360 = vadd.f32 %v2292, %v2354
    %v2361 = vadd.f32 %v2293, %v2354
    %v2362 = vadd.f32 %v2294, %v2354
    %v2363 = vadd.f32 %v2295, %v2354
    %v2364 = vadd.f32 %v2296, %v2354
    %v2365 = vadd.f32 %v2297, %v2354
    %v2366 = vadd.f32 %v2298, %v2354
    %v2367 = vadd.f32 %v2299, %v2354
    %v2368 = vadd.f32 %v2300, %v2354
    %v2369 = vadd.f32 %v2301, %v2354
    %v2370 = vadd.f32 %v2302, %v2354
    %v2371 = vadd.f32 %v2303, %v2354
    %v2372 = vadd.f32 %v2304, %v2354
    %v2373 = vadd.f32 %v2305, %v2354
    %v2374 = vadd.f32 %v2306, %v2354
    %v2375 = vadd.f32 %v2307, %v2354
    %v2376 = vadd.f32 %v2308, %v2354
    %v2377 = vadd.f32 %v2309, %v2354
    %v2378 = vadd.f32 %v2310, %v2354
    %v2379 = vadd.f32 %v2311, %v2354
    %v2380 = vadd.f32 %v2312, %v2354
    %v2381 = vadd.f32 %v2313, %v2354
    %v2382 = vadd.f32 %v2314, %v2354
    %v2383 = vadd.f32 %v2315, %v2354
    %v2384 = vadd.f32 %v2316, %v2354
    %v2385 = vadd.f32 %v2317, %v2354
    %v2386 = vadd.f32 %v2318, %v2354
    %v2387 = vadd.f32 %v2319, %v2354
    %v2388 = vadd.f32 %v2320, %v2354
    %v2389 = vadd.f32 %v2321, %v2354
    %v2390 = vadd.f32 %v2322, %v2354
    %v2391 = vadd.f32 %v2323, %v2354
    %v2392 = vadd.f32 %v2324, %v2354
    %v2393 = vadd.f32 %v2325, %v2354
    %v2394 = vadd.f32 %v2326, %v2354
    %v2395 = vadd.f32 %v2327, %v2354
    %v2396 = vadd.f32 %v2328, %v2354
    %v2397 = vadd.f32 %v2329, %v2354
    %v2398 = vadd.f32 %v2330, %v2354
    %v2399 = vadd.f32 %v2331, %v2354
    %v2400 = vadd.f32 %v2332, %v2354
    %v2401 = vadd.f32 %v2333, %v2354
    %v2402 = vadd.f32 %v2334, %v2354
    %v2403 = vadd.f32 %v2335, %v2354
    %v2404 = vadd.f32 %v2336, %v2354
    %v2405 = vadd.f32 %v2337, %v2354
    %v2406 = vadd.f32 %v2338, %v2354
    %v2407 = vadd.f32 %v2339, %v2354
    %v2408 = vadd.f32 %v2340, %v2354
    %v2409 = vadd.f32 %v2341, %v2354
    %v2410 = vadd.f32 %v2342, %v2354
    %v2411 = vadd.f32 %v2343, %v2354
    %v2412 = vadd.f32 %v2344, %v2354
    %v2413 = vadd.f32 %v2345, %v2354
    %v2414 = vadd.f32 %v2346, %v2354
    %v2415 = vadd.f32 %v2347, %v2354
    %v2416 = vadd.f32 %v2348, %v2354
    %v2417 = vadd.f32 %v2349, %v2354
    %v2418 = vadd.f32 %v2350, %v2354
    %v2419 = vadd.f32 %v2351, %v2354
    %v2420 = vmax.f32 %v2356, 0.0
    %v2421 = vmax.f32 %v2357, 0.0
    %v2422 = vmax.f32 %v2358, 0.0
    %v2423 = vmax.f32 %v2359, 0.0
    %v2424 = vmax.f32 %v2360, 0.0
    %v2425 = vmax.f32 %v2361, 0.0
    %v2426 = vmax.f32 %v2362, 0.0
    %v2427 = vmax.f32 %v2363, 0.0
    %v2428 = vmax.f32 %v2364, 0.0
    %v2429 = vmax.f32 %v2365, 0.0
    %v2430 = vmax.f32 %v2366, 0.0
    %v2431 = vmax.f32 %v2367, 0.0
    %v2432 = vmax.f32 %v2368, 0.0
    %v2433 = vmax.f32 %v2369, 0.0
    %v2434 = vmax.f32 %v2370, 0.0
    %v2435 = vmax.f32 %v2371, 0.0
    %v2436 = vmax.f32 %v2372, 0.0
    %v2437 = vmax.f32 %v2373, 0.0
    %v2438 = vmax.f32 %v2374, 0.0
    %v2439 = vmax.f32 %v2375, 0.0
    %v2440 = vmax.f32 %v2376, 0.0
    %v2441 = vmax.f32 %v2377, 0.0
    %v2442 = vmax.f32 %v2378, 0.0
    %v2443 = vmax.f32 %v2379, 0.0
    %v2444 = vmax.f32 %v2380, 0.0
    %v2445 = vmax.f32 %v2381, 0.0
    %v2446 = vmax.f32 %v2382, 0.0
    %v2447 = vmax.f32 %v2383, 0.0
    %v2448 = vmax.f32 %v2384, 0.0
    %v2449 = vmax.f32 %v2385, 0.0
    %v2450 = vmax.f32 %v2386, 0.0
    %v2451 = vmax.f32 %v2387, 0.0
    %v2452 = vmax.f32 %v2388, 0.0
    %v2453 = vmax.f32 %v2389, 0.0
    %v2454 = vmax.f32 %v2390, 0.0
    %v2455 = vmax.f32 %v2391, 0.0
    %v2456 = vmax.f32 %v2392, 0.0
    %v2457 = vmax.f32 %v2393, 0.0
    %v2458 = vmax.f32 %v2394, 0.0
    %v2459 = vmax.f32 %v2395, 0.0
    %v2460 = vmax.f32 %v2396, 0.0
    %v2461 = vmax.f32 %v2397, 0.0
    %v2462 = vmax.f32 %v2398, 0.0
    %v2463 = vmax.f32 %v2399, 0.0
    %v2464 = vmax.f32 %v2400, 0.0
    %v2465 = vmax.f32 %v2401, 0.0
    %v2466 = vmax.f32 %v2402, 0.0
    %v2467 = vmax.f32 %v2403, 0.0
    %v2468 = vmax.f32 %v2404, 0.0
    %v2469 = vmax.f32 %v2405, 0.0
    %v2470 = vmax.f32 %v2406, 0.0
    %v2471 = vmax.f32 %v2407, 0.0
    %v2472 = vmax.f32 %v2408, 0.0
    %v2473 = vmax.f32 %v2409, 0.0
    %v2474 = vmax.f32 %v2410, 0.0
    %v2475 = vmax.f32 %v2411, 0.0
    %v2476 = vmax.f32 %v2412, 0.0
    %v2477 = vmax.f32 %v2413, 0.0
    %v2478 = vmax.f32 %v2414, 0.0
    %v2479 = vmax.f32 %v2415, 0.0
    %v2480 = vmax.f32 %v2416, 0.0
    %v2481 = vmax.f32 %v2417, 0.0
    %v2482 = vmax.f32 %v2418, 0.0
    %v2483 = vmax.f32 %v2419, 0.0
    %2484 = vst [vmem:[#allocation2] sm:$0xff] 0.0
    %2485 = vst [vmem:[#allocation2 + $0x8] sm:$0xff] 0.0
    %2486 = vst [vmem:[#allocation2 + $0x10] sm:$0x3] 0.0
    %2487 = vst [vmem:[#allocation2 + $0x18] sm:$0xff] 0.0
    %2488 = vst [vmem:[#allocation2 + $0x20] sm:$0xff] 0.0
    %2489 = vst [vmem:[#allocation2 + $0x28] sm:$0x3] 0.0
    %2490 = vst [vmem:[#allocation2 + $0x30] sm:$0xff] 0.0
    %2491 = vst [vmem:[#allocation2 + $0x38] sm:$0xff] 0.0
    %2492 = vst [vmem:[#allocation2 + $0x40] sm:$0x3] 0.0
    %2493 = vst [vmem:[#allocation2 + $0x48] sm:$0xff] 0.0
    %2494 = vst [vmem:[#allocation2 + $0x50] sm:$0xff] 0.0
    %2495 = vst [vmem:[#allocation2 + $0x58] sm:$0x3] 0.0
    %2496 = vst [vmem:[#allocation2 + $0x60] sm:$0xff] 0.0
    %2497 = vst [vmem:[#allocation2 + $0x68] sm:$0xff] 0.0
    %2498 = vst [vmem:[#allocation2 + $0x70] sm:$0x3] 0.0
    %2499 = vst [vmem:[#allocation2 + $0x78] sm:$0xff] 0.0
    %2500 = vst [vmem:[#allocation2 + $0x80] sm:$0xff] 0.0
    %2501 = vst [vmem:[#allocation2 + $0x88] sm:$0x3] 0.0
    %2502 = vst [vmem:[#allocation2 + $0x90] sm:$0xff] 0.0
    %2503 = vst [vmem:[#allocation2 + $0x98] sm:$0xff] 0.0
    %2504 = vst [vmem:[#allocation2 + $0xa0] sm:$0x3] 0.0
    %2505 = vst [vmem:[#allocation2 + $0xa8] sm:$0xff] 0.0
    %2506 = vst [vmem:[#allocation2 + $0xb0] sm:$0xff] 0.0
    %2507 = vst [vmem:[#allocation2 + $0xb8] sm:$0x3] 0.0
    %2508 = vst [vmem:[#allocation2 + $0xc0] sm:$0xff] 0.0
    %2509 = vst [vmem:[#allocation2 + $0xc8] sm:$0xff] 0.0
    %2510 = vst [vmem:[#allocation2 + $0xd0] sm:$0x3] 0.0
    %2511 = vst [vmem:[#allocation2 + $0xd8] sm:$0xff] 0.0
    %2512 = vst [vmem:[#allocation2 + $0xe0] sm:$0xff] 0.0
    %2513 = vst [vmem:[#allocation2 + $0xe8] sm:$0x3] 0.0
    %2514 = vst [vmem:[#allocation2 + $0xf0] sm:$0xff] 0.0
    %2515 = vst [vmem:[#allocation2 + $0xf8] sm:$0xff] 0.0
    %2516 = vst [vmem:[#allocation2 + $0x100] sm:$0x3] 0.0
    %2517 = vst [vmem:[#allocation2 + $0x108] sm:$0xff] 0.0
    %2518 = vst [vmem:[#allocation2 + $0x110] sm:$0xff] 0.0
    %2519 = vst [vmem:[#allocation2 + $0x118] sm:$0x3] 0.0
    %2520 = vst [vmem:[#allocation2 + $0x120] sm:$0xff] 0.0
    %2521 = vst [vmem:[#allocation2 + $0x128] sm:$0xff] 0.0
    %2522 = vst [vmem:[#allocation2 + $0x130] sm:$0x3] 0.0
    %2523 = vst [vmem:[#allocation2 + $0x138] sm:$0xff] 0.0
    %2524 = vst [vmem:[#allocation2 + $0x140] sm:$0xff] 0.0
    %2525 = vst [vmem:[#allocation2 + $0x148] sm:$0x3] 0.0
    %2526 = vst [vmem:[#allocation2 + $0x150] sm:$0xff] 0.0
    %2527 = vst [vmem:[#allocation2 + $0x158] sm:$0xff] 0.0
    %2528 = vst [vmem:[#allocation2 + $0x160] sm:$0x3] 0.0
    %2529 = vst [vmem:[#allocation2 + $0x168] sm:$0xff] 0.0
    %2530 = vst [vmem:[#allocation2 + $0x170] sm:$0xff] 0.0
    %2531 = vst [vmem:[#allocation2 + $0x178] sm:$0x3] 0.0
    %2532 = vst [vmem:[#allocation2 + $0x180] sm:$0xff] 0.0
    %2533 = vst [vmem:[#allocation2 + $0x188] sm:$0xff] 0.0
    %2534 = vst [vmem:[#allocation2 + $0x190] sm:$0x3] 0.0
    %2535 = vst [vmem:[#allocation2 + $0x198] sm:$0xff] 0.0
    %2536 = vst [vmem:[#allocation2 + $0x1a0] sm:$0xff] 0.0
    %2537 = vst [vmem:[#allocation2 + $0x1a8] sm:$0x3] 0.0
    %2538 = vst [vmem:[#allocation2 + $0x1b0] sm:$0xff] 0.0
    %2539 = vst [vmem:[#allocation2 + $0x1b8] sm:$0xff] 0.0
    %2540 = vst [vmem:[#allocation2 + $0x1c0] sm:$0x3] 0.0
    %2541 = vst [vmem:[#allocation2 + $0x1c8] sm:$0xff] 0.0
    %2542 = vst [vmem:[#allocation2 + $0x1d0] sm:$0xff] 0.0
    %2543 = vst [vmem:[#allocation2 + $0x1d8] sm:$0x3] 0.0
    %2544 = vst [vmem:[#allocation2 + $0x1e0] sm:$0xff] 0.0
    %2545 = vst [vmem:[#allocation2 + $0x1e8] sm:$0xff] 0.0
    %2546 = vst [vmem:[#allocation2 + $0x1f0] sm:$0x3] 0.0
    %2547 = vst [vmem:[#allocation2 + $0x1f8] sm:$0xff] 0.0
    %2548 = vst [vmem:[#allocation2 + $0x200] sm:$0xff] 0.0
    %2549 = vst [vmem:[#allocation2 + $0x208] sm:$0x3] 0.0
    %2550 = vst [vmem:[#allocation2 + $0x210] sm:$0xff] 0.0
    %2551 = vst [vmem:[#allocation2 + $0x218] sm:$0xff] 0.0
    %2552 = vst [vmem:[#allocation2 + $0x220] sm:$0x3] 0.0
    %2553 = vst [vmem:[#allocation2 + $0x228] sm:$0xff] 0.0
    %2554 = vst [vmem:[#allocation2 + $0x230] sm:$0xff] 0.0
    %2555 = vst [vmem:[#allocation2 + $0x238] sm:$0x3] 0.0
    %2556 = vst [vmem:[#allocation2 + $0x240] sm:$0xff] 0.0
    %2557 = vst [vmem:[#allocation2 + $0x248] sm:$0xff] 0.0
    %2558 = vst [vmem:[#allocation2 + $0x250] sm:$0x3] 0.0
    %2559 = vst [vmem:[#allocation2 + $0x258] sm:$0xff] 0.0
    %2560 = vst [vmem:[#allocation2 + $0x260] sm:$0xff] 0.0
    %2561 = vst [vmem:[#allocation2 + $0x268] sm:$0x3] 0.0
    %2562 = vst [vmem:[#allocation2 + $0x270] sm:$0xff] 0.0
    %2563 = vst [vmem:[#allocation2 + $0x278] sm:$0xff] 0.0
    %2564 = vst [vmem:[#allocation2 + $0x280] sm:$0x3] 0.0
    %2565 = vst [vmem:[#allocation2 + $0x288] sm:$0xff] 0.0
    %2566 = vst [vmem:[#allocation2 + $0x290] sm:$0xff] 0.0
    %2567 = vst [vmem:[#allocation2 + $0x298] sm:$0x3] 0.0
    %2568 = vst [vmem:[#allocation2 + $0x2a0] sm:$0xff] 0.0
    %2569 = vst [vmem:[#allocation2 + $0x2a8] sm:$0xff] 0.0
    %2570 = vst [vmem:[#allocation2 + $0x2b0] sm:$0x3] 0.0
    %2571 = vst [vmem:[#allocation2 + $0x2b8] sm:$0xff] 0.0
    %2572 = vst [vmem:[#allocation2 + $0x2c0] sm:$0xff] 0.0
    %2573 = vst [vmem:[#allocation2 + $0x2c8] sm:$0x3] 0.0
    %2574 = vst [vmem:[#allocation2 + $0x2d0] sm:$0xff] 0.0
    %2575 = vst [vmem:[#allocation2 + $0x2d8] sm:$0xff] 0.0
    %2576 = vst [vmem:[#allocation2 + $0x2e0] sm:$0x3] 0.0
    %2577 = vst [vmem:[#allocation2 + $0x2e8] sm:$0xff] 0.0
    %2578 = vst [vmem:[#allocation2 + $0x2f0] sm:$0xff] 0.0
    %2579 = vst [vmem:[#allocation2 + $0x2f8] sm:$0x3] 0.0
    %2580 = vst [vmem:[#allocation2 + $0x300] sm:$0xff] 0.0
    %2581 = vst [vmem:[#allocation2 + $0x308] sm:$0xff] 0.0
    %2582 = vst [vmem:[#allocation2 + $0x310] sm:$0x3] 0.0
    %2583 = vst [vmem:[#allocation2 + $0x318] sm:$0xff] 0.0
    %2584 = vst [vmem:[#allocation2 + $0x320] sm:$0xff] 0.0
    %2585 = vst [vmem:[#allocation2 + $0x328] sm:$0x3] 0.0
    %2586 = vst [vmem:[#allocation2 + $0x330] sm:$0xff] 0.0
    %2587 = vst [vmem:[#allocation2 + $0x338] sm:$0xff] 0.0
    %2588 = vst [vmem:[#allocation2 + $0x340] sm:$0x3] 0.0
    %2589 = vst [vmem:[#allocation2 + $0x348] sm:$0xff] 0.0
    %2590 = vst [vmem:[#allocation2 + $0x350] sm:$0xff] 0.0
    %2591 = vst [vmem:[#allocation2 + $0x358] sm:$0x3] 0.0
    %s2592 = scalar_lea.vmem [#allocation2], 24
    %2593 = vst [vmem:[%s2592 + $0x1] sm:$0xff] %v2420
    %2594 = vst [vmem:[%s2592 + $0x9] sm:$0xff] %v2421
    %2595 = vst [vmem:[%s2592 + $0x19] sm:$0xff] %v2422
    %2596 = vst [vmem:[%s2592 + $0x21] sm:$0xff] %v2423
    %2597 = vst [vmem:[%s2592 + $0x31] sm:$0xff] %v2424
    %2598 = vst [vmem:[%s2592 + $0x39] sm:$0xff] %v2425
    %2599 = vst [vmem:[%s2592 + $0x49] sm:$0xff] %v2426
    %2600 = vst [vmem:[%s2592 + $0x51] sm:$0xff] %v2427
    %2601 = vst [vmem:[%s2592 + $0x61] sm:$0xff] %v2428
    %2602 = vst [vmem:[%s2592 + $0x69] sm:$0xff] %v2429
    %2603 = vst [vmem:[%s2592 + $0x79] sm:$0xff] %v2430
    %2604 = vst [vmem:[%s2592 + $0x81] sm:$0xff] %v2431
    %2605 = vst [vmem:[%s2592 + $0x91] sm:$0xff] %v2432
    %2606 = vst [vmem:[%s2592 + $0x99] sm:$0xff] %v2433
    %2607 = vst [vmem:[%s2592 + $0xa9] sm:$0xff] %v2434
    %2608 = vst [vmem:[%s2592 + $0xb1] sm:$0xff] %v2435
    %2609 = vst [vmem:[%s2592 + $0xc1] sm:$0xff] %v2436
    %2610 = vst [vmem:[%s2592 + $0xc9] sm:$0xff] %v2437
    %2611 = vst [vmem:[%s2592 + $0xd9] sm:$0xff] %v2438
    %2612 = vst [vmem:[%s2592 + $0xe1] sm:$0xff] %v2439
    %2613 = vst [vmem:[%s2592 + $0xf1] sm:$0xff] %v2440
    %2614 = vst [vmem:[%s2592 + $0xf9] sm:$0xff] %v2441
    %2615 = vst [vmem:[%s2592 + $0x109] sm:$0xff] %v2442
    %2616 = vst [vmem:[%s2592 + $0x111] sm:$0xff] %v2443
    %2617 = vst [vmem:[%s2592 + $0x121] sm:$0xff] %v2444
    %2618 = vst [vmem:[%s2592 + $0x129] sm:$0xff] %v2445
    %2619 = vst [vmem:[%s2592 + $0x139] sm:$0xff] %v2446
    %2620 = vst [vmem:[%s2592 + $0x141] sm:$0xff] %v2447
    %2621 = vst [vmem:[%s2592 + $0x151] sm:$0xff] %v2448
    %2622 = vst [vmem:[%s2592 + $0x159] sm:$0xff] %v2449
    %2623 = vst [vmem:[%s2592 + $0x169] sm:$0xff] %v2450
    %2624 = vst [vmem:[%s2592 + $0x171] sm:$0xff] %v2451
    %2625 = vst [vmem:[%s2592 + $0x1b1] sm:$0xff] %v2452
    %2626 = vst [vmem:[%s2592 + $0x1b9] sm:$0xff] %v2453
    %2627 = vst [vmem:[%s2592 + $0x1c9] sm:$0xff] %v2454
    %2628 = vst [vmem:[%s2592 + $0x1d1] sm:$0xff] %v2455
    %2629 = vst [vmem:[%s2592 + $0x1e1] sm:$0xff] %v2456
    %2630 = vst [vmem:[%s2592 + $0x1e9] sm:$0xff] %v2457
    %2631 = vst [vmem:[%s2592 + $0x1f9] sm:$0xff] %v2458
    %2632 = vst [vmem:[%s2592 + $0x201] sm:$0xff] %v2459
    %2633 = vst [vmem:[%s2592 + $0x211] sm:$0xff] %v2460
    %2634 = vst [vmem:[%s2592 + $0x219] sm:$0xff] %v2461
    %2635 = vst [vmem:[%s2592 + $0x229] sm:$0xff] %v2462
    %2636 = vst [vmem:[%s2592 + $0x231] sm:$0xff] %v2463
    %2637 = vst [vmem:[%s2592 + $0x241] sm:$0xff] %v2464
    %2638 = vst [vmem:[%s2592 + $0x249] sm:$0xff] %v2465
    %2639 = vst [vmem:[%s2592 + $0x259] sm:$0xff] %v2466
    %2640 = vst [vmem:[%s2592 + $0x261] sm:$0xff] %v2467
    %2641 = vst [vmem:[%s2592 + $0x271] sm:$0xff] %v2468
    %2642 = vst [vmem:[%s2592 + $0x279] sm:$0xff] %v2469
    %2643 = vst [vmem:[%s2592 + $0x289] sm:$0xff] %v2470
    %2644 = vst [vmem:[%s2592 + $0x291] sm:$0xff] %v2471
    %2645 = vst [vmem:[%s2592 + $0x2a1] sm:$0xff] %v2472
    %2646 = vst [vmem:[%s2592 + $0x2a9] sm:$0xff] %v2473
    %2647 = vst [vmem:[%s2592 + $0x2b9] sm:$0xff] %v2474
    %2648 = vst [vmem:[%s2592 + $0x2c1] sm:$0xff] %v2475
    %2649 = vst [vmem:[%s2592 + $0x2d1] sm:$0xff] %v2476
    %2650 = vst [vmem:[%s2592 + $0x2d9] sm:$0xff] %v2477
    %2651 = vst [vmem:[%s2592 + $0x2e9] sm:$0xff] %v2478
    %2652 = vst [vmem:[%s2592 + $0x2f1] sm:$0xff] %v2479
    %2653 = vst [vmem:[%s2592 + $0x301] sm:$0xff] %v2480
    %2654 = vst [vmem:[%s2592 + $0x309] sm:$0xff] %v2481
    %2655 = vst [vmem:[%s2592 + $0x319] sm:$0xff] %v2482
    %2656 = vst [vmem:[%s2592 + $0x321] sm:$0xff] %v2483
    %v2657 = vld [vmem:[#allocation2] sm:$0xff]
    %v2658 = vld [vmem:[#allocation2 + $0x8] sm:$0xff]
    %v2659 = vld [vmem:[#allocation2 + $0x18] sm:$0xff]
    %v2660 = vld [vmem:[#allocation2 + $0x20] sm:$0xff]
    %v2661 = vld [vmem:[#allocation2 + $0x30] sm:$0xff]
    %v2662 = vld [vmem:[#allocation2 + $0x38] sm:$0xff]
    %v2663 = vld [vmem:[#allocation2 + $0x48] sm:$0xff]
    %v2664 = vld [vmem:[#allocation2 + $0x50] sm:$0xff]
    %v2665 = vld [vmem:[#allocation2 + $0x60] sm:$0xff]
    %v2666 = vld [vmem:[#allocation2 + $0x68] sm:$0xff]
    %v2667 = vld [vmem:[#allocation2 + $0x78] sm:$0xff]
    %v2668 = vld [vmem:[#allocation2 + $0x80] sm:$0xff]
    %v2669 = vld [vmem:[#allocation2 + $0x90] sm:$0xff]
    %v2670 = vld [vmem:[#allocation2 + $0x98] sm:$0xff]
    %v2671 = vld [vmem:[#allocation2 + $0xa8] sm:$0xff]
    %v2672 = vld [vmem:[#allocation2 + $0xb0] sm:$0xff]
    %v2673 = vld [vmem:[#allocation2 + $0xc0] sm:$0xff]
    %v2674 = vld [vmem:[#allocation2 + $0xc8] sm:$0xff]
    %v2675 = vld [vmem:[#allocation2 + $0xd8] sm:$0xff]
    %v2676 = vld [vmem:[#allocation2 + $0xe0] sm:$0xff]
    %v2677 = vld [vmem:[#allocation2 + $0xf0] sm:$0xff]
    %v2678 = vld [vmem:[#allocation2 + $0xf8] sm:$0xff]
    %v2679 = vld [vmem:[#allocation2 + $0x108] sm:$0xff]
    %v2680 = vld [vmem:[#allocation2 + $0x110] sm:$0xff]
    %v2681 = vld [vmem:[#allocation2 + $0x120] sm:$0xff]
    %v2682 = vld [vmem:[#allocation2 + $0x128] sm:$0xff]
    %v2683 = vld [vmem:[#allocation2 + $0x138] sm:$0xff]
    %v2684 = vld [vmem:[#allocation2 + $0x140] sm:$0xff]
    %v2685 = vld [vmem:[#allocation2 + $0x150] sm:$0xff]
    %v2686 = vld [vmem:[#allocation2 + $0x158] sm:$0xff]
    %v2687 = vld [vmem:[#allocation2 + $0x168] sm:$0xff]
    %v2688 = vld [vmem:[#allocation2 + $0x170] sm:$0xff]
    %v2689 = vld [vmem:[#allocation2 + $0x180] sm:$0xff]
    %v2690 = vld [vmem:[#allocation2 + $0x188] sm:$0xff]
    %v2691 = vld [vmem:[#allocation2 + $0x198] sm:$0xff]
    %v2692 = vld [vmem:[#allocation2 + $0x1a0] sm:$0xff]
    %v2693 = vld [vmem:[#allocation2 + $0x1b0] sm:$0xff]
    %v2694 = vld [vmem:[#allocation2 + $0x1b8] sm:$0xff]
    %v2695 = vld [vmem:[#allocation2 + $0x1c8] sm:$0xff]
    %v2696 = vld [vmem:[#allocation2 + $0x1d0] sm:$0xff]
    %v2697 = vld [vmem:[#allocation2 + $0x1e0] sm:$0xff]
    %v2698 = vld [vmem:[#allocation2 + $0x1e8] sm:$0xff]
    %v2699 = vld [vmem:[#allocation2 + $0x1f8] sm:$0xff]
    %v2700 = vld [vmem:[#allocation2 + $0x200] sm:$0xff]
    %v2701 = vld [vmem:[#allocation2 + $0x210] sm:$0xff]
    %v2702 = vld [vmem:[#allocation2 + $0x218] sm:$0xff]
    %v2703 = vld [vmem:[#allocation2 + $0x228] sm:$0xff]
    %v2704 = vld [vmem:[#allocation2 + $0x230] sm:$0xff]
    %v2705 = vld [vmem:[#allocation2 + $0x240] sm:$0xff]
    %v2706 = vld [vmem:[#allocation2 + $0x248] sm:$0xff]
    %v2707 = vld [vmem:[#allocation2 + $0x258] sm:$0xff]
    %v2708 = vld [vmem:[#allocation2 + $0x260] sm:$0xff]
    %v2709 = vld [vmem:[#allocation2 + $0x270] sm:$0xff]
    %v2710 = vld [vmem:[#allocation2 + $0x278] sm:$0xff]
    %v2711 = vld [vmem:[#allocation2 + $0x288] sm:$0xff]
    %v2712 = vld [vmem:[#allocation2 + $0x290] sm:$0xff]
    %v2713 = vld [vmem:[#allocation2 + $0x2a0] sm:$0xff]
    %v2714 = vld [vmem:[#allocation2 + $0x2a8] sm:$0xff]
    %v2715 = vld [vmem:[#allocation2 + $0x2b8] sm:$0xff]
    %v2716 = vld [vmem:[#allocation2 + $0x2c0] sm:$0xff]
    %v2717 = vld [vmem:[#allocation2 + $0x2d0] sm:$0xff]
    %v2718 = vld [vmem:[#allocation2 + $0x2d8] sm:$0xff]
    %v2719 = vld [vmem:[#allocation2 + $0x2e8] sm:$0xff]
    %v2720 = vld [vmem:[#allocation2 + $0x2f0] sm:$0xff]
    %v2721 = vld [vmem:[#allocation2 + $0x300] sm:$0xff]
    %v2722 = vld [vmem:[#allocation2 + $0x308] sm:$0xff]
    %v2723 = vld [vmem:[#allocation2 + $0x318] sm:$0xff]
    %v2724 = vld [vmem:[#allocation2 + $0x320] sm:$0xff]
    %v2725 = vld [vmem:[#allocation2 + $0x330] sm:$0xff]
    %v2726 = vld [vmem:[#allocation2 + $0x338] sm:$0xff]
    %v2727 = vld [vmem:[#allocation2 + $0x348] sm:$0xff]
    %v2728 = vld [vmem:[#allocation2 + $0x350] sm:$0xff]
    %v2729 = vld [vmem:[#allocation2 + $0x1] sm:$0xff]
    %v2730 = vld [vmem:[#allocation2 + $0x9] sm:$0xff]
    %v2731 = vld [vmem:[#allocation2 + $0x19] sm:$0xff]
    %v2732 = vld [vmem:[#allocation2 + $0x21] sm:$0xff]
    %v2733 = vld [vmem:[#allocation2 + $0x31] sm:$0xff]
    %v2734 = vld [vmem:[#allocation2 + $0x39] sm:$0xff]
    %v2735 = vld [vmem:[#allocation2 + $0x49] sm:$0xff]
    %v2736 = vld [vmem:[#allocation2 + $0x51] sm:$0xff]
    %v2737 = vld [vmem:[#allocation2 + $0x61] sm:$0xff]
    %v2738 = vld [vmem:[#allocation2 + $0x69] sm:$0xff]
    %v2739 = vld [vmem:[#allocation2 + $0x79] sm:$0xff]
    %v2740 = vld [vmem:[#allocation2 + $0x81] sm:$0xff]
    %v2741 = vld [vmem:[#allocation2 + $0x91] sm:$0xff]
    %v2742 = vld [vmem:[#allocation2 + $0x99] sm:$0xff]
    %v2743 = vld [vmem:[#allocation2 + $0xa9] sm:$0xff]
    %v2744 = vld [vmem:[#allocation2 + $0xb1] sm:$0xff]
    %v2745 = vld [vmem:[#allocation2 + $0xc1] sm:$0xff]
    %v2746 = vld [vmem:[#allocation2 + $0xc9] sm:$0xff]
    %v2747 = vld [vmem:[#allocation2 + $0xd9] sm:$0xff]
    %v2748 = vld [vmem:[#allocation2 + $0xe1] sm:$0xff]
    %v2749 = vld [vmem:[#allocation2 + $0xf1] sm:$0xff]
    %v2750 = vld [vmem:[#allocation2 + $0xf9] sm:$0xff]
    %v2751 = vld [vmem:[#allocation2 + $0x109] sm:$0xff]
    %v2752 = vld [vmem:[#allocation2 + $0x111] sm:$0xff]
    %v2753 = vld [vmem:[#allocation2 + $0x121] sm:$0xff]
    %v2754 = vld [vmem:[#allocation2 + $0x129] sm:$0xff]
    %v2755 = vld [vmem:[#allocation2 + $0x139] sm:$0xff]
    %v2756 = vld [vmem:[#allocation2 + $0x141] sm:$0xff]
    %v2757 = vld [vmem:[#allocation2 + $0x151] sm:$0xff]
    %v2758 = vld [vmem:[#allocation2 + $0x159] sm:$0xff]
    %v2759 = vld [vmem:[#allocation2 + $0x169] sm:$0xff]
    %v2760 = vld [vmem:[#allocation2 + $0x171] sm:$0xff]
    %v2761 = vld [vmem:[#allocation2 + $0x181] sm:$0xff]
    %v2762 = vld [vmem:[#allocation2 + $0x189] sm:$0xff]
    %v2763 = vld [vmem:[#allocation2 + $0x199] sm:$0xff]
    %v2764 = vld [vmem:[#allocation2 + $0x1a1] sm:$0xff]
    %v2765 = vld [vmem:[#allocation2 + $0x1b1] sm:$0xff]
    %v2766 = vld [vmem:[#allocation2 + $0x1b9] sm:$0xff]
    %v2767 = vld [vmem:[#allocation2 + $0x1c9] sm:$0xff]
    %v2768 = vld [vmem:[#allocation2 + $0x1d1] sm:$0xff]
    %v2769 = vld [vmem:[#allocation2 + $0x1e1] sm:$0xff]
    %v2770 = vld [vmem:[#allocation2 + $0x1e9] sm:$0xff]
    %v2771 = vld [vmem:[#allocation2 + $0x1f9] sm:$0xff]
    %v2772 = vld [vmem:[#allocation2 + $0x201] sm:$0xff]
    %v2773 = vld [vmem:[#allocation2 + $0x211] sm:$0xff]
    %v2774 = vld [vmem:[#allocation2 + $0x219] sm:$0xff]
    %v2775 = vld [vmem:[#allocation2 + $0x229] sm:$0xff]
    %v2776 = vld [vmem:[#allocation2 + $0x231] sm:$0xff]
    %v2777 = vld [vmem:[#allocation2 + $0x241] sm:$0xff]
    %v2778 = vld [vmem:[#allocation2 + $0x249] sm:$0xff]
    %v2779 = vld [vmem:[#allocation2 + $0x259] sm:$0xff]
    %v2780 = vld [vmem:[#allocation2 + $0x261] sm:$0xff]
    %v2781 = vld [vmem:[#allocation2 + $0x271] sm:$0xff]
    %v2782 = vld [vmem:[#allocation2 + $0x279] sm:$0xff]
    %v2783 = vld [vmem:[#allocation2 + $0x289] sm:$0xff]
    %v2784 = vld [vmem:[#allocation2 + $0x291] sm:$0xff]
    %v2785 = vld [vmem:[#allocation2 + $0x2a1] sm:$0xff]
    %v2786 = vld [vmem:[#allocation2 + $0x2a9] sm:$0xff]
    %v2787 = vld [vmem:[#allocation2 + $0x2b9] sm:$0xff]
    %v2788 = vld [vmem:[#allocation2 + $0x2c1] sm:$0xff]
    %v2789 = vld [vmem:[#allocation2 + $0x2d1] sm:$0xff]
    %v2790 = vld [vmem:[#allocation2 + $0x2d9] sm:$0xff]
    %v2791 = vld [vmem:[#allocation2 + $0x2e9] sm:$0xff]
    %v2792 = vld [vmem:[#allocation2 + $0x2f1] sm:$0xff]
    %v2793 = vld [vmem:[#allocation2 + $0x301] sm:$0xff]
    %v2794 = vld [vmem:[#allocation2 + $0x309] sm:$0xff]
    %v2795 = vld [vmem:[#allocation2 + $0x319] sm:$0xff]
    %v2796 = vld [vmem:[#allocation2 + $0x321] sm:$0xff]
    %v2797 = vld [vmem:[#allocation2 + $0x331] sm:$0xff]
    %v2798 = vld [vmem:[#allocation2 + $0x339] sm:$0xff]
    %v2799 = vld [vmem:[#allocation2 + $0x349] sm:$0xff]
    %v2800 = vld [vmem:[#allocation2 + $0x351] sm:$0xff]
    %v2801 = vld [vmem:[#allocation2 + $0x2] sm:$0xff]
    %v2802 = vld [vmem:[#allocation2 + $0xa] sm:$0xff]
    %v2803 = vld [vmem:[#allocation2 + $0x1a] sm:$0xff]
    %v2804 = vld [vmem:[#allocation2 + $0x22] sm:$0xff]
    %v2805 = vld [vmem:[#allocation2 + $0x32] sm:$0xff]
    %v2806 = vld [vmem:[#allocation2 + $0x3a] sm:$0xff]
    %v2807 = vld [vmem:[#allocation2 + $0x4a] sm:$0xff]
    %v2808 = vld [vmem:[#allocation2 + $0x52] sm:$0xff]
    %v2809 = vld [vmem:[#allocation2 + $0x62] sm:$0xff]
    %v2810 = vld [vmem:[#allocation2 + $0x6a] sm:$0xff]
    %v2811 = vld [vmem:[#allocation2 + $0x7a] sm:$0xff]
    %v2812 = vld [vmem:[#allocation2 + $0x82] sm:$0xff]
    %v2813 = vld [vmem:[#allocation2 + $0x92] sm:$0xff]
    %v2814 = vld [vmem:[#allocation2 + $0x9a] sm:$0xff]
    %v2815 = vld [vmem:[#allocation2 + $0xaa] sm:$0xff]
    %v2816 = vld [vmem:[#allocation2 + $0xb2] sm:$0xff]
    %v2817 = vld [vmem:[#allocation2 + $0xc2] sm:$0xff]
    %v2818 = vld [vmem:[#allocation2 + $0xca] sm:$0xff]
    %v2819 = vld [vmem:[#allocation2 + $0xda] sm:$0xff]
    %v2820 = vld [vmem:[#allocation2 + $0xe2] sm:$0xff]
    %v2821 = vld [vmem:[#allocation2 + $0xf2] sm:$0xff]
    %v2822 = vld [vmem:[#allocation2 + $0xfa] sm:$0xff]
    %v2823 = vld [vmem:[#allocation2 + $0x10a] sm:$0xff]
    %v2824 = vld [vmem:[#allocation2 + $0x112] sm:$0xff]
    %v2825 = vld [vmem:[#allocation2 + $0x122] sm:$0xff]
    %v2826 = vld [vmem:[#allocation2 + $0x12a] sm:$0xff]
    %v2827 = vld [vmem:[#allocation2 + $0x13a] sm:$0xff]
    %v2828 = vld [vmem:[#allocation2 + $0x142] sm:$0xff]
    %v2829 = vld [vmem:[#allocation2 + $0x152] sm:$0xff]
    %v2830 = vld [vmem:[#allocation2 + $0x15a] sm:$0xff]
    %v2831 = vld [vmem:[#allocation2 + $0x16a] sm:$0xff]
    %v2832 = vld [vmem:[#allocation2 + $0x172] sm:$0xff]
    %v2833 = vld [vmem:[#allocation2 + $0x182] sm:$0xff]
    %v2834 = vld [vmem:[#allocation2 + $0x18a] sm:$0xff]
    %v2835 = vld [vmem:[#allocation2 + $0x19a] sm:$0xff]
    %v2836 = vld [vmem:[#allocation2 + $0x1a2] sm:$0xff]
    %v2837 = vld [vmem:[#allocation2 + $0x1b2] sm:$0xff]
    %v2838 = vld [vmem:[#allocation2 + $0x1ba] sm:$0xff]
    %v2839 = vld [vmem:[#allocation2 + $0x1ca] sm:$0xff]
    %v2840 = vld [vmem:[#allocation2 + $0x1d2] sm:$0xff]
    %v2841 = vld [vmem:[#allocation2 + $0x1e2] sm:$0xff]
    %v2842 = vld [vmem:[#allocation2 + $0x1ea] sm:$0xff]
    %v2843 = vld [vmem:[#allocation2 + $0x1fa] sm:$0xff]
    %v2844 = vld [vmem:[#allocation2 + $0x202] sm:$0xff]
    %v2845 = vld [vmem:[#allocation2 + $0x212] sm:$0xff]
    %v2846 = vld [vmem:[#allocation2 + $0x21a] sm:$0xff]
    %v2847 = vld [vmem:[#allocation2 + $0x22a] sm:$0xff]
    %v2848 = vld [vmem:[#allocation2 + $0x232] sm:$0xff]
    %v2849 = vld [vmem:[#allocation2 + $0x242] sm:$0xff]
    %v2850 = vld [vmem:[#allocation2 + $0x24a] sm:$0xff]
    %v2851 = vld [vmem:[#allocation2 + $0x25a] sm:$0xff]
    %v2852 = vld [vmem:[#allocation2 + $0x262] sm:$0xff]
    %v2853 = vld [vmem:[#allocation2 + $0x272] sm:$0xff]
    %v2854 = vld [vmem:[#allocation2 + $0x27a] sm:$0xff]
    %v2855 = vld [vmem:[#allocation2 + $0x28a] sm:$0xff]
    %v2856 = vld [vmem:[#allocation2 + $0x292] sm:$0xff]
    %v2857 = vld [vmem:[#allocation2 + $0x2a2] sm:$0xff]
    %v2858 = vld [vmem:[#allocation2 + $0x2aa] sm:$0xff]
    %v2859 = vld [vmem:[#allocation2 + $0x2ba] sm:$0xff]
    %v2860 = vld [vmem:[#allocation2 + $0x2c2] sm:$0xff]
    %v2861 = vld [vmem:[#allocation2 + $0x2d2] sm:$0xff]
    %v2862 = vld [vmem:[#allocation2 + $0x2da] sm:$0xff]
    %v2863 = vld [vmem:[#allocation2 + $0x2ea] sm:$0xff]
    %v2864 = vld [vmem:[#allocation2 + $0x2f2] sm:$0xff]
    %v2865 = vld [vmem:[#allocation2 + $0x302] sm:$0xff]
    %v2866 = vld [vmem:[#allocation2 + $0x30a] sm:$0xff]
    %v2867 = vld [vmem:[#allocation2 + $0x31a] sm:$0xff]
    %v2868 = vld [vmem:[#allocation2 + $0x322] sm:$0xff]
    %v2869 = vld [vmem:[#allocation2 + $0x332] sm:$0xff]
    %v2870 = vld [vmem:[#allocation2 + $0x33a] sm:$0xff]
    %v2871 = vld [vmem:[#allocation2 + $0x34a] sm:$0xff]
    %v2872 = vld [vmem:[#allocation2 + $0x352] sm:$0xff]
    %v2873 = vld [vmem:[#allocation3] sm:$0xff]
    %v2874 = vld [vmem:[#allocation3 + $0x8] sm:$0xff]
    %v2875 = vld [vmem:[#allocation3 + $0x10] sm:$0xff]
    %v2876 = vld [vmem:[#allocation3 + $0x18] sm:$0xff]
    %v2877 = vld [vmem:[#allocation3 + $0x20] sm:$0xff]
    %v2878 = vld [vmem:[#allocation3 + $0x28] sm:$0xff]
    %v2879 = vld [vmem:[#allocation3 + $0x30] sm:$0xff]
    %v2880 = vld [vmem:[#allocation3 + $0x38] sm:$0xff]
    %v2881 = vld [vmem:[#allocation3 + $0x40] sm:$0xff]
    %v2882 = vld [vmem:[#allocation3 + $0x48] sm:$0xff]
    %v2883 = vld [vmem:[#allocation3 + $0x50] sm:$0xff]
    %v2884 = vld [vmem:[#allocation3 + $0x58] sm:$0xff]
    %v2885 = vld [vmem:[#allocation3 + $0x60] sm:$0xff]
    %v2886 = vld [vmem:[#allocation3 + $0x68] sm:$0xff]
    %v2887 = vld [vmem:[#allocation3 + $0x70] sm:$0xff]
    %v2888 = vld [vmem:[#allocation3 + $0x78] sm:$0xff]
    %v2889 = vld [vmem:[#allocation3 + $0x80] sm:$0xff]
    %v2890 = vld [vmem:[#allocation3 + $0x88] sm:$0xff]
    %v2891 = vld [vmem:[#allocation3 + $0x90] sm:$0xff]
    %v2892 = vld [vmem:[#allocation3 + $0x98] sm:$0xff]
    %v2893 = vld [vmem:[#allocation3 + $0xa0] sm:$0xff]
    %v2894 = vld [vmem:[#allocation3 + $0xa8] sm:$0xff]
    %v2895 = vld [vmem:[#allocation3 + $0xb0] sm:$0xff]
    %v2896 = vld [vmem:[#allocation3 + $0xb8] sm:$0xff]
    %v2897 = vld [vmem:[#allocation3 + $0xc0] sm:$0xff]
    %v2898 = vld [vmem:[#allocation3 + $0xc8] sm:$0xff]
    %v2899 = vld [vmem:[#allocation3 + $0xd0] sm:$0xff]
    %v2900 = vld [vmem:[#allocation3 + $0xd8] sm:$0xff]
    %v2901 = vld [vmem:[#allocation3 + $0xe0] sm:$0xff]
    %v2902 = vld [vmem:[#allocation3 + $0xe8] sm:$0xff]
    %v2903 = vld [vmem:[#allocation3 + $0xf0] sm:$0xff]
    %v2904 = vld [vmem:[#allocation3 + $0xf8] sm:$0xff]
    %v2905 = vld [vmem:[#allocation3 + $0x100] sm:$0xff]
    %v2906 = vld [vmem:[#allocation3 + $0x108] sm:$0xff]
    %v2907 = vld [vmem:[#allocation3 + $0x110] sm:$0xff]
    %v2908 = vld [vmem:[#allocation3 + $0x118] sm:$0xff]
    %v2909 = vld [vmem:[#allocation3 + $0x120] sm:$0xff]
    %v2910 = vld [vmem:[#allocation3 + $0x128] sm:$0xff]
    %v2911 = vld [vmem:[#allocation3 + $0x130] sm:$0xff]
    %v2912 = vld [vmem:[#allocation3 + $0x138] sm:$0xff]
    %v2913 = vld [vmem:[#allocation3 + $0x140] sm:$0xff]
    %v2914 = vld [vmem:[#allocation3 + $0x148] sm:$0xff]
    %v2915 = vld [vmem:[#allocation3 + $0x150] sm:$0xff]
    %v2916 = vld [vmem:[#allocation3 + $0x158] sm:$0xff]
    %v2917 = vld [vmem:[#allocation3 + $0x160] sm:$0xff]
    %v2918 = vld [vmem:[#allocation3 + $0x168] sm:$0xff]
    %v2919 = vld [vmem:[#allocation3 + $0x170] sm:$0xff]
    %v2920 = vld [vmem:[#allocation3 + $0x178] sm:$0xff]
    %v2921 = vld [vmem:[#allocation3 + $0x180] sm:$0xff]
    %v2922 = vld [vmem:[#allocation3 + $0x188] sm:$0xff]
    %v2923 = vld [vmem:[#allocation3 + $0x190] sm:$0xff]
    %v2924 = vld [vmem:[#allocation3 + $0x198] sm:$0xff]
    %v2925 = vld [vmem:[#allocation3 + $0x1a0] sm:$0xff]
    %v2926 = vld [vmem:[#allocation3 + $0x1a8] sm:$0xff]
    %v2927 = vld [vmem:[#allocation3 + $0x1b0] sm:$0xff]
    %v2928 = vld [vmem:[#allocation3 + $0x1b8] sm:$0xff]
    %v2929 = vld [vmem:[#allocation3 + $0x1c0] sm:$0xff]
    %v2930 = vld [vmem:[#allocation3 + $0x1c8] sm:$0xff]
    %v2931 = vld [vmem:[#allocation3 + $0x1d0] sm:$0xff]
    %v2932 = vld [vmem:[#allocation3 + $0x1d8] sm:$0xff]
    %v2933 = vld [vmem:[#allocation3 + $0x1e0] sm:$0xff]
    %v2934 = vld [vmem:[#allocation3 + $0x1e8] sm:$0xff]
    %v2935 = vld [vmem:[#allocation3 + $0x1f0] sm:$0xff]
    %v2936 = vld [vmem:[#allocation3 + $0x1f8] sm:$0xff]
    %v2937 = vld [vmem:[#allocation3 + $0x200] sm:$0xff]
    %v2938 = vld [vmem:[#allocation3 + $0x208] sm:$0xff]
    %v2939 = vld [vmem:[#allocation3 + $0x210] sm:$0xff]
    %v2940 = vld [vmem:[#allocation3 + $0x218] sm:$0xff]
    %v2941 = vld [vmem:[#allocation3 + $0x220] sm:$0xff]
    %v2942 = vld [vmem:[#allocation3 + $0x228] sm:$0xff]
    %v2943 = vld [vmem:[#allocation3 + $0x230] sm:$0xff]
    %v2944 = vld [vmem:[#allocation3 + $0x238] sm:$0xff]
    %v2945 = vld [vmem:[#allocation3 + $0x240] sm:$0xff]
    %v2946 = vld [vmem:[#allocation3 + $0x248] sm:$0xff]
    %v2947 = vld [vmem:[#allocation3 + $0x250] sm:$0xff]
    %v2948 = vld [vmem:[#allocation3 + $0x258] sm:$0xff]
    %v2949 = vld [vmem:[#allocation3 + $0x260] sm:$0xff]
    %v2950 = vld [vmem:[#allocation3 + $0x268] sm:$0xff]
    %v2951 = vld [vmem:[#allocation3 + $0x270] sm:$0xff]
    %v2952 = vld [vmem:[#allocation3 + $0x278] sm:$0xff]
    %v2953 = vld [vmem:[#allocation3 + $0x280] sm:$0xff]
    %v2954 = vld [vmem:[#allocation3 + $0x288] sm:$0xff]
    %v2955 = vld [vmem:[#allocation3 + $0x290] sm:$0xff]
    %v2956 = vld [vmem:[#allocation3 + $0x298] sm:$0xff]
    %v2957 = vld [vmem:[#allocation3 + $0x2a0] sm:$0xff]
    %v2958 = vld [vmem:[#allocation3 + $0x2a8] sm:$0xff]
    %v2959 = vld [vmem:[#allocation3 + $0x2b0] sm:$0xff]
    %v2960 = vld [vmem:[#allocation3 + $0x2b8] sm:$0xff]
    %v2961 = vld [vmem:[#allocation3 + $0x2c0] sm:$0xff]
    %v2962 = vld [vmem:[#allocation3 + $0x2c8] sm:$0xff]
    %v2963 = vld [vmem:[#allocation3 + $0x2d0] sm:$0xff]
    %v2964 = vld [vmem:[#allocation3 + $0x2d8] sm:$0xff]
    %v2965 = vld [vmem:[#allocation3 + $0x2e0] sm:$0xff]
    %v2966 = vld [vmem:[#allocation3 + $0x2e8] sm:$0xff]
    %v2967 = vld [vmem:[#allocation3 + $0x2f0] sm:$0xff]
    %v2968 = vld [vmem:[#allocation3 + $0x2f8] sm:$0xff]
    %v2969 = vld [vmem:[#allocation3 + $0x300] sm:$0xff]
    %v2970 = vld [vmem:[#allocation3 + $0x308] sm:$0xff]
    %v2971 = vld [vmem:[#allocation3 + $0x310] sm:$0xff]
    %v2972 = vld [vmem:[#allocation3 + $0x318] sm:$0xff]
    %v2973 = vld [vmem:[#allocation3 + $0x320] sm:$0xff]
    %v2974 = vld [vmem:[#allocation3 + $0x328] sm:$0xff]
    %v2975 = vld [vmem:[#allocation3 + $0x330] sm:$0xff]
    %v2976 = vld [vmem:[#allocation3 + $0x338] sm:$0xff]
    %v2977 = vld [vmem:[#allocation3 + $0x340] sm:$0xff]
    %v2978 = vld [vmem:[#allocation3 + $0x348] sm:$0xff]
    %v2979 = vld [vmem:[#allocation3 + $0x350] sm:$0xff]
    %v2980 = vld [vmem:[#allocation3 + $0x358] sm:$0xff]
    %v2981 = vld [vmem:[#allocation3 + $0x360] sm:$0xff]
    %v2982 = vld [vmem:[#allocation3 + $0x368] sm:$0xff]
    %v2983 = vld [vmem:[#allocation3 + $0x370] sm:$0xff]
    %v2984 = vld [vmem:[#allocation3 + $0x378] sm:$0xff]
    %v2985 = vld [vmem:[#allocation3 + $0x380] sm:$0xff]
    %v2986 = vld [vmem:[#allocation3 + $0x388] sm:$0xff]
    %v2987 = vld [vmem:[#allocation3 + $0x390] sm:$0xff]
    %v2988 = vld [vmem:[#allocation3 + $0x398] sm:$0xff]
    %v2989 = vld [vmem:[#allocation3 + $0x3a0] sm:$0xff]
    %v2990 = vld [vmem:[#allocation3 + $0x3a8] sm:$0xff]
    %v2991 = vld [vmem:[#allocation3 + $0x3b0] sm:$0xff]
    %v2992 = vld [vmem:[#allocation3 + $0x3b8] sm:$0xff]
    %v2993 = vld [vmem:[#allocation3 + $0x3c0] sm:$0xff]
    %v2994 = vld [vmem:[#allocation3 + $0x3c8] sm:$0xff]
    %v2995 = vld [vmem:[#allocation3 + $0x3d0] sm:$0xff]
    %v2996 = vld [vmem:[#allocation3 + $0x3d8] sm:$0xff]
    %v2997 = vld [vmem:[#allocation3 + $0x3e0] sm:$0xff]
    %v2998 = vld [vmem:[#allocation3 + $0x3e8] sm:$0xff]
    %v2999 = vld [vmem:[#allocation3 + $0x3f0] sm:$0xff]
    %v3000 = vld [vmem:[#allocation3 + $0x3f8] sm:$0xff]
    %v3001 = vld [vmem:[#allocation3 + $0x400] sm:$0xff]
    %v3002 = vld [vmem:[#allocation3 + $0x408] sm:$0xff]
    %v3003 = vld [vmem:[#allocation3 + $0x410] sm:$0xff]
    %v3004 = vld [vmem:[#allocation3 + $0x418] sm:$0xff]
    %v3005 = vld [vmem:[#allocation3 + $0x420] sm:$0xff]
    %v3006 = vld [vmem:[#allocation3 + $0x428] sm:$0xff]
    %v3007 = vld [vmem:[#allocation3 + $0x430] sm:$0xff]
    %v3008 = vld [vmem:[#allocation3 + $0x438] sm:$0xff]
    %v3009 = vld [vmem:[#allocation3 + $0x440] sm:$0xff]
    %v3010 = vld [vmem:[#allocation3 + $0x448] sm:$0xff]
    %v3011 = vld [vmem:[#allocation3 + $0x450] sm:$0xff]
    %v3012 = vld [vmem:[#allocation3 + $0x458] sm:$0xff]
    %v3013 = vld [vmem:[#allocation3 + $0x460] sm:$0xff]
    %v3014 = vld [vmem:[#allocation3 + $0x468] sm:$0xff]
    %v3015 = vld [vmem:[#allocation3 + $0x470] sm:$0xff]
    %v3016 = vld [vmem:[#allocation3 + $0x478] sm:$0xff]
    %3017 = vmatpush.msra.mxu0 %v2888
    %3018 = vmatpush.msra.mxu0 %v2887
    %3019 = vmatpush.msra.mxu0 %v2886
    %3020 = vmatpush.msra.mxu0 %v2885
    %3021 = vmatpush.msra.mxu0 %v2884
    %3022 = vmatpush.msra.mxu0 %v2883
    %3023 = vmatpush.msra.mxu0 %v2882
    %3024 = vmatpush.msra.mxu0 %v2881
    %3025 = vmatpush.msra.mxu0 %v2880
    %3026 = vmatpush.msra.mxu0 %v2879
    %3027 = vmatpush.msra.mxu0 %v2878
    %3028 = vmatpush.msra.mxu0 %v2877
    %3029 = vmatpush.msra.mxu0 %v2876
    %3030 = vmatpush.msra.mxu0 %v2875
    %3031 = vmatpush.msra.mxu0 %v2874
    %3032 = vmatpush.msra.mxu0 %v2873
    %3033 = vmatmul.f32.gmra.mxu0 %v2657
    %v3034 = vpop.f32.mrf.mxu0
    %v3035 = vadd.f32 0.0, %v3034
    %3036 = vmatmul.f32.gmra.mxu0 %v2658
    %v3037 = vpop.f32.mrf.mxu0
    %v3038 = vadd.f32 0.0, %v3037
    %3039 = vmatmul.f32.gmra.mxu0 %v2659
    %v3040 = vpop.f32.mrf.mxu0
    %v3041 = vadd.f32 0.0, %v3040
    %3042 = vmatmul.f32.gmra.mxu0 %v2660
    %v3043 = vpop.f32.mrf.mxu0
    %v3044 = vadd.f32 0.0, %v3043
    %3045 = vmatmul.f32.gmra.mxu0 %v2661
    %v3046 = vpop.f32.mrf.mxu0
    %v3047 = vadd.f32 0.0, %v3046
    %3048 = vmatmul.f32.gmra.mxu0 %v2662
    %v3049 = vpop.f32.mrf.mxu0
    %v3050 = vadd.f32 0.0, %v3049
    %3051 = vmatmul.f32.gmra.mxu0 %v2663
    %v3052 = vpop.f32.mrf.mxu0
    %v3053 = vadd.f32 0.0, %v3052
    %3054 = vmatmul.f32.gmra.mxu0 %v2664
    %v3055 = vpop.f32.mrf.mxu0
    %v3056 = vadd.f32 0.0, %v3055
    %3057 = vmatmul.f32.gmra.mxu0 %v2665
    %v3058 = vpop.f32.mrf.mxu0
    %v3059 = vadd.f32 0.0, %v3058
    %3060 = vmatmul.f32.gmra.mxu0 %v2666
    %v3061 = vpop.f32.mrf.mxu0
    %v3062 = vadd.f32 0.0, %v3061
    %3063 = vmatmul.f32.gmra.mxu0 %v2667
    %v3064 = vpop.f32.mrf.mxu0
    %v3065 = vadd.f32 0.0, %v3064
    %3066 = vmatmul.f32.gmra.mxu0 %v2668
    %v3067 = vpop.f32.mrf.mxu0
    %v3068 = vadd.f32 0.0, %v3067
    %3069 = vmatmul.f32.gmra.mxu0 %v2669
    %v3070 = vpop.f32.mrf.mxu0
    %v3071 = vadd.f32 0.0, %v3070
    %3072 = vmatmul.f32.gmra.mxu0 %v2670
    %v3073 = vpop.f32.mrf.mxu0
    %v3074 = vadd.f32 0.0, %v3073
    %3075 = vmatmul.f32.gmra.mxu0 %v2671
    %v3076 = vpop.f32.mrf.mxu0
    %v3077 = vadd.f32 0.0, %v3076
    %3078 = vmatmul.f32.gmra.mxu0 %v2672
    %v3079 = vpop.f32.mrf.mxu0
    %v3080 = vadd.f32 0.0, %v3079
    %3081 = vmatmul.f32.gmra.mxu0 %v2673
    %v3082 = vpop.f32.mrf.mxu0
    %v3083 = vadd.f32 0.0, %v3082
    %3084 = vmatmul.f32.gmra.mxu0 %v2674
    %v3085 = vpop.f32.mrf.mxu0
    %v3086 = vadd.f32 0.0, %v3085
    %3087 = vmatmul.f32.gmra.mxu0 %v2675
    %v3088 = vpop.f32.mrf.mxu0
    %v3089 = vadd.f32 0.0, %v3088
    %3090 = vmatmul.f32.gmra.mxu0 %v2676
    %v3091 = vpop.f32.mrf.mxu0
    %v3092 = vadd.f32 0.0, %v3091
    %3093 = vmatmul.f32.gmra.mxu0 %v2677
    %v3094 = vpop.f32.mrf.mxu0
    %v3095 = vadd.f32 0.0, %v3094
    %3096 = vmatmul.f32.gmra.mxu0 %v2678
    %v3097 = vpop.f32.mrf.mxu0
    %v3098 = vadd.f32 0.0, %v3097
    %3099 = vmatmul.f32.gmra.mxu0 %v2679
    %v3100 = vpop.f32.mrf.mxu0
    %v3101 = vadd.f32 0.0, %v3100
    %3102 = vmatmul.f32.gmra.mxu0 %v2680
    %v3103 = vpop.f32.mrf.mxu0
    %v3104 = vadd.f32 0.0, %v3103
    %3105 = vmatmul.f32.gmra.mxu0 %v2681
    %v3106 = vpop.f32.mrf.mxu0
    %v3107 = vadd.f32 0.0, %v3106
    %3108 = vmatmul.f32.gmra.mxu0 %v2682
    %v3109 = vpop.f32.mrf.mxu0
    %v3110 = vadd.f32 0.0, %v3109
    %3111 = vmatmul.f32.gmra.mxu0 %v2683
    %v3112 = vpop.f32.mrf.mxu0
    %v3113 = vadd.f32 0.0, %v3112
    %3114 = vmatmul.f32.gmra.mxu0 %v2684
    %v3115 = vpop.f32.mrf.mxu0
    %v3116 = vadd.f32 0.0, %v3115
    %3117 = vmatmul.f32.gmra.mxu0 %v2685
    %v3118 = vpop.f32.mrf.mxu0
    %v3119 = vadd.f32 0.0, %v3118
    %3120 = vmatmul.f32.gmra.mxu0 %v2686
    %v3121 = vpop.f32.mrf.mxu0
    %v3122 = vadd.f32 0.0, %v3121
    %3123 = vmatmul.f32.gmra.mxu0 %v2687
    %v3124 = vpop.f32.mrf.mxu0
    %v3125 = vadd.f32 0.0, %v3124
    %3126 = vmatmul.f32.gmra.mxu0 %v2688
    %v3127 = vpop.f32.mrf.mxu0
    %v3128 = vadd.f32 0.0, %v3127
    %3129 = vmatmul.f32.gmra.mxu0 %v2693
    %v3130 = vpop.f32.mrf.mxu0
    %v3131 = vadd.f32 0.0, %v3130
    %3132 = vmatmul.f32.gmra.mxu0 %v2694
    %v3133 = vpop.f32.mrf.mxu0
    %v3134 = vadd.f32 0.0, %v3133
    %3135 = vmatmul.f32.gmra.mxu0 %v2695
    %v3136 = vpop.f32.mrf.mxu0
    %v3137 = vadd.f32 0.0, %v3136
    %3138 = vmatmul.f32.gmra.mxu0 %v2696
    %v3139 = vpop.f32.mrf.mxu0
    %v3140 = vadd.f32 0.0, %v3139
    %3141 = vmatmul.f32.gmra.mxu0 %v2697
    %v3142 = vpop.f32.mrf.mxu0
    %v3143 = vadd.f32 0.0, %v3142
    %3144 = vmatmul.f32.gmra.mxu0 %v2698
    %v3145 = vpop.f32.mrf.mxu0
    %v3146 = vadd.f32 0.0, %v3145
    %3147 = vmatmul.f32.gmra.mxu0 %v2699
    %v3148 = vpop.f32.mrf.mxu0
    %v3149 = vadd.f32 0.0, %v3148
    %3150 = vmatmul.f32.gmra.mxu0 %v2700
    %v3151 = vpop.f32.mrf.mxu0
    %v3152 = vadd.f32 0.0, %v3151
    %3153 = vmatmul.f32.gmra.mxu0 %v2701
    %v3154 = vpop.f32.mrf.mxu0
    %v3155 = vadd.f32 0.0, %v3154
    %3156 = vmatmul.f32.gmra.mxu0 %v2702
    %v3157 = vpop.f32.mrf.mxu0
    %v3158 = vadd.f32 0.0, %v3157
    %3159 = vmatmul.f32.gmra.mxu0 %v2703
    %v3160 = vpop.f32.mrf.mxu0
    %v3161 = vadd.f32 0.0, %v3160
    %3162 = vmatmul.f32.gmra.mxu0 %v2704
    %v3163 = vpop.f32.mrf.mxu0
    %v3164 = vadd.f32 0.0, %v3163
    %3165 = vmatmul.f32.gmra.mxu0 %v2705
    %v3166 = vpop.f32.mrf.mxu0
    %v3167 = vadd.f32 0.0, %v3166
    %3168 = vmatmul.f32.gmra.mxu0 %v2706
    %v3169 = vpop.f32.mrf.mxu0
    %v3170 = vadd.f32 0.0, %v3169
    %3171 = vmatmul.f32.gmra.mxu0 %v2707
    %v3172 = vpop.f32.mrf.mxu0
    %v3173 = vadd.f32 0.0, %v3172
    %3174 = vmatmul.f32.gmra.mxu0 %v2708
    %v3175 = vpop.f32.mrf.mxu0
    %v3176 = vadd.f32 0.0, %v3175
    %3177 = vmatmul.f32.gmra.mxu0 %v2709
    %v3178 = vpop.f32.mrf.mxu0
    %v3179 = vadd.f32 0.0, %v3178
    %3180 = vmatmul.f32.gmra.mxu0 %v2710
    %v3181 = vpop.f32.mrf.mxu0
    %v3182 = vadd.f32 0.0, %v3181
    %3183 = vmatmul.f32.gmra.mxu0 %v2711
    %v3184 = vpop.f32.mrf.mxu0
    %v3185 = vadd.f32 0.0, %v3184
    %3186 = vmatmul.f32.gmra.mxu0 %v2712
    %v3187 = vpop.f32.mrf.mxu0
    %v3188 = vadd.f32 0.0, %v3187
    %3189 = vmatmul.f32.gmra.mxu0 %v2713
    %v3190 = vpop.f32.mrf.mxu0
    %v3191 = vadd.f32 0.0, %v3190
    %3192 = vmatmul.f32.gmra.mxu0 %v2714
    %v3193 = vpop.f32.mrf.mxu0
    %v3194 = vadd.f32 0.0, %v3193
    %3195 = vmatmul.f32.gmra.mxu0 %v2715
    %v3196 = vpop.f32.mrf.mxu0
    %v3197 = vadd.f32 0.0, %v3196
    %3198 = vmatmul.f32.gmra.mxu0 %v2716
    %v3199 = vpop.f32.mrf.mxu0
    %v3200 = vadd.f32 0.0, %v3199
    %3201 = vmatmul.f32.gmra.mxu0 %v2717
    %v3202 = vpop.f32.mrf.mxu0
    %v3203 = vadd.f32 0.0, %v3202
    %3204 = vmatmul.f32.gmra.mxu0 %v2718
    %v3205 = vpop.f32.mrf.mxu0
    %v3206 = vadd.f32 0.0, %v3205
    %3207 = vmatmul.f32.gmra.mxu0 %v2719
    %v3208 = vpop.f32.mrf.mxu0
    %v3209 = vadd.f32 0.0, %v3208
    %3210 = vmatmul.f32.gmra.mxu0 %v2720
    %v3211 = vpop.f32.mrf.mxu0
    %v3212 = vadd.f32 0.0, %v3211
    %3213 = vmatmul.f32.gmra.mxu0 %v2721
    %v3214 = vpop.f32.mrf.mxu0
    %v3215 = vadd.f32 0.0, %v3214
    %3216 = vmatmul.f32.gmra.mxu0 %v2722
    %v3217 = vpop.f32.mrf.mxu0
    %v3218 = vadd.f32 0.0, %v3217
    %3219 = vmatmul.f32.gmra.mxu0 %v2723
    %v3220 = vpop.f32.mrf.mxu0
    %v3221 = vadd.f32 0.0, %v3220
    %3222 = vmatmul.f32.gmra.mxu0 %v2724
    %v3223 = vpop.f32.mrf.mxu0
    %v3224 = vadd.f32 0.0, %v3223
    %3225 = vdwg.mxu0
    %3226 = vmatpush.msra.mxu0 %v2904
    %3227 = vmatpush.msra.mxu0 %v2903
    %3228 = vmatpush.msra.mxu0 %v2902
    %3229 = vmatpush.msra.mxu0 %v2901
    %3230 = vmatpush.msra.mxu0 %v2900
    %3231 = vmatpush.msra.mxu0 %v2899
    %3232 = vmatpush.msra.mxu0 %v2898
    %3233 = vmatpush.msra.mxu0 %v2897
    %3234 = vmatpush.msra.mxu0 %v2896
    %3235 = vmatpush.msra.mxu0 %v2895
    %3236 = vmatpush.msra.mxu0 %v2894
    %3237 = vmatpush.msra.mxu0 %v2893
    %3238 = vmatpush.msra.mxu0 %v2892
    %3239 = vmatpush.msra.mxu0 %v2891
    %3240 = vmatpush.msra.mxu0 %v2890
    %3241 = vmatpush.msra.mxu0 %v2889
    %3242 = vmatmul.f32.gmra.mxu0 %v2729
    %v3243 = vpop.f32.mrf.mxu0
    %v3244 = vadd.f32 %v3035, %v3243
    %3245 = vmatmul.f32.gmra.mxu0 %v2730
    %v3246 = vpop.f32.mrf.mxu0
    %v3247 = vadd.f32 %v3038, %v3246
    %3248 = vmatmul.f32.gmra.mxu0 %v2731
    %v3249 = vpop.f32.mrf.mxu0
    %v3250 = vadd.f32 %v3041, %v3249
    %3251 = vmatmul.f32.gmra.mxu0 %v2732
    %v3252 = vpop.f32.mrf.mxu0
    %v3253 = vadd.f32 %v3044, %v3252
    %3254 = vmatmul.f32.gmra.mxu0 %v2733
    %v3255 = vpop.f32.mrf.mxu0
    %v3256 = vadd.f32 %v3047, %v3255
    %3257 = vmatmul.f32.gmra.mxu0 %v2734
    %v3258 = vpop.f32.mrf.mxu0
    %v3259 = vadd.f32 %v3050, %v3258
    %3260 = vmatmul.f32.gmra.mxu0 %v2735
    %v3261 = vpop.f32.mrf.mxu0
    %v3262 = vadd.f32 %v3053, %v3261
    %3263 = vmatmul.f32.gmra.mxu0 %v2736
    %v3264 = vpop.f32.mrf.mxu0
    %v3265 = vadd.f32 %v3056, %v3264
    %3266 = vmatmul.f32.gmra.mxu0 %v2737
    %v3267 = vpop.f32.mrf.mxu0
    %v3268 = vadd.f32 %v3059, %v3267
    %3269 = vmatmul.f32.gmra.mxu0 %v2738
    %v3270 = vpop.f32.mrf.mxu0
    %v3271 = vadd.f32 %v3062, %v3270
    %3272 = vmatmul.f32.gmra.mxu0 %v2739
    %v3273 = vpop.f32.mrf.mxu0
    %v3274 = vadd.f32 %v3065, %v3273
    %3275 = vmatmul.f32.gmra.mxu0 %v2740
    %v3276 = vpop.f32.mrf.mxu0
    %v3277 = vadd.f32 %v3068, %v3276
    %3278 = vmatmul.f32.gmra.mxu0 %v2741
    %v3279 = vpop.f32.mrf.mxu0
    %v3280 = vadd.f32 %v3071, %v3279
    %3281 = vmatmul.f32.gmra.mxu0 %v2742
    %v3282 = vpop.f32.mrf.mxu0
    %v3283 = vadd.f32 %v3074, %v3282
    %3284 = vmatmul.f32.gmra.mxu0 %v2743
    %v3285 = vpop.f32.mrf.mxu0
    %v3286 = vadd.f32 %v3077, %v3285
    %3287 = vmatmul.f32.gmra.mxu0 %v2744
    %v3288 = vpop.f32.mrf.mxu0
    %v3289 = vadd.f32 %v3080, %v3288
    %3290 = vmatmul.f32.gmra.mxu0 %v2745
    %v3291 = vpop.f32.mrf.mxu0
    %v3292 = vadd.f32 %v3083, %v3291
    %3293 = vmatmul.f32.gmra.mxu0 %v2746
    %v3294 = vpop.f32.mrf.mxu0
    %v3295 = vadd.f32 %v3086, %v3294
    %3296 = vmatmul.f32.gmra.mxu0 %v2747
    %v3297 = vpop.f32.mrf.mxu0
    %v3298 = vadd.f32 %v3089, %v3297
    %3299 = vmatmul.f32.gmra.mxu0 %v2748
    %v3300 = vpop.f32.mrf.mxu0
    %v3301 = vadd.f32 %v3092, %v3300
    %3302 = vmatmul.f32.gmra.mxu0 %v2749
    %v3303 = vpop.f32.mrf.mxu0
    %v3304 = vadd.f32 %v3095, %v3303
    %3305 = vmatmul.f32.gmra.mxu0 %v2750
    %v3306 = vpop.f32.mrf.mxu0
    %v3307 = vadd.f32 %v3098, %v3306
    %3308 = vmatmul.f32.gmra.mxu0 %v2751
    %v3309 = vpop.f32.mrf.mxu0
    %v3310 = vadd.f32 %v3101, %v3309
    %3311 = vmatmul.f32.gmra.mxu0 %v2752
    %v3312 = vpop.f32.mrf.mxu0
    %v3313 = vadd.f32 %v3104, %v3312
    %3314 = vmatmul.f32.gmra.mxu0 %v2753
    %v3315 = vpop.f32.mrf.mxu0
    %v3316 = vadd.f32 %v3107, %v3315
    %3317 = vmatmul.f32.gmra.mxu0 %v2754
    %v3318 = vpop.f32.mrf.mxu0
    %v3319 = vadd.f32 %v3110, %v3318
    %3320 = vmatmul.f32.gmra.mxu0 %v2755
    %v3321 = vpop.f32.mrf.mxu0
    %v3322 = vadd.f32 %v3113, %v3321
    %3323 = vmatmul.f32.gmra.mxu0 %v2756
    %v3324 = vpop.f32.mrf.mxu0
    %v3325 = vadd.f32 %v3116, %v3324
    %3326 = vmatmul.f32.gmra.mxu0 %v2757
    %v3327 = vpop.f32.mrf.mxu0
    %v3328 = vadd.f32 %v3119, %v3327
    %3329 = vmatmul.f32.gmra.mxu0 %v2758
    %v3330 = vpop.f32.mrf.mxu0
    %v3331 = vadd.f32 %v3122, %v3330
    %3332 = vmatmul.f32.gmra.mxu0 %v2759
    %v3333 = vpop.f32.mrf.mxu0
    %v3334 = vadd.f32 %v3125, %v3333
    %3335 = vmatmul.f32.gmra.mxu0 %v2760
    %v3336 = vpop.f32.mrf.mxu0
    %v3337 = vadd.f32 %v3128, %v3336
    %3338 = vmatmul.f32.gmra.mxu0 %v2765
    %v3339 = vpop.f32.mrf.mxu0
    %v3340 = vadd.f32 %v3131, %v3339
    %3341 = vmatmul.f32.gmra.mxu0 %v2766
    %v3342 = vpop.f32.mrf.mxu0
    %v3343 = vadd.f32 %v3134, %v3342
    %3344 = vmatmul.f32.gmra.mxu0 %v2767
    %v3345 = vpop.f32.mrf.mxu0
    %v3346 = vadd.f32 %v3137, %v3345
    %3347 = vmatmul.f32.gmra.mxu0 %v2768
    %v3348 = vpop.f32.mrf.mxu0
    %v3349 = vadd.f32 %v3140, %v3348
    %3350 = vmatmul.f32.gmra.mxu0 %v2769
    %v3351 = vpop.f32.mrf.mxu0
    %v3352 = vadd.f32 %v3143, %v3351
    %3353 = vmatmul.f32.gmra.mxu0 %v2770
    %v3354 = vpop.f32.mrf.mxu0
    %v3355 = vadd.f32 %v3146, %v3354
    %3356 = vmatmul.f32.gmra.mxu0 %v2771
    %v3357 = vpop.f32.mrf.mxu0
    %v3358 = vadd.f32 %v3149, %v3357
    %3359 = vmatmul.f32.gmra.mxu0 %v2772
    %v3360 = vpop.f32.mrf.mxu0
    %v3361 = vadd.f32 %v3152, %v3360
    %3362 = vmatmul.f32.gmra.mxu0 %v2773
    %v3363 = vpop.f32.mrf.mxu0
    %v3364 = vadd.f32 %v3155, %v3363
    %3365 = vmatmul.f32.gmra.mxu0 %v2774
    %v3366 = vpop.f32.mrf.mxu0
    %v3367 = vadd.f32 %v3158, %v3366
    %3368 = vmatmul.f32.gmra.mxu0 %v2775
    %v3369 = vpop.f32.mrf.mxu0
    %v3370 = vadd.f32 %v3161, %v3369
    %3371 = vmatmul.f32.gmra.mxu0 %v2776
    %v3372 = vpop.f32.mrf.mxu0
    %v3373 = vadd.f32 %v3164, %v3372
    %3374 = vmatmul.f32.gmra.mxu0 %v2777
    %v3375 = vpop.f32.mrf.mxu0
    %v3376 = vadd.f32 %v3167, %v3375
    %3377 = vmatmul.f32.gmra.mxu0 %v2778
    %v3378 = vpop.f32.mrf.mxu0
    %v3379 = vadd.f32 %v3170, %v3378
    %3380 = vmatmul.f32.gmra.mxu0 %v2779
    %v3381 = vpop.f32.mrf.mxu0
    %v3382 = vadd.f32 %v3173, %v3381
    %3383 = vmatmul.f32.gmra.mxu0 %v2780
    %v3384 = vpop.f32.mrf.mxu0
    %v3385 = vadd.f32 %v3176, %v3384
    %3386 = vmatmul.f32.gmra.mxu0 %v2781
    %v3387 = vpop.f32.mrf.mxu0
    %v3388 = vadd.f32 %v3179, %v3387
    %3389 = vmatmul.f32.gmra.mxu0 %v2782
    %v3390 = vpop.f32.mrf.mxu0
    %v3391 = vadd.f32 %v3182, %v3390
    %3392 = vmatmul.f32.gmra.mxu0 %v2783
    %v3393 = vpop.f32.mrf.mxu0
    %v3394 = vadd.f32 %v3185, %v3393
    %3395 = vmatmul.f32.gmra.mxu0 %v2784
    %v3396 = vpop.f32.mrf.mxu0
    %v3397 = vadd.f32 %v3188, %v3396
    %3398 = vmatmul.f32.gmra.mxu0 %v2785
    %v3399 = vpop.f32.mrf.mxu0
    %v3400 = vadd.f32 %v3191, %v3399
    %3401 = vmatmul.f32.gmra.mxu0 %v2786
    %v3402 = vpop.f32.mrf.mxu0
    %v3403 = vadd.f32 %v3194, %v3402
    %3404 = vmatmul.f32.gmra.mxu0 %v2787
    %v3405 = vpop.f32.mrf.mxu0
    %v3406 = vadd.f32 %v3197, %v3405
    %3407 = vmatmul.f32.gmra.mxu0 %v2788
    %v3408 = vpop.f32.mrf.mxu0
    %v3409 = vadd.f32 %v3200, %v3408
    %3410 = vmatmul.f32.gmra.mxu0 %v2789
    %v3411 = vpop.f32.mrf.mxu0
    %v3412 = vadd.f32 %v3203, %v3411
    %3413 = vmatmul.f32.gmra.mxu0 %v2790
    %v3414 = vpop.f32.mrf.mxu0
    %v3415 = vadd.f32 %v3206, %v3414
    %3416 = vmatmul.f32.gmra.mxu0 %v2791
    %v3417 = vpop.f32.mrf.mxu0
    %v3418 = vadd.f32 %v3209, %v3417
    %3419 = vmatmul.f32.gmra.mxu0 %v2792
    %v3420 = vpop.f32.mrf.mxu0
    %v3421 = vadd.f32 %v3212, %v3420
    %3422 = vmatmul.f32.gmra.mxu0 %v2793
    %v3423 = vpop.f32.mrf.mxu0
    %v3424 = vadd.f32 %v3215, %v3423
    %3425 = vmatmul.f32.gmra.mxu0 %v2794
    %v3426 = vpop.f32.mrf.mxu0
    %v3427 = vadd.f32 %v3218, %v3426
    %3428 = vmatmul.f32.gmra.mxu0 %v2795
    %v3429 = vpop.f32.mrf.mxu0
    %v3430 = vadd.f32 %v3221, %v3429
    %3431 = vmatmul.f32.gmra.mxu0 %v2796
    %v3432 = vpop.f32.mrf.mxu0
    %v3433 = vadd.f32 %v3224, %v3432
    %3434 = vdwg.mxu0
    %3435 = vmatpush.msra.mxu0 %v2920
    %3436 = vmatpush.msra.mxu0 %v2919
    %3437 = vmatpush.msra.mxu0 %v2918
    %3438 = vmatpush.msra.mxu0 %v2917
    %3439 = vmatpush.msra.mxu0 %v2916
    %3440 = vmatpush.msra.mxu0 %v2915
    %3441 = vmatpush.msra.mxu0 %v2914
    %3442 = vmatpush.msra.mxu0 %v2913
    %3443 = vmatpush.msra.mxu0 %v2912
    %3444 = vmatpush.msra.mxu0 %v2911
    %3445 = vmatpush.msra.mxu0 %v2910
    %3446 = vmatpush.msra.mxu0 %v2909
    %3447 = vmatpush.msra.mxu0 %v2908
    %3448 = vmatpush.msra.mxu0 %v2907
    %3449 = vmatpush.msra.mxu0 %v2906
    %3450 = vmatpush.msra.mxu0 %v2905
    %3451 = vmatmul.f32.gmra.mxu0 %v2801
    %v3452 = vpop.f32.mrf.mxu0
    %v3453 = vadd.f32 %v3244, %v3452
    %3454 = vmatmul.f32.gmra.mxu0 %v2802
    %v3455 = vpop.f32.mrf.mxu0
    %v3456 = vadd.f32 %v3247, %v3455
    %3457 = vmatmul.f32.gmra.mxu0 %v2803
    %v3458 = vpop.f32.mrf.mxu0
    %v3459 = vadd.f32 %v3250, %v3458
    %3460 = vmatmul.f32.gmra.mxu0 %v2804
    %v3461 = vpop.f32.mrf.mxu0
    %v3462 = vadd.f32 %v3253, %v3461
    %3463 = vmatmul.f32.gmra.mxu0 %v2805
    %v3464 = vpop.f32.mrf.mxu0
    %v3465 = vadd.f32 %v3256, %v3464
    %3466 = vmatmul.f32.gmra.mxu0 %v2806
    %v3467 = vpop.f32.mrf.mxu0
    %v3468 = vadd.f32 %v3259, %v3467
    %3469 = vmatmul.f32.gmra.mxu0 %v2807
    %v3470 = vpop.f32.mrf.mxu0
    %v3471 = vadd.f32 %v3262, %v3470
    %3472 = vmatmul.f32.gmra.mxu0 %v2808
    %v3473 = vpop.f32.mrf.mxu0
    %v3474 = vadd.f32 %v3265, %v3473
    %3475 = vmatmul.f32.gmra.mxu0 %v2809
    %v3476 = vpop.f32.mrf.mxu0
    %v3477 = vadd.f32 %v3268, %v3476
    %3478 = vmatmul.f32.gmra.mxu0 %v2810
    %v3479 = vpop.f32.mrf.mxu0
    %v3480 = vadd.f32 %v3271, %v3479
    %3481 = vmatmul.f32.gmra.mxu0 %v2811
    %v3482 = vpop.f32.mrf.mxu0
    %v3483 = vadd.f32 %v3274, %v3482
    %3484 = vmatmul.f32.gmra.mxu0 %v2812
    %v3485 = vpop.f32.mrf.mxu0
    %v3486 = vadd.f32 %v3277, %v3485
    %3487 = vmatmul.f32.gmra.mxu0 %v2813
    %v3488 = vpop.f32.mrf.mxu0
    %v3489 = vadd.f32 %v3280, %v3488
    %3490 = vmatmul.f32.gmra.mxu0 %v2814
    %v3491 = vpop.f32.mrf.mxu0
    %v3492 = vadd.f32 %v3283, %v3491
    %3493 = vmatmul.f32.gmra.mxu0 %v2815
    %v3494 = vpop.f32.mrf.mxu0
    %v3495 = vadd.f32 %v3286, %v3494
    %3496 = vmatmul.f32.gmra.mxu0 %v2816
    %v3497 = vpop.f32.mrf.mxu0
    %v3498 = vadd.f32 %v3289, %v3497
    %3499 = vmatmul.f32.gmra.mxu0 %v2817
    %v3500 = vpop.f32.mrf.mxu0
    %v3501 = vadd.f32 %v3292, %v3500
    %3502 = vmatmul.f32.gmra.mxu0 %v2818
    %v3503 = vpop.f32.mrf.mxu0
    %v3504 = vadd.f32 %v3295, %v3503
    %3505 = vmatmul.f32.gmra.mxu0 %v2819
    %v3506 = vpop.f32.mrf.mxu0
    %v3507 = vadd.f32 %v3298, %v3506
    %3508 = vmatmul.f32.gmra.mxu0 %v2820
    %v3509 = vpop.f32.mrf.mxu0
    %v3510 = vadd.f32 %v3301, %v3509
    %3511 = vmatmul.f32.gmra.mxu0 %v2821
    %v3512 = vpop.f32.mrf.mxu0
    %v3513 = vadd.f32 %v3304, %v3512
    %3514 = vmatmul.f32.gmra.mxu0 %v2822
    %v3515 = vpop.f32.mrf.mxu0
    %v3516 = vadd.f32 %v3307, %v3515
    %3517 = vmatmul.f32.gmra.mxu0 %v2823
    %v3518 = vpop.f32.mrf.mxu0
    %v3519 = vadd.f32 %v3310, %v3518
    %3520 = vmatmul.f32.gmra.mxu0 %v2824
    %v3521 = vpop.f32.mrf.mxu0
    %v3522 = vadd.f32 %v3313, %v3521
    %3523 = vmatmul.f32.gmra.mxu0 %v2825
    %v3524 = vpop.f32.mrf.mxu0
    %v3525 = vadd.f32 %v3316, %v3524
    %3526 = vmatmul.f32.gmra.mxu0 %v2826
    %v3527 = vpop.f32.mrf.mxu0
    %v3528 = vadd.f32 %v3319, %v3527
    %3529 = vmatmul.f32.gmra.mxu0 %v2827
    %v3530 = vpop.f32.mrf.mxu0
    %v3531 = vadd.f32 %v3322, %v3530
    %3532 = vmatmul.f32.gmra.mxu0 %v2828
    %v3533 = vpop.f32.mrf.mxu0
    %v3534 = vadd.f32 %v3325, %v3533
    %3535 = vmatmul.f32.gmra.mxu0 %v2829
    %v3536 = vpop.f32.mrf.mxu0
    %v3537 = vadd.f32 %v3328, %v3536
    %3538 = vmatmul.f32.gmra.mxu0 %v2830
    %v3539 = vpop.f32.mrf.mxu0
    %v3540 = vadd.f32 %v3331, %v3539
    %3541 = vmatmul.f32.gmra.mxu0 %v2831
    %v3542 = vpop.f32.mrf.mxu0
    %v3543 = vadd.f32 %v3334, %v3542
    %3544 = vmatmul.f32.gmra.mxu0 %v2832
    %v3545 = vpop.f32.mrf.mxu0
    %v3546 = vadd.f32 %v3337, %v3545
    %3547 = vmatmul.f32.gmra.mxu0 %v2837
    %v3548 = vpop.f32.mrf.mxu0
    %v3549 = vadd.f32 %v3340, %v3548
    %3550 = vmatmul.f32.gmra.mxu0 %v2838
    %v3551 = vpop.f32.mrf.mxu0
    %v3552 = vadd.f32 %v3343, %v3551
    %3553 = vmatmul.f32.gmra.mxu0 %v2839
    %v3554 = vpop.f32.mrf.mxu0
    %v3555 = vadd.f32 %v3346, %v3554
    %3556 = vmatmul.f32.gmra.mxu0 %v2840
    %v3557 = vpop.f32.mrf.mxu0
    %v3558 = vadd.f32 %v3349, %v3557
    %3559 = vmatmul.f32.gmra.mxu0 %v2841
    %v3560 = vpop.f32.mrf.mxu0
    %v3561 = vadd.f32 %v3352, %v3560
    %3562 = vmatmul.f32.gmra.mxu0 %v2842
    %v3563 = vpop.f32.mrf.mxu0
    %v3564 = vadd.f32 %v3355, %v3563
    %3565 = vmatmul.f32.gmra.mxu0 %v2843
    %v3566 = vpop.f32.mrf.mxu0
    %v3567 = vadd.f32 %v3358, %v3566
    %3568 = vmatmul.f32.gmra.mxu0 %v2844
    %v3569 = vpop.f32.mrf.mxu0
    %v3570 = vadd.f32 %v3361, %v3569
    %3571 = vmatmul.f32.gmra.mxu0 %v2845
    %v3572 = vpop.f32.mrf.mxu0
    %v3573 = vadd.f32 %v3364, %v3572
    %3574 = vmatmul.f32.gmra.mxu0 %v2846
    %v3575 = vpop.f32.mrf.mxu0
    %v3576 = vadd.f32 %v3367, %v3575
    %3577 = vmatmul.f32.gmra.mxu0 %v2847
    %v3578 = vpop.f32.mrf.mxu0
    %v3579 = vadd.f32 %v3370, %v3578
    %3580 = vmatmul.f32.gmra.mxu0 %v2848
    %v3581 = vpop.f32.mrf.mxu0
    %v3582 = vadd.f32 %v3373, %v3581
    %3583 = vmatmul.f32.gmra.mxu0 %v2849
    %v3584 = vpop.f32.mrf.mxu0
    %v3585 = vadd.f32 %v3376, %v3584
    %3586 = vmatmul.f32.gmra.mxu0 %v2850
    %v3587 = vpop.f32.mrf.mxu0
    %v3588 = vadd.f32 %v3379, %v3587
    %3589 = vmatmul.f32.gmra.mxu0 %v2851
    %v3590 = vpop.f32.mrf.mxu0
    %v3591 = vadd.f32 %v3382, %v3590
    %3592 = vmatmul.f32.gmra.mxu0 %v2852
    %v3593 = vpop.f32.mrf.mxu0
    %v3594 = vadd.f32 %v3385, %v3593
    %3595 = vmatmul.f32.gmra.mxu0 %v2853
    %v3596 = vpop.f32.mrf.mxu0
    %v3597 = vadd.f32 %v3388, %v3596
    %3598 = vmatmul.f32.gmra.mxu0 %v2854
    %v3599 = vpop.f32.mrf.mxu0
    %v3600 = vadd.f32 %v3391, %v3599
    %3601 = vmatmul.f32.gmra.mxu0 %v2855
    %v3602 = vpop.f32.mrf.mxu0
    %v3603 = vadd.f32 %v3394, %v3602
    %3604 = vmatmul.f32.gmra.mxu0 %v2856
    %v3605 = vpop.f32.mrf.mxu0
    %v3606 = vadd.f32 %v3397, %v3605
    %3607 = vmatmul.f32.gmra.mxu0 %v2857
    %v3608 = vpop.f32.mrf.mxu0
    %v3609 = vadd.f32 %v3400, %v3608
    %3610 = vmatmul.f32.gmra.mxu0 %v2858
    %v3611 = vpop.f32.mrf.mxu0
    %v3612 = vadd.f32 %v3403, %v3611
    %3613 = vmatmul.f32.gmra.mxu0 %v2859
    %v3614 = vpop.f32.mrf.mxu0
    %v3615 = vadd.f32 %v3406, %v3614
    %3616 = vmatmul.f32.gmra.mxu0 %v2860
    %v3617 = vpop.f32.mrf.mxu0
    %v3618 = vadd.f32 %v3409, %v3617
    %3619 = vmatmul.f32.gmra.mxu0 %v2861
    %v3620 = vpop.f32.mrf.mxu0
    %v3621 = vadd.f32 %v3412, %v3620
    %3622 = vmatmul.f32.gmra.mxu0 %v2862
    %v3623 = vpop.f32.mrf.mxu0
    %v3624 = vadd.f32 %v3415, %v3623
    %3625 = vmatmul.f32.gmra.mxu0 %v2863
    %v3626 = vpop.f32.mrf.mxu0
    %v3627 = vadd.f32 %v3418, %v3626
    %3628 = vmatmul.f32.gmra.mxu0 %v2864
    %v3629 = vpop.f32.mrf.mxu0
    %v3630 = vadd.f32 %v3421, %v3629
    %3631 = vmatmul.f32.gmra.mxu0 %v2865
    %v3632 = vpop.f32.mrf.mxu0
    %v3633 = vadd.f32 %v3424, %v3632
    %3634 = vmatmul.f32.gmra.mxu0 %v2866
    %v3635 = vpop.f32.mrf.mxu0
    %v3636 = vadd.f32 %v3427, %v3635
    %3637 = vmatmul.f32.gmra.mxu0 %v2867
    %v3638 = vpop.f32.mrf.mxu0
    %v3639 = vadd.f32 %v3430, %v3638
    %3640 = vmatmul.f32.gmra.mxu0 %v2868
    %v3641 = vpop.f32.mrf.mxu0
    %v3642 = vadd.f32 %v3433, %v3641
    %3643 = vdwg.mxu0
    %3644 = vmatpush.msra.mxu0 %v2936
    %3645 = vmatpush.msra.mxu0 %v2935
    %3646 = vmatpush.msra.mxu0 %v2934
    %3647 = vmatpush.msra.mxu0 %v2933
    %3648 = vmatpush.msra.mxu0 %v2932
    %3649 = vmatpush.msra.mxu0 %v2931
    %3650 = vmatpush.msra.mxu0 %v2930
    %3651 = vmatpush.msra.mxu0 %v2929
    %3652 = vmatpush.msra.mxu0 %v2928
    %3653 = vmatpush.msra.mxu0 %v2927
    %3654 = vmatpush.msra.mxu0 %v2926
    %3655 = vmatpush.msra.mxu0 %v2925
    %3656 = vmatpush.msra.mxu0 %v2924
    %3657 = vmatpush.msra.mxu0 %v2923
    %3658 = vmatpush.msra.mxu0 %v2922
    %3659 = vmatpush.msra.mxu0 %v2921
    %3660 = vmatmul.f32.gmra.mxu0 %v2659
    %v3661 = vpop.f32.mrf.mxu0
    %v3662 = vadd.f32 %v3453, %v3661
    %3663 = vmatmul.f32.gmra.mxu0 %v2660
    %v3664 = vpop.f32.mrf.mxu0
    %v3665 = vadd.f32 %v3456, %v3664
    %3666 = vmatmul.f32.gmra.mxu0 %v2661
    %v3667 = vpop.f32.mrf.mxu0
    %v3668 = vadd.f32 %v3459, %v3667
    %3669 = vmatmul.f32.gmra.mxu0 %v2662
    %v3670 = vpop.f32.mrf.mxu0
    %v3671 = vadd.f32 %v3462, %v3670
    %3672 = vmatmul.f32.gmra.mxu0 %v2663
    %v3673 = vpop.f32.mrf.mxu0
    %v3674 = vadd.f32 %v3465, %v3673
    %3675 = vmatmul.f32.gmra.mxu0 %v2664
    %v3676 = vpop.f32.mrf.mxu0
    %v3677 = vadd.f32 %v3468, %v3676
    %3678 = vmatmul.f32.gmra.mxu0 %v2665
    %v3679 = vpop.f32.mrf.mxu0
    %v3680 = vadd.f32 %v3471, %v3679
    %3681 = vmatmul.f32.gmra.mxu0 %v2666
    %v3682 = vpop.f32.mrf.mxu0
    %v3683 = vadd.f32 %v3474, %v3682
    %3684 = vmatmul.f32.gmra.mxu0 %v2667
    %v3685 = vpop.f32.mrf.mxu0
    %v3686 = vadd.f32 %v3477, %v3685
    %3687 = vmatmul.f32.gmra.mxu0 %v2668
    %v3688 = vpop.f32.mrf.mxu0
    %v3689 = vadd.f32 %v3480, %v3688
    %3690 = vmatmul.f32.gmra.mxu0 %v2669
    %v3691 = vpop.f32.mrf.mxu0
    %v3692 = vadd.f32 %v3483, %v3691
    %3693 = vmatmul.f32.gmra.mxu0 %v2670
    %v3694 = vpop.f32.mrf.mxu0
    %v3695 = vadd.f32 %v3486, %v3694
    %3696 = vmatmul.f32.gmra.mxu0 %v2671
    %v3697 = vpop.f32.mrf.mxu0
    %v3698 = vadd.f32 %v3489, %v3697
    %3699 = vmatmul.f32.gmra.mxu0 %v2672
    %v3700 = vpop.f32.mrf.mxu0
    %v3701 = vadd.f32 %v3492, %v3700
    %3702 = vmatmul.f32.gmra.mxu0 %v2673
    %v3703 = vpop.f32.mrf.mxu0
    %v3704 = vadd.f32 %v3495, %v3703
    %3705 = vmatmul.f32.gmra.mxu0 %v2674
    %v3706 = vpop.f32.mrf.mxu0
    %v3707 = vadd.f32 %v3498, %v3706
    %3708 = vmatmul.f32.gmra.mxu0 %v2675
    %v3709 = vpop.f32.mrf.mxu0
    %v3710 = vadd.f32 %v3501, %v3709
    %3711 = vmatmul.f32.gmra.mxu0 %v2676
    %v3712 = vpop.f32.mrf.mxu0
    %v3713 = vadd.f32 %v3504, %v3712
    %3714 = vmatmul.f32.gmra.mxu0 %v2677
    %v3715 = vpop.f32.mrf.mxu0
    %v3716 = vadd.f32 %v3507, %v3715
    %3717 = vmatmul.f32.gmra.mxu0 %v2678
    %v3718 = vpop.f32.mrf.mxu0
    %v3719 = vadd.f32 %v3510, %v3718
    %3720 = vmatmul.f32.gmra.mxu0 %v2679
    %v3721 = vpop.f32.mrf.mxu0
    %v3722 = vadd.f32 %v3513, %v3721
    %3723 = vmatmul.f32.gmra.mxu0 %v2680
    %v3724 = vpop.f32.mrf.mxu0
    %v3725 = vadd.f32 %v3516, %v3724
    %3726 = vmatmul.f32.gmra.mxu0 %v2681
    %v3727 = vpop.f32.mrf.mxu0
    %v3728 = vadd.f32 %v3519, %v3727
    %3729 = vmatmul.f32.gmra.mxu0 %v2682
    %v3730 = vpop.f32.mrf.mxu0
    %v3731 = vadd.f32 %v3522, %v3730
    %3732 = vmatmul.f32.gmra.mxu0 %v2683
    %v3733 = vpop.f32.mrf.mxu0
    %v3734 = vadd.f32 %v3525, %v3733
    %3735 = vmatmul.f32.gmra.mxu0 %v2684
    %v3736 = vpop.f32.mrf.mxu0
    %v3737 = vadd.f32 %v3528, %v3736
    %3738 = vmatmul.f32.gmra.mxu0 %v2685
    %v3739 = vpop.f32.mrf.mxu0
    %v3740 = vadd.f32 %v3531, %v3739
    %3741 = vmatmul.f32.gmra.mxu0 %v2686
    %v3742 = vpop.f32.mrf.mxu0
    %v3743 = vadd.f32 %v3534, %v3742
    %3744 = vmatmul.f32.gmra.mxu0 %v2687
    %v3745 = vpop.f32.mrf.mxu0
    %v3746 = vadd.f32 %v3537, %v3745
    %3747 = vmatmul.f32.gmra.mxu0 %v2688
    %v3748 = vpop.f32.mrf.mxu0
    %v3749 = vadd.f32 %v3540, %v3748
    %3750 = vmatmul.f32.gmra.mxu0 %v2689
    %v3751 = vpop.f32.mrf.mxu0
    %v3752 = vadd.f32 %v3543, %v3751
    %3753 = vmatmul.f32.gmra.mxu0 %v2690
    %v3754 = vpop.f32.mrf.mxu0
    %v3755 = vadd.f32 %v3546, %v3754
    %3756 = vmatmul.f32.gmra.mxu0 %v2695
    %v3757 = vpop.f32.mrf.mxu0
    %v3758 = vadd.f32 %v3549, %v3757
    %3759 = vmatmul.f32.gmra.mxu0 %v2696
    %v3760 = vpop.f32.mrf.mxu0
    %v3761 = vadd.f32 %v3552, %v3760
    %3762 = vmatmul.f32.gmra.mxu0 %v2697
    %v3763 = vpop.f32.mrf.mxu0
    %v3764 = vadd.f32 %v3555, %v3763
    %3765 = vmatmul.f32.gmra.mxu0 %v2698
    %v3766 = vpop.f32.mrf.mxu0
    %v3767 = vadd.f32 %v3558, %v3766
    %3768 = vmatmul.f32.gmra.mxu0 %v2699
    %v3769 = vpop.f32.mrf.mxu0
    %v3770 = vadd.f32 %v3561, %v3769
    %3771 = vmatmul.f32.gmra.mxu0 %v2700
    %v3772 = vpop.f32.mrf.mxu0
    %v3773 = vadd.f32 %v3564, %v3772
    %3774 = vmatmul.f32.gmra.mxu0 %v2701
    %v3775 = vpop.f32.mrf.mxu0
    %v3776 = vadd.f32 %v3567, %v3775
    %3777 = vmatmul.f32.gmra.mxu0 %v2702
    %v3778 = vpop.f32.mrf.mxu0
    %v3779 = vadd.f32 %v3570, %v3778
    %3780 = vmatmul.f32.gmra.mxu0 %v2703
    %v3781 = vpop.f32.mrf.mxu0
    %v3782 = vadd.f32 %v3573, %v3781
    %3783 = vmatmul.f32.gmra.mxu0 %v2704
    %v3784 = vpop.f32.mrf.mxu0
    %v3785 = vadd.f32 %v3576, %v3784
    %3786 = vmatmul.f32.gmra.mxu0 %v2705
    %v3787 = vpop.f32.mrf.mxu0
    %v3788 = vadd.f32 %v3579, %v3787
    %3789 = vmatmul.f32.gmra.mxu0 %v2706
    %v3790 = vpop.f32.mrf.mxu0
    %v3791 = vadd.f32 %v3582, %v3790
    %3792 = vmatmul.f32.gmra.mxu0 %v2707
    %v3793 = vpop.f32.mrf.mxu0
    %v3794 = vadd.f32 %v3585, %v3793
    %3795 = vmatmul.f32.gmra.mxu0 %v2708
    %v3796 = vpop.f32.mrf.mxu0
    %v3797 = vadd.f32 %v3588, %v3796
    %3798 = vmatmul.f32.gmra.mxu0 %v2709
    %v3799 = vpop.f32.mrf.mxu0
    %v3800 = vadd.f32 %v3591, %v3799
    %3801 = vmatmul.f32.gmra.mxu0 %v2710
    %v3802 = vpop.f32.mrf.mxu0
    %v3803 = vadd.f32 %v3594, %v3802
    %3804 = vmatmul.f32.gmra.mxu0 %v2711
    %v3805 = vpop.f32.mrf.mxu0
    %v3806 = vadd.f32 %v3597, %v3805
    %3807 = vmatmul.f32.gmra.mxu0 %v2712
    %v3808 = vpop.f32.mrf.mxu0
    %v3809 = vadd.f32 %v3600, %v3808
    %3810 = vmatmul.f32.gmra.mxu0 %v2713
    %v3811 = vpop.f32.mrf.mxu0
    %v3812 = vadd.f32 %v3603, %v3811
    %3813 = vmatmul.f32.gmra.mxu0 %v2714
    %v3814 = vpop.f32.mrf.mxu0
    %v3815 = vadd.f32 %v3606, %v3814
    %3816 = vmatmul.f32.gmra.mxu0 %v2715
    %v3817 = vpop.f32.mrf.mxu0
    %v3818 = vadd.f32 %v3609, %v3817
    %3819 = vmatmul.f32.gmra.mxu0 %v2716
    %v3820 = vpop.f32.mrf.mxu0
    %v3821 = vadd.f32 %v3612, %v3820
    %3822 = vmatmul.f32.gmra.mxu0 %v2717
    %v3823 = vpop.f32.mrf.mxu0
    %v3824 = vadd.f32 %v3615, %v3823
    %3825 = vmatmul.f32.gmra.mxu0 %v2718
    %v3826 = vpop.f32.mrf.mxu0
    %v3827 = vadd.f32 %v3618, %v3826
    %3828 = vmatmul.f32.gmra.mxu0 %v2719
    %v3829 = vpop.f32.mrf.mxu0
    %v3830 = vadd.f32 %v3621, %v3829
    %3831 = vmatmul.f32.gmra.mxu0 %v2720
    %v3832 = vpop.f32.mrf.mxu0
    %v3833 = vadd.f32 %v3624, %v3832
    %3834 = vmatmul.f32.gmra.mxu0 %v2721
    %v3835 = vpop.f32.mrf.mxu0
    %v3836 = vadd.f32 %v3627, %v3835
    %3837 = vmatmul.f32.gmra.mxu0 %v2722
    %v3838 = vpop.f32.mrf.mxu0
    %v3839 = vadd.f32 %v3630, %v3838
    %3840 = vmatmul.f32.gmra.mxu0 %v2723
    %v3841 = vpop.f32.mrf.mxu0
    %v3842 = vadd.f32 %v3633, %v3841
    %3843 = vmatmul.f32.gmra.mxu0 %v2724
    %v3844 = vpop.f32.mrf.mxu0
    %v3845 = vadd.f32 %v3636, %v3844
    %3846 = vmatmul.f32.gmra.mxu0 %v2725
    %v3847 = vpop.f32.mrf.mxu0
    %v3848 = vadd.f32 %v3639, %v3847
    %3849 = vmatmul.f32.gmra.mxu0 %v2726
    %v3850 = vpop.f32.mrf.mxu0
    %v3851 = vadd.f32 %v3642, %v3850
    %3852 = vdwg.mxu0
    %3853 = vmatpush.msra.mxu0 %v2952
    %3854 = vmatpush.msra.mxu0 %v2951
    %3855 = vmatpush.msra.mxu0 %v2950
    %3856 = vmatpush.msra.mxu0 %v2949
    %3857 = vmatpush.msra.mxu0 %v2948
    %3858 = vmatpush.msra.mxu0 %v2947
    %3859 = vmatpush.msra.mxu0 %v2946
    %3860 = vmatpush.msra.mxu0 %v2945
    %3861 = vmatpush.msra.mxu0 %v2944
    %3862 = vmatpush.msra.mxu0 %v2943
    %3863 = vmatpush.msra.mxu0 %v2942
    %3864 = vmatpush.msra.mxu0 %v2941
    %3865 = vmatpush.msra.mxu0 %v2940
    %3866 = vmatpush.msra.mxu0 %v2939
    %3867 = vmatpush.msra.mxu0 %v2938
    %3868 = vmatpush.msra.mxu0 %v2937
    %3869 = vmatmul.f32.gmra.mxu0 %v2731
    %v3870 = vpop.f32.mrf.mxu0
    %v3871 = vadd.f32 %v3662, %v3870
    %3872 = vmatmul.f32.gmra.mxu0 %v2732
    %v3873 = vpop.f32.mrf.mxu0
    %v3874 = vadd.f32 %v3665, %v3873
    %3875 = vmatmul.f32.gmra.mxu0 %v2733
    %v3876 = vpop.f32.mrf.mxu0
    %v3877 = vadd.f32 %v3668, %v3876
    %3878 = vmatmul.f32.gmra.mxu0 %v2734
    %v3879 = vpop.f32.mrf.mxu0
    %v3880 = vadd.f32 %v3671, %v3879
    %3881 = vmatmul.f32.gmra.mxu0 %v2735
    %v3882 = vpop.f32.mrf.mxu0
    %v3883 = vadd.f32 %v3674, %v3882
    %3884 = vmatmul.f32.gmra.mxu0 %v2736
    %v3885 = vpop.f32.mrf.mxu0
    %v3886 = vadd.f32 %v3677, %v3885
    %3887 = vmatmul.f32.gmra.mxu0 %v2737
    %v3888 = vpop.f32.mrf.mxu0
    %v3889 = vadd.f32 %v3680, %v3888
    %3890 = vmatmul.f32.gmra.mxu0 %v2738
    %v3891 = vpop.f32.mrf.mxu0
    %v3892 = vadd.f32 %v3683, %v3891
    %3893 = vmatmul.f32.gmra.mxu0 %v2739
    %v3894 = vpop.f32.mrf.mxu0
    %v3895 = vadd.f32 %v3686, %v3894
    %3896 = vmatmul.f32.gmra.mxu0 %v2740
    %v3897 = vpop.f32.mrf.mxu0
    %v3898 = vadd.f32 %v3689, %v3897
    %3899 = vmatmul.f32.gmra.mxu0 %v2741
    %v3900 = vpop.f32.mrf.mxu0
    %v3901 = vadd.f32 %v3692, %v3900
    %3902 = vmatmul.f32.gmra.mxu0 %v2742
    %v3903 = vpop.f32.mrf.mxu0
    %v3904 = vadd.f32 %v3695, %v3903
    %3905 = vmatmul.f32.gmra.mxu0 %v2743
    %v3906 = vpop.f32.mrf.mxu0
    %v3907 = vadd.f32 %v3698, %v3906
    %3908 = vmatmul.f32.gmra.mxu0 %v2744
    %v3909 = vpop.f32.mrf.mxu0
    %v3910 = vadd.f32 %v3701, %v3909
    %3911 = vmatmul.f32.gmra.mxu0 %v2745
    %v3912 = vpop.f32.mrf.mxu0
    %v3913 = vadd.f32 %v3704, %v3912
    %3914 = vmatmul.f32.gmra.mxu0 %v2746
    %v3915 = vpop.f32.mrf.mxu0
    %v3916 = vadd.f32 %v3707, %v3915
    %3917 = vmatmul.f32.gmra.mxu0 %v2747
    %v3918 = vpop.f32.mrf.mxu0
    %v3919 = vadd.f32 %v3710, %v3918
    %3920 = vmatmul.f32.gmra.mxu0 %v2748
    %v3921 = vpop.f32.mrf.mxu0
    %v3922 = vadd.f32 %v3713, %v3921
    %3923 = vmatmul.f32.gmra.mxu0 %v2749
    %v3924 = vpop.f32.mrf.mxu0
    %v3925 = vadd.f32 %v3716, %v3924
    %3926 = vmatmul.f32.gmra.mxu0 %v2750
    %v3927 = vpop.f32.mrf.mxu0
    %v3928 = vadd.f32 %v3719, %v3927
    %3929 = vmatmul.f32.gmra.mxu0 %v2751
    %v3930 = vpop.f32.mrf.mxu0
    %v3931 = vadd.f32 %v3722, %v3930
    %3932 = vmatmul.f32.gmra.mxu0 %v2752
    %v3933 = vpop.f32.mrf.mxu0
    %v3934 = vadd.f32 %v3725, %v3933
    %3935 = vmatmul.f32.gmra.mxu0 %v2753
    %v3936 = vpop.f32.mrf.mxu0
    %v3937 = vadd.f32 %v3728, %v3936
    %3938 = vmatmul.f32.gmra.mxu0 %v2754
    %v3939 = vpop.f32.mrf.mxu0
    %v3940 = vadd.f32 %v3731, %v3939
    %3941 = vmatmul.f32.gmra.mxu0 %v2755
    %v3942 = vpop.f32.mrf.mxu0
    %v3943 = vadd.f32 %v3734, %v3942
    %3944 = vmatmul.f32.gmra.mxu0 %v2756
    %v3945 = vpop.f32.mrf.mxu0
    %v3946 = vadd.f32 %v3737, %v3945
    %3947 = vmatmul.f32.gmra.mxu0 %v2757
    %v3948 = vpop.f32.mrf.mxu0
    %v3949 = vadd.f32 %v3740, %v3948
    %3950 = vmatmul.f32.gmra.mxu0 %v2758
    %v3951 = vpop.f32.mrf.mxu0
    %v3952 = vadd.f32 %v3743, %v3951
    %3953 = vmatmul.f32.gmra.mxu0 %v2759
    %v3954 = vpop.f32.mrf.mxu0
    %v3955 = vadd.f32 %v3746, %v3954
    %3956 = vmatmul.f32.gmra.mxu0 %v2760
    %v3957 = vpop.f32.mrf.mxu0
    %v3958 = vadd.f32 %v3749, %v3957
    %3959 = vmatmul.f32.gmra.mxu0 %v2761
    %v3960 = vpop.f32.mrf.mxu0
    %v3961 = vadd.f32 %v3752, %v3960
    %3962 = vmatmul.f32.gmra.mxu0 %v2762
    %v3963 = vpop.f32.mrf.mxu0
    %v3964 = vadd.f32 %v3755, %v3963
    %3965 = vmatmul.f32.gmra.mxu0 %v2767
    %v3966 = vpop.f32.mrf.mxu0
    %v3967 = vadd.f32 %v3758, %v3966
    %3968 = vmatmul.f32.gmra.mxu0 %v2768
    %v3969 = vpop.f32.mrf.mxu0
    %v3970 = vadd.f32 %v3761, %v3969
    %3971 = vmatmul.f32.gmra.mxu0 %v2769
    %v3972 = vpop.f32.mrf.mxu0
    %v3973 = vadd.f32 %v3764, %v3972
    %3974 = vmatmul.f32.gmra.mxu0 %v2770
    %v3975 = vpop.f32.mrf.mxu0
    %v3976 = vadd.f32 %v3767, %v3975
    %3977 = vmatmul.f32.gmra.mxu0 %v2771
    %v3978 = vpop.f32.mrf.mxu0
    %v3979 = vadd.f32 %v3770, %v3978
    %3980 = vmatmul.f32.gmra.mxu0 %v2772
    %v3981 = vpop.f32.mrf.mxu0
    %v3982 = vadd.f32 %v3773, %v3981
    %3983 = vmatmul.f32.gmra.mxu0 %v2773
    %v3984 = vpop.f32.mrf.mxu0
    %v3985 = vadd.f32 %v3776, %v3984
    %3986 = vmatmul.f32.gmra.mxu0 %v2774
    %v3987 = vpop.f32.mrf.mxu0
    %v3988 = vadd.f32 %v3779, %v3987
    %3989 = vmatmul.f32.gmra.mxu0 %v2775
    %v3990 = vpop.f32.mrf.mxu0
    %v3991 = vadd.f32 %v3782, %v3990
    %3992 = vmatmul.f32.gmra.mxu0 %v2776
    %v3993 = vpop.f32.mrf.mxu0
    %v3994 = vadd.f32 %v3785, %v3993
    %3995 = vmatmul.f32.gmra.mxu0 %v2777
    %v3996 = vpop.f32.mrf.mxu0
    %v3997 = vadd.f32 %v3788, %v3996
    %3998 = vmatmul.f32.gmra.mxu0 %v2778
    %v3999 = vpop.f32.mrf.mxu0
    %v4000 = vadd.f32 %v3791, %v3999
    %4001 = vmatmul.f32.gmra.mxu0 %v2779
    %v4002 = vpop.f32.mrf.mxu0
    %v4003 = vadd.f32 %v3794, %v4002
    %4004 = vmatmul.f32.gmra.mxu0 %v2780
    %v4005 = vpop.f32.mrf.mxu0
    %v4006 = vadd.f32 %v3797, %v4005
    %4007 = vmatmul.f32.gmra.mxu0 %v2781
    %v4008 = vpop.f32.mrf.mxu0
    %v4009 = vadd.f32 %v3800, %v4008
    %4010 = vmatmul.f32.gmra.mxu0 %v2782
    %v4011 = vpop.f32.mrf.mxu0
    %v4012 = vadd.f32 %v3803, %v4011
    %4013 = vmatmul.f32.gmra.mxu0 %v2783
    %v4014 = vpop.f32.mrf.mxu0
    %v4015 = vadd.f32 %v3806, %v4014
    %4016 = vmatmul.f32.gmra.mxu0 %v2784
    %v4017 = vpop.f32.mrf.mxu0
    %v4018 = vadd.f32 %v3809, %v4017
    %4019 = vmatmul.f32.gmra.mxu0 %v2785
    %v4020 = vpop.f32.mrf.mxu0
    %v4021 = vadd.f32 %v3812, %v4020
    %4022 = vmatmul.f32.gmra.mxu0 %v2786
    %v4023 = vpop.f32.mrf.mxu0
    %v4024 = vadd.f32 %v3815, %v4023
    %4025 = vmatmul.f32.gmra.mxu0 %v2787
    %v4026 = vpop.f32.mrf.mxu0
    %v4027 = vadd.f32 %v3818, %v4026
    %4028 = vmatmul.f32.gmra.mxu0 %v2788
    %v4029 = vpop.f32.mrf.mxu0
    %v4030 = vadd.f32 %v3821, %v4029
    %4031 = vmatmul.f32.gmra.mxu0 %v2789
    %v4032 = vpop.f32.mrf.mxu0
    %v4033 = vadd.f32 %v3824, %v4032
    %4034 = vmatmul.f32.gmra.mxu0 %v2790
    %v4035 = vpop.f32.mrf.mxu0
    %v4036 = vadd.f32 %v3827, %v4035
    %4037 = vmatmul.f32.gmra.mxu0 %v2791
    %v4038 = vpop.f32.mrf.mxu0
    %v4039 = vadd.f32 %v3830, %v4038
    %4040 = vmatmul.f32.gmra.mxu0 %v2792
    %v4041 = vpop.f32.mrf.mxu0
    %v4042 = vadd.f32 %v3833, %v4041
    %4043 = vmatmul.f32.gmra.mxu0 %v2793
    %v4044 = vpop.f32.mrf.mxu0
    %v4045 = vadd.f32 %v3836, %v4044
    %4046 = vmatmul.f32.gmra.mxu0 %v2794
    %v4047 = vpop.f32.mrf.mxu0
    %v4048 = vadd.f32 %v3839, %v4047
    %4049 = vmatmul.f32.gmra.mxu0 %v2795
    %v4050 = vpop.f32.mrf.mxu0
    %v4051 = vadd.f32 %v3842, %v4050
    %4052 = vmatmul.f32.gmra.mxu0 %v2796
    %v4053 = vpop.f32.mrf.mxu0
    %v4054 = vadd.f32 %v3845, %v4053
    %4055 = vmatmul.f32.gmra.mxu0 %v2797
    %v4056 = vpop.f32.mrf.mxu0
    %v4057 = vadd.f32 %v3848, %v4056
    %4058 = vmatmul.f32.gmra.mxu0 %v2798
    %v4059 = vpop.f32.mrf.mxu0
    %v4060 = vadd.f32 %v3851, %v4059
    %4061 = vdwg.mxu0
    %4062 = vmatpush.msra.mxu0 %v2968
    %4063 = vmatpush.msra.mxu0 %v2967
    %4064 = vmatpush.msra.mxu0 %v2966
    %4065 = vmatpush.msra.mxu0 %v2965
    %4066 = vmatpush.msra.mxu0 %v2964
    %4067 = vmatpush.msra.mxu0 %v2963
    %4068 = vmatpush.msra.mxu0 %v2962
    %4069 = vmatpush.msra.mxu0 %v2961
    %4070 = vmatpush.msra.mxu0 %v2960
    %4071 = vmatpush.msra.mxu0 %v2959
    %4072 = vmatpush.msra.mxu0 %v2958
    %4073 = vmatpush.msra.mxu0 %v2957
    %4074 = vmatpush.msra.mxu0 %v2956
    %4075 = vmatpush.msra.mxu0 %v2955
    %4076 = vmatpush.msra.mxu0 %v2954
    %4077 = vmatpush.msra.mxu0 %v2953
    %4078 = vmatmul.f32.gmra.mxu0 %v2803
    %v4079 = vpop.f32.mrf.mxu0
    %v4080 = vadd.f32 %v3871, %v4079
    %4081 = vmatmul.f32.gmra.mxu0 %v2804
    %v4082 = vpop.f32.mrf.mxu0
    %v4083 = vadd.f32 %v3874, %v4082
    %4084 = vmatmul.f32.gmra.mxu0 %v2805
    %v4085 = vpop.f32.mrf.mxu0
    %v4086 = vadd.f32 %v3877, %v4085
    %4087 = vmatmul.f32.gmra.mxu0 %v2806
    %v4088 = vpop.f32.mrf.mxu0
    %v4089 = vadd.f32 %v3880, %v4088
    %4090 = vmatmul.f32.gmra.mxu0 %v2807
    %v4091 = vpop.f32.mrf.mxu0
    %v4092 = vadd.f32 %v3883, %v4091
    %4093 = vmatmul.f32.gmra.mxu0 %v2808
    %v4094 = vpop.f32.mrf.mxu0
    %v4095 = vadd.f32 %v3886, %v4094
    %4096 = vmatmul.f32.gmra.mxu0 %v2809
    %v4097 = vpop.f32.mrf.mxu0
    %v4098 = vadd.f32 %v3889, %v4097
    %4099 = vmatmul.f32.gmra.mxu0 %v2810
    %v4100 = vpop.f32.mrf.mxu0
    %v4101 = vadd.f32 %v3892, %v4100
    %4102 = vmatmul.f32.gmra.mxu0 %v2811
    %v4103 = vpop.f32.mrf.mxu0
    %v4104 = vadd.f32 %v3895, %v4103
    %4105 = vmatmul.f32.gmra.mxu0 %v2812
    %v4106 = vpop.f32.mrf.mxu0
    %v4107 = vadd.f32 %v3898, %v4106
    %4108 = vmatmul.f32.gmra.mxu0 %v2813
    %v4109 = vpop.f32.mrf.mxu0
    %v4110 = vadd.f32 %v3901, %v4109
    %4111 = vmatmul.f32.gmra.mxu0 %v2814
    %v4112 = vpop.f32.mrf.mxu0
    %v4113 = vadd.f32 %v3904, %v4112
    %4114 = vmatmul.f32.gmra.mxu0 %v2815
    %v4115 = vpop.f32.mrf.mxu0
    %v4116 = vadd.f32 %v3907, %v4115
    %4117 = vmatmul.f32.gmra.mxu0 %v2816
    %v4118 = vpop.f32.mrf.mxu0
    %v4119 = vadd.f32 %v3910, %v4118
    %4120 = vmatmul.f32.gmra.mxu0 %v2817
    %v4121 = vpop.f32.mrf.mxu0
    %v4122 = vadd.f32 %v3913, %v4121
    %4123 = vmatmul.f32.gmra.mxu0 %v2818
    %v4124 = vpop.f32.mrf.mxu0
    %v4125 = vadd.f32 %v3916, %v4124
    %4126 = vmatmul.f32.gmra.mxu0 %v2819
    %v4127 = vpop.f32.mrf.mxu0
    %v4128 = vadd.f32 %v3919, %v4127
    %4129 = vmatmul.f32.gmra.mxu0 %v2820
    %v4130 = vpop.f32.mrf.mxu0
    %v4131 = vadd.f32 %v3922, %v4130
    %4132 = vmatmul.f32.gmra.mxu0 %v2821
    %v4133 = vpop.f32.mrf.mxu0
    %v4134 = vadd.f32 %v3925, %v4133
    %4135 = vmatmul.f32.gmra.mxu0 %v2822
    %v4136 = vpop.f32.mrf.mxu0
    %v4137 = vadd.f32 %v3928, %v4136
    %4138 = vmatmul.f32.gmra.mxu0 %v2823
    %v4139 = vpop.f32.mrf.mxu0
    %v4140 = vadd.f32 %v3931, %v4139
    %4141 = vmatmul.f32.gmra.mxu0 %v2824
    %v4142 = vpop.f32.mrf.mxu0
    %v4143 = vadd.f32 %v3934, %v4142
    %4144 = vmatmul.f32.gmra.mxu0 %v2825
    %v4145 = vpop.f32.mrf.mxu0
    %v4146 = vadd.f32 %v3937, %v4145
    %4147 = vmatmul.f32.gmra.mxu0 %v2826
    %v4148 = vpop.f32.mrf.mxu0
    %v4149 = vadd.f32 %v3940, %v4148
    %4150 = vmatmul.f32.gmra.mxu0 %v2827
    %v4151 = vpop.f32.mrf.mxu0
    %v4152 = vadd.f32 %v3943, %v4151
    %4153 = vmatmul.f32.gmra.mxu0 %v2828
    %v4154 = vpop.f32.mrf.mxu0
    %v4155 = vadd.f32 %v3946, %v4154
    %4156 = vmatmul.f32.gmra.mxu0 %v2829
    %v4157 = vpop.f32.mrf.mxu0
    %v4158 = vadd.f32 %v3949, %v4157
    %4159 = vmatmul.f32.gmra.mxu0 %v2830
    %v4160 = vpop.f32.mrf.mxu0
    %v4161 = vadd.f32 %v3952, %v4160
    %4162 = vmatmul.f32.gmra.mxu0 %v2831
    %v4163 = vpop.f32.mrf.mxu0
    %v4164 = vadd.f32 %v3955, %v4163
    %4165 = vmatmul.f32.gmra.mxu0 %v2832
    %v4166 = vpop.f32.mrf.mxu0
    %v4167 = vadd.f32 %v3958, %v4166
    %4168 = vmatmul.f32.gmra.mxu0 %v2833
    %v4169 = vpop.f32.mrf.mxu0
    %v4170 = vadd.f32 %v3961, %v4169
    %4171 = vmatmul.f32.gmra.mxu0 %v2834
    %v4172 = vpop.f32.mrf.mxu0
    %v4173 = vadd.f32 %v3964, %v4172
    %4174 = vmatmul.f32.gmra.mxu0 %v2839
    %v4175 = vpop.f32.mrf.mxu0
    %v4176 = vadd.f32 %v3967, %v4175
    %4177 = vmatmul.f32.gmra.mxu0 %v2840
    %v4178 = vpop.f32.mrf.mxu0
    %v4179 = vadd.f32 %v3970, %v4178
    %4180 = vmatmul.f32.gmra.mxu0 %v2841
    %v4181 = vpop.f32.mrf.mxu0
    %v4182 = vadd.f32 %v3973, %v4181
    %4183 = vmatmul.f32.gmra.mxu0 %v2842
    %v4184 = vpop.f32.mrf.mxu0
    %v4185 = vadd.f32 %v3976, %v4184
    %4186 = vmatmul.f32.gmra.mxu0 %v2843
    %v4187 = vpop.f32.mrf.mxu0
    %v4188 = vadd.f32 %v3979, %v4187
    %4189 = vmatmul.f32.gmra.mxu0 %v2844
    %v4190 = vpop.f32.mrf.mxu0
    %v4191 = vadd.f32 %v3982, %v4190
    %4192 = vmatmul.f32.gmra.mxu0 %v2845
    %v4193 = vpop.f32.mrf.mxu0
    %v4194 = vadd.f32 %v3985, %v4193
    %4195 = vmatmul.f32.gmra.mxu0 %v2846
    %v4196 = vpop.f32.mrf.mxu0
    %v4197 = vadd.f32 %v3988, %v4196
    %4198 = vmatmul.f32.gmra.mxu0 %v2847
    %v4199 = vpop.f32.mrf.mxu0
    %v4200 = vadd.f32 %v3991, %v4199
    %4201 = vmatmul.f32.gmra.mxu0 %v2848
    %v4202 = vpop.f32.mrf.mxu0
    %v4203 = vadd.f32 %v3994, %v4202
    %4204 = vmatmul.f32.gmra.mxu0 %v2849
    %v4205 = vpop.f32.mrf.mxu0
    %v4206 = vadd.f32 %v3997, %v4205
    %4207 = vmatmul.f32.gmra.mxu0 %v2850
    %v4208 = vpop.f32.mrf.mxu0
    %v4209 = vadd.f32 %v4000, %v4208
    %4210 = vmatmul.f32.gmra.mxu0 %v2851
    %v4211 = vpop.f32.mrf.mxu0
    %v4212 = vadd.f32 %v4003, %v4211
    %4213 = vmatmul.f32.gmra.mxu0 %v2852
    %v4214 = vpop.f32.mrf.mxu0
    %v4215 = vadd.f32 %v4006, %v4214
    %4216 = vmatmul.f32.gmra.mxu0 %v2853
    %v4217 = vpop.f32.mrf.mxu0
    %v4218 = vadd.f32 %v4009, %v4217
    %4219 = vmatmul.f32.gmra.mxu0 %v2854
    %v4220 = vpop.f32.mrf.mxu0
    %v4221 = vadd.f32 %v4012, %v4220
    %4222 = vmatmul.f32.gmra.mxu0 %v2855
    %v4223 = vpop.f32.mrf.mxu0
    %v4224 = vadd.f32 %v4015, %v4223
    %4225 = vmatmul.f32.gmra.mxu0 %v2856
    %v4226 = vpop.f32.mrf.mxu0
    %v4227 = vadd.f32 %v4018, %v4226
    %4228 = vmatmul.f32.gmra.mxu0 %v2857
    %v4229 = vpop.f32.mrf.mxu0
    %v4230 = vadd.f32 %v4021, %v4229
    %4231 = vmatmul.f32.gmra.mxu0 %v2858
    %v4232 = vpop.f32.mrf.mxu0
    %v4233 = vadd.f32 %v4024, %v4232
    %4234 = vmatmul.f32.gmra.mxu0 %v2859
    %v4235 = vpop.f32.mrf.mxu0
    %v4236 = vadd.f32 %v4027, %v4235
    %4237 = vmatmul.f32.gmra.mxu0 %v2860
    %v4238 = vpop.f32.mrf.mxu0
    %v4239 = vadd.f32 %v4030, %v4238
    %4240 = vmatmul.f32.gmra.mxu0 %v2861
    %v4241 = vpop.f32.mrf.mxu0
    %v4242 = vadd.f32 %v4033, %v4241
    %4243 = vmatmul.f32.gmra.mxu0 %v2862
    %v4244 = vpop.f32.mrf.mxu0
    %v4245 = vadd.f32 %v4036, %v4244
    %4246 = vmatmul.f32.gmra.mxu0 %v2863
    %v4247 = vpop.f32.mrf.mxu0
    %v4248 = vadd.f32 %v4039, %v4247
    %4249 = vmatmul.f32.gmra.mxu0 %v2864
    %v4250 = vpop.f32.mrf.mxu0
    %v4251 = vadd.f32 %v4042, %v4250
    %4252 = vmatmul.f32.gmra.mxu0 %v2865
    %v4253 = vpop.f32.mrf.mxu0
    %v4254 = vadd.f32 %v4045, %v4253
    %4255 = vmatmul.f32.gmra.mxu0 %v2866
    %v4256 = vpop.f32.mrf.mxu0
    %v4257 = vadd.f32 %v4048, %v4256
    %4258 = vmatmul.f32.gmra.mxu0 %v2867
    %v4259 = vpop.f32.mrf.mxu0
    %v4260 = vadd.f32 %v4051, %v4259
    %4261 = vmatmul.f32.gmra.mxu0 %v2868
    %v4262 = vpop.f32.mrf.mxu0
    %v4263 = vadd.f32 %v4054, %v4262
    %4264 = vmatmul.f32.gmra.mxu0 %v2869
    %v4265 = vpop.f32.mrf.mxu0
    %v4266 = vadd.f32 %v4057, %v4265
    %4267 = vmatmul.f32.gmra.mxu0 %v2870
    %v4268 = vpop.f32.mrf.mxu0
    %v4269 = vadd.f32 %v4060, %v4268
    %4270 = vdwg.mxu0
    %4271 = vmatpush.msra.mxu0 %v2984
    %4272 = vmatpush.msra.mxu0 %v2983
    %4273 = vmatpush.msra.mxu0 %v2982
    %4274 = vmatpush.msra.mxu0 %v2981
    %4275 = vmatpush.msra.mxu0 %v2980
    %4276 = vmatpush.msra.mxu0 %v2979
    %4277 = vmatpush.msra.mxu0 %v2978
    %4278 = vmatpush.msra.mxu0 %v2977
    %4279 = vmatpush.msra.mxu0 %v2976
    %4280 = vmatpush.msra.mxu0 %v2975
    %4281 = vmatpush.msra.mxu0 %v2974
    %4282 = vmatpush.msra.mxu0 %v2973
    %4283 = vmatpush.msra.mxu0 %v2972
    %4284 = vmatpush.msra.mxu0 %v2971
    %4285 = vmatpush.msra.mxu0 %v2970
    %4286 = vmatpush.msra.mxu0 %v2969
    %4287 = vmatmul.f32.gmra.mxu0 %v2661
    %v4288 = vpop.f32.mrf.mxu0
    %v4289 = vadd.f32 %v4080, %v4288
    %4290 = vmatmul.f32.gmra.mxu0 %v2662
    %v4291 = vpop.f32.mrf.mxu0
    %v4292 = vadd.f32 %v4083, %v4291
    %4293 = vmatmul.f32.gmra.mxu0 %v2663
    %v4294 = vpop.f32.mrf.mxu0
    %v4295 = vadd.f32 %v4086, %v4294
    %4296 = vmatmul.f32.gmra.mxu0 %v2664
    %v4297 = vpop.f32.mrf.mxu0
    %v4298 = vadd.f32 %v4089, %v4297
    %4299 = vmatmul.f32.gmra.mxu0 %v2665
    %v4300 = vpop.f32.mrf.mxu0
    %v4301 = vadd.f32 %v4092, %v4300
    %4302 = vmatmul.f32.gmra.mxu0 %v2666
    %v4303 = vpop.f32.mrf.mxu0
    %v4304 = vadd.f32 %v4095, %v4303
    %4305 = vmatmul.f32.gmra.mxu0 %v2667
    %v4306 = vpop.f32.mrf.mxu0
    %v4307 = vadd.f32 %v4098, %v4306
    %4308 = vmatmul.f32.gmra.mxu0 %v2668
    %v4309 = vpop.f32.mrf.mxu0
    %v4310 = vadd.f32 %v4101, %v4309
    %4311 = vmatmul.f32.gmra.mxu0 %v2669
    %v4312 = vpop.f32.mrf.mxu0
    %v4313 = vadd.f32 %v4104, %v4312
    %4314 = vmatmul.f32.gmra.mxu0 %v2670
    %v4315 = vpop.f32.mrf.mxu0
    %v4316 = vadd.f32 %v4107, %v4315
    %4317 = vmatmul.f32.gmra.mxu0 %v2671
    %v4318 = vpop.f32.mrf.mxu0
    %v4319 = vadd.f32 %v4110, %v4318
    %4320 = vmatmul.f32.gmra.mxu0 %v2672
    %v4321 = vpop.f32.mrf.mxu0
    %v4322 = vadd.f32 %v4113, %v4321
    %4323 = vmatmul.f32.gmra.mxu0 %v2673
    %v4324 = vpop.f32.mrf.mxu0
    %v4325 = vadd.f32 %v4116, %v4324
    %4326 = vmatmul.f32.gmra.mxu0 %v2674
    %v4327 = vpop.f32.mrf.mxu0
    %v4328 = vadd.f32 %v4119, %v4327
    %4329 = vmatmul.f32.gmra.mxu0 %v2675
    %v4330 = vpop.f32.mrf.mxu0
    %v4331 = vadd.f32 %v4122, %v4330
    %4332 = vmatmul.f32.gmra.mxu0 %v2676
    %v4333 = vpop.f32.mrf.mxu0
    %v4334 = vadd.f32 %v4125, %v4333
    %4335 = vmatmul.f32.gmra.mxu0 %v2677
    %v4336 = vpop.f32.mrf.mxu0
    %v4337 = vadd.f32 %v4128, %v4336
    %4338 = vmatmul.f32.gmra.mxu0 %v2678
    %v4339 = vpop.f32.mrf.mxu0
    %v4340 = vadd.f32 %v4131, %v4339
    %4341 = vmatmul.f32.gmra.mxu0 %v2679
    %v4342 = vpop.f32.mrf.mxu0
    %v4343 = vadd.f32 %v4134, %v4342
    %4344 = vmatmul.f32.gmra.mxu0 %v2680
    %v4345 = vpop.f32.mrf.mxu0
    %v4346 = vadd.f32 %v4137, %v4345
    %4347 = vmatmul.f32.gmra.mxu0 %v2681
    %v4348 = vpop.f32.mrf.mxu0
    %v4349 = vadd.f32 %v4140, %v4348
    %4350 = vmatmul.f32.gmra.mxu0 %v2682
    %v4351 = vpop.f32.mrf.mxu0
    %v4352 = vadd.f32 %v4143, %v4351
    %4353 = vmatmul.f32.gmra.mxu0 %v2683
    %v4354 = vpop.f32.mrf.mxu0
    %v4355 = vadd.f32 %v4146, %v4354
    %4356 = vmatmul.f32.gmra.mxu0 %v2684
    %v4357 = vpop.f32.mrf.mxu0
    %v4358 = vadd.f32 %v4149, %v4357
    %4359 = vmatmul.f32.gmra.mxu0 %v2685
    %v4360 = vpop.f32.mrf.mxu0
    %v4361 = vadd.f32 %v4152, %v4360
    %4362 = vmatmul.f32.gmra.mxu0 %v2686
    %v4363 = vpop.f32.mrf.mxu0
    %v4364 = vadd.f32 %v4155, %v4363
    %4365 = vmatmul.f32.gmra.mxu0 %v2687
    %v4366 = vpop.f32.mrf.mxu0
    %v4367 = vadd.f32 %v4158, %v4366
    %4368 = vmatmul.f32.gmra.mxu0 %v2688
    %v4369 = vpop.f32.mrf.mxu0
    %v4370 = vadd.f32 %v4161, %v4369
    %4371 = vmatmul.f32.gmra.mxu0 %v2689
    %v4372 = vpop.f32.mrf.mxu0
    %v4373 = vadd.f32 %v4164, %v4372
    %4374 = vmatmul.f32.gmra.mxu0 %v2690
    %v4375 = vpop.f32.mrf.mxu0
    %v4376 = vadd.f32 %v4167, %v4375
    %4377 = vmatmul.f32.gmra.mxu0 %v2691
    %v4378 = vpop.f32.mrf.mxu0
    %v4379 = vadd.f32 %v4170, %v4378
    %4380 = vmatmul.f32.gmra.mxu0 %v2692
    %v4381 = vpop.f32.mrf.mxu0
    %v4382 = vadd.f32 %v4173, %v4381
    %4383 = vmatmul.f32.gmra.mxu0 %v2697
    %v4384 = vpop.f32.mrf.mxu0
    %v4385 = vadd.f32 %v4176, %v4384
    %4386 = vmatmul.f32.gmra.mxu0 %v2698
    %v4387 = vpop.f32.mrf.mxu0
    %v4388 = vadd.f32 %v4179, %v4387
    %4389 = vmatmul.f32.gmra.mxu0 %v2699
    %v4390 = vpop.f32.mrf.mxu0
    %v4391 = vadd.f32 %v4182, %v4390
    %4392 = vmatmul.f32.gmra.mxu0 %v2700
    %v4393 = vpop.f32.mrf.mxu0
    %v4394 = vadd.f32 %v4185, %v4393
    %4395 = vmatmul.f32.gmra.mxu0 %v2701
    %v4396 = vpop.f32.mrf.mxu0
    %v4397 = vadd.f32 %v4188, %v4396
    %4398 = vmatmul.f32.gmra.mxu0 %v2702
    %v4399 = vpop.f32.mrf.mxu0
    %v4400 = vadd.f32 %v4191, %v4399
    %4401 = vmatmul.f32.gmra.mxu0 %v2703
    %v4402 = vpop.f32.mrf.mxu0
    %v4403 = vadd.f32 %v4194, %v4402
    %4404 = vmatmul.f32.gmra.mxu0 %v2704
    %v4405 = vpop.f32.mrf.mxu0
    %v4406 = vadd.f32 %v4197, %v4405
    %4407 = vmatmul.f32.gmra.mxu0 %v2705
    %v4408 = vpop.f32.mrf.mxu0
    %v4409 = vadd.f32 %v4200, %v4408
    %4410 = vmatmul.f32.gmra.mxu0 %v2706
    %v4411 = vpop.f32.mrf.mxu0
    %v4412 = vadd.f32 %v4203, %v4411
    %4413 = vmatmul.f32.gmra.mxu0 %v2707
    %v4414 = vpop.f32.mrf.mxu0
    %v4415 = vadd.f32 %v4206, %v4414
    %4416 = vmatmul.f32.gmra.mxu0 %v2708
    %v4417 = vpop.f32.mrf.mxu0
    %v4418 = vadd.f32 %v4209, %v4417
    %4419 = vmatmul.f32.gmra.mxu0 %v2709
    %v4420 = vpop.f32.mrf.mxu0
    %v4421 = vadd.f32 %v4212, %v4420
    %4422 = vmatmul.f32.gmra.mxu0 %v2710
    %v4423 = vpop.f32.mrf.mxu0
    %v4424 = vadd.f32 %v4215, %v4423
    %4425 = vmatmul.f32.gmra.mxu0 %v2711
    %v4426 = vpop.f32.mrf.mxu0
    %v4427 = vadd.f32 %v4218, %v4426
    %4428 = vmatmul.f32.gmra.mxu0 %v2712
    %v4429 = vpop.f32.mrf.mxu0
    %v4430 = vadd.f32 %v4221, %v4429
    %4431 = vmatmul.f32.gmra.mxu0 %v2713
    %v4432 = vpop.f32.mrf.mxu0
    %v4433 = vadd.f32 %v4224, %v4432
    %4434 = vmatmul.f32.gmra.mxu0 %v2714
    %v4435 = vpop.f32.mrf.mxu0
    %v4436 = vadd.f32 %v4227, %v4435
    %4437 = vmatmul.f32.gmra.mxu0 %v2715
    %v4438 = vpop.f32.mrf.mxu0
    %v4439 = vadd.f32 %v4230, %v4438
    %4440 = vmatmul.f32.gmra.mxu0 %v2716
    %v4441 = vpop.f32.mrf.mxu0
    %v4442 = vadd.f32 %v4233, %v4441
    %4443 = vmatmul.f32.gmra.mxu0 %v2717
    %v4444 = vpop.f32.mrf.mxu0
    %v4445 = vadd.f32 %v4236, %v4444
    %4446 = vmatmul.f32.gmra.mxu0 %v2718
    %v4447 = vpop.f32.mrf.mxu0
    %v4448 = vadd.f32 %v4239, %v4447
    %4449 = vmatmul.f32.gmra.mxu0 %v2719
    %v4450 = vpop.f32.mrf.mxu0
    %v4451 = vadd.f32 %v4242, %v4450
    %4452 = vmatmul.f32.gmra.mxu0 %v2720
    %v4453 = vpop.f32.mrf.mxu0
    %v4454 = vadd.f32 %v4245, %v4453
    %4455 = vmatmul.f32.gmra.mxu0 %v2721
    %v4456 = vpop.f32.mrf.mxu0
    %v4457 = vadd.f32 %v4248, %v4456
    %4458 = vmatmul.f32.gmra.mxu0 %v2722
    %v4459 = vpop.f32.mrf.mxu0
    %v4460 = vadd.f32 %v4251, %v4459
    %4461 = vmatmul.f32.gmra.mxu0 %v2723
    %v4462 = vpop.f32.mrf.mxu0
    %v4463 = vadd.f32 %v4254, %v4462
    %4464 = vmatmul.f32.gmra.mxu0 %v2724
    %v4465 = vpop.f32.mrf.mxu0
    %v4466 = vadd.f32 %v4257, %v4465
    %4467 = vmatmul.f32.gmra.mxu0 %v2725
    %v4468 = vpop.f32.mrf.mxu0
    %v4469 = vadd.f32 %v4260, %v4468
    %4470 = vmatmul.f32.gmra.mxu0 %v2726
    %v4471 = vpop.f32.mrf.mxu0
    %v4472 = vadd.f32 %v4263, %v4471
    %4473 = vmatmul.f32.gmra.mxu0 %v2727
    %v4474 = vpop.f32.mrf.mxu0
    %v4475 = vadd.f32 %v4266, %v4474
    %4476 = vmatmul.f32.gmra.mxu0 %v2728
    %v4477 = vpop.f32.mrf.mxu0
    %v4478 = vadd.f32 %v4269, %v4477
    %4479 = vdwg.mxu0
    %4480 = vmatpush.msra.mxu0 %v3000
    %4481 = vmatpush.msra.mxu0 %v2999
    %4482 = vmatpush.msra.mxu0 %v2998
    %4483 = vmatpush.msra.mxu0 %v2997
    %4484 = vmatpush.msra.mxu0 %v2996
    %4485 = vmatpush.msra.mxu0 %v2995
    %4486 = vmatpush.msra.mxu0 %v2994
    %4487 = vmatpush.msra.mxu0 %v2993
    %4488 = vmatpush.msra.mxu0 %v2992
    %4489 = vmatpush.msra.mxu0 %v2991
    %4490 = vmatpush.msra.mxu0 %v2990
    %4491 = vmatpush.msra.mxu0 %v2989
    %4492 = vmatpush.msra.mxu0 %v2988
    %4493 = vmatpush.msra.mxu0 %v2987
    %4494 = vmatpush.msra.mxu0 %v2986
    %4495 = vmatpush.msra.mxu0 %v2985
    %4496 = vmatmul.f32.gmra.mxu0 %v2733
    %v4497 = vpop.f32.mrf.mxu0
    %v4498 = vadd.f32 %v4289, %v4497
    %4499 = vmatmul.f32.gmra.mxu0 %v2734
    %v4500 = vpop.f32.mrf.mxu0
    %v4501 = vadd.f32 %v4292, %v4500
    %4502 = vmatmul.f32.gmra.mxu0 %v2735
    %v4503 = vpop.f32.mrf.mxu0
    %v4504 = vadd.f32 %v4295, %v4503
    %4505 = vmatmul.f32.gmra.mxu0 %v2736
    %v4506 = vpop.f32.mrf.mxu0
    %v4507 = vadd.f32 %v4298, %v4506
    %4508 = vmatmul.f32.gmra.mxu0 %v2737
    %v4509 = vpop.f32.mrf.mxu0
    %v4510 = vadd.f32 %v4301, %v4509
    %4511 = vmatmul.f32.gmra.mxu0 %v2738
    %v4512 = vpop.f32.mrf.mxu0
    %v4513 = vadd.f32 %v4304, %v4512
    %4514 = vmatmul.f32.gmra.mxu0 %v2739
    %v4515 = vpop.f32.mrf.mxu0
    %v4516 = vadd.f32 %v4307, %v4515
    %4517 = vmatmul.f32.gmra.mxu0 %v2740
    %v4518 = vpop.f32.mrf.mxu0
    %v4519 = vadd.f32 %v4310, %v4518
    %4520 = vmatmul.f32.gmra.mxu0 %v2741
    %v4521 = vpop.f32.mrf.mxu0
    %v4522 = vadd.f32 %v4313, %v4521
    %4523 = vmatmul.f32.gmra.mxu0 %v2742
    %v4524 = vpop.f32.mrf.mxu0
    %v4525 = vadd.f32 %v4316, %v4524
    %4526 = vmatmul.f32.gmra.mxu0 %v2743
    %v4527 = vpop.f32.mrf.mxu0
    %v4528 = vadd.f32 %v4319, %v4527
    %4529 = vmatmul.f32.gmra.mxu0 %v2744
    %v4530 = vpop.f32.mrf.mxu0
    %v4531 = vadd.f32 %v4322, %v4530
    %4532 = vmatmul.f32.gmra.mxu0 %v2745
    %v4533 = vpop.f32.mrf.mxu0
    %v4534 = vadd.f32 %v4325, %v4533
    %4535 = vmatmul.f32.gmra.mxu0 %v2746
    %v4536 = vpop.f32.mrf.mxu0
    %v4537 = vadd.f32 %v4328, %v4536
    %4538 = vmatmul.f32.gmra.mxu0 %v2747
    %v4539 = vpop.f32.mrf.mxu0
    %v4540 = vadd.f32 %v4331, %v4539
    %4541 = vmatmul.f32.gmra.mxu0 %v2748
    %v4542 = vpop.f32.mrf.mxu0
    %v4543 = vadd.f32 %v4334, %v4542
    %4544 = vmatmul.f32.gmra.mxu0 %v2749
    %v4545 = vpop.f32.mrf.mxu0
    %v4546 = vadd.f32 %v4337, %v4545
    %4547 = vmatmul.f32.gmra.mxu0 %v2750
    %v4548 = vpop.f32.mrf.mxu0
    %v4549 = vadd.f32 %v4340, %v4548
    %4550 = vmatmul.f32.gmra.mxu0 %v2751
    %v4551 = vpop.f32.mrf.mxu0
    %v4552 = vadd.f32 %v4343, %v4551
    %4553 = vmatmul.f32.gmra.mxu0 %v2752
    %v4554 = vpop.f32.mrf.mxu0
    %v4555 = vadd.f32 %v4346, %v4554
    %4556 = vmatmul.f32.gmra.mxu0 %v2753
    %v4557 = vpop.f32.mrf.mxu0
    %v4558 = vadd.f32 %v4349, %v4557
    %4559 = vmatmul.f32.gmra.mxu0 %v2754
    %v4560 = vpop.f32.mrf.mxu0
    %v4561 = vadd.f32 %v4352, %v4560
    %4562 = vmatmul.f32.gmra.mxu0 %v2755
    %v4563 = vpop.f32.mrf.mxu0
    %v4564 = vadd.f32 %v4355, %v4563
    %4565 = vmatmul.f32.gmra.mxu0 %v2756
    %v4566 = vpop.f32.mrf.mxu0
    %v4567 = vadd.f32 %v4358, %v4566
    %4568 = vmatmul.f32.gmra.mxu0 %v2757
    %v4569 = vpop.f32.mrf.mxu0
    %v4570 = vadd.f32 %v4361, %v4569
    %4571 = vmatmul.f32.gmra.mxu0 %v2758
    %v4572 = vpop.f32.mrf.mxu0
    %v4573 = vadd.f32 %v4364, %v4572
    %4574 = vmatmul.f32.gmra.mxu0 %v2759
    %v4575 = vpop.f32.mrf.mxu0
    %v4576 = vadd.f32 %v4367, %v4575
    %4577 = vmatmul.f32.gmra.mxu0 %v2760
    %v4578 = vpop.f32.mrf.mxu0
    %v4579 = vadd.f32 %v4370, %v4578
    %4580 = vmatmul.f32.gmra.mxu0 %v2761
    %v4581 = vpop.f32.mrf.mxu0
    %v4582 = vadd.f32 %v4373, %v4581
    %4583 = vmatmul.f32.gmra.mxu0 %v2762
    %v4584 = vpop.f32.mrf.mxu0
    %v4585 = vadd.f32 %v4376, %v4584
    %4586 = vmatmul.f32.gmra.mxu0 %v2763
    %v4587 = vpop.f32.mrf.mxu0
    %v4588 = vadd.f32 %v4379, %v4587
    %4589 = vmatmul.f32.gmra.mxu0 %v2764
    %v4590 = vpop.f32.mrf.mxu0
    %v4591 = vadd.f32 %v4382, %v4590
    %4592 = vmatmul.f32.gmra.mxu0 %v2769
    %v4593 = vpop.f32.mrf.mxu0
    %v4594 = vadd.f32 %v4385, %v4593
    %4595 = vmatmul.f32.gmra.mxu0 %v2770
    %v4596 = vpop.f32.mrf.mxu0
    %v4597 = vadd.f32 %v4388, %v4596
    %4598 = vmatmul.f32.gmra.mxu0 %v2771
    %v4599 = vpop.f32.mrf.mxu0
    %v4600 = vadd.f32 %v4391, %v4599
    %4601 = vmatmul.f32.gmra.mxu0 %v2772
    %v4602 = vpop.f32.mrf.mxu0
    %v4603 = vadd.f32 %v4394, %v4602
    %4604 = vmatmul.f32.gmra.mxu0 %v2773
    %v4605 = vpop.f32.mrf.mxu0
    %v4606 = vadd.f32 %v4397, %v4605
    %4607 = vmatmul.f32.gmra.mxu0 %v2774
    %v4608 = vpop.f32.mrf.mxu0
    %v4609 = vadd.f32 %v4400, %v4608
    %4610 = vmatmul.f32.gmra.mxu0 %v2775
    %v4611 = vpop.f32.mrf.mxu0
    %v4612 = vadd.f32 %v4403, %v4611
    %4613 = vmatmul.f32.gmra.mxu0 %v2776
    %v4614 = vpop.f32.mrf.mxu0
    %v4615 = vadd.f32 %v4406, %v4614
    %4616 = vmatmul.f32.gmra.mxu0 %v2777
    %v4617 = vpop.f32.mrf.mxu0
    %v4618 = vadd.f32 %v4409, %v4617
    %4619 = vmatmul.f32.gmra.mxu0 %v2778
    %v4620 = vpop.f32.mrf.mxu0
    %v4621 = vadd.f32 %v4412, %v4620
    %4622 = vmatmul.f32.gmra.mxu0 %v2779
    %v4623 = vpop.f32.mrf.mxu0
    %v4624 = vadd.f32 %v4415, %v4623
    %4625 = vmatmul.f32.gmra.mxu0 %v2780
    %v4626 = vpop.f32.mrf.mxu0
    %v4627 = vadd.f32 %v4418, %v4626
    %4628 = vmatmul.f32.gmra.mxu0 %v2781
    %v4629 = vpop.f32.mrf.mxu0
    %v4630 = vadd.f32 %v4421, %v4629
    %4631 = vmatmul.f32.gmra.mxu0 %v2782
    %v4632 = vpop.f32.mrf.mxu0
    %v4633 = vadd.f32 %v4424, %v4632
    %4634 = vmatmul.f32.gmra.mxu0 %v2783
    %v4635 = vpop.f32.mrf.mxu0
    %v4636 = vadd.f32 %v4427, %v4635
    %4637 = vmatmul.f32.gmra.mxu0 %v2784
    %v4638 = vpop.f32.mrf.mxu0
    %v4639 = vadd.f32 %v4430, %v4638
    %4640 = vmatmul.f32.gmra.mxu0 %v2785
    %v4641 = vpop.f32.mrf.mxu0
    %v4642 = vadd.f32 %v4433, %v4641
    %4643 = vmatmul.f32.gmra.mxu0 %v2786
    %v4644 = vpop.f32.mrf.mxu0
    %v4645 = vadd.f32 %v4436, %v4644
    %4646 = vmatmul.f32.gmra.mxu0 %v2787
    %v4647 = vpop.f32.mrf.mxu0
    %v4648 = vadd.f32 %v4439, %v4647
    %4649 = vmatmul.f32.gmra.mxu0 %v2788
    %v4650 = vpop.f32.mrf.mxu0
    %v4651 = vadd.f32 %v4442, %v4650
    %4652 = vmatmul.f32.gmra.mxu0 %v2789
    %v4653 = vpop.f32.mrf.mxu0
    %v4654 = vadd.f32 %v4445, %v4653
    %4655 = vmatmul.f32.gmra.mxu0 %v2790
    %v4656 = vpop.f32.mrf.mxu0
    %v4657 = vadd.f32 %v4448, %v4656
    %4658 = vmatmul.f32.gmra.mxu0 %v2791
    %v4659 = vpop.f32.mrf.mxu0
    %v4660 = vadd.f32 %v4451, %v4659
    %4661 = vmatmul.f32.gmra.mxu0 %v2792
    %v4662 = vpop.f32.mrf.mxu0
    %v4663 = vadd.f32 %v4454, %v4662
    %4664 = vmatmul.f32.gmra.mxu0 %v2793
    %v4665 = vpop.f32.mrf.mxu0
    %v4666 = vadd.f32 %v4457, %v4665
    %4667 = vmatmul.f32.gmra.mxu0 %v2794
    %v4668 = vpop.f32.mrf.mxu0
    %v4669 = vadd.f32 %v4460, %v4668
    %4670 = vmatmul.f32.gmra.mxu0 %v2795
    %v4671 = vpop.f32.mrf.mxu0
    %v4672 = vadd.f32 %v4463, %v4671
    %4673 = vmatmul.f32.gmra.mxu0 %v2796
    %v4674 = vpop.f32.mrf.mxu0
    %v4675 = vadd.f32 %v4466, %v4674
    %4676 = vmatmul.f32.gmra.mxu0 %v2797
    %v4677 = vpop.f32.mrf.mxu0
    %v4678 = vadd.f32 %v4469, %v4677
    %4679 = vmatmul.f32.gmra.mxu0 %v2798
    %v4680 = vpop.f32.mrf.mxu0
    %v4681 = vadd.f32 %v4472, %v4680
    %4682 = vmatmul.f32.gmra.mxu0 %v2799
    %v4683 = vpop.f32.mrf.mxu0
    %v4684 = vadd.f32 %v4475, %v4683
    %4685 = vmatmul.f32.gmra.mxu0 %v2800
    %v4686 = vpop.f32.mrf.mxu0
    %v4687 = vadd.f32 %v4478, %v4686
    %4688 = vdwg.mxu0
    %4689 = vmatpush.msra.mxu0 %v3016
    %4690 = vmatpush.msra.mxu0 %v3015
    %4691 = vmatpush.msra.mxu0 %v3014
    %4692 = vmatpush.msra.mxu0 %v3013
    %4693 = vmatpush.msra.mxu0 %v3012
    %4694 = vmatpush.msra.mxu0 %v3011
    %4695 = vmatpush.msra.mxu0 %v3010
    %4696 = vmatpush.msra.mxu0 %v3009
    %4697 = vmatpush.msra.mxu0 %v3008
    %4698 = vmatpush.msra.mxu0 %v3007
    %4699 = vmatpush.msra.mxu0 %v3006
    %4700 = vmatpush.msra.mxu0 %v3005
    %4701 = vmatpush.msra.mxu0 %v3004
    %4702 = vmatpush.msra.mxu0 %v3003
    %4703 = vmatpush.msra.mxu0 %v3002
    %4704 = vmatpush.msra.mxu0 %v3001
    %4705 = vmatmul.f32.gmra.mxu0 %v2805
    %v4706 = vpop.f32.mrf.mxu0
    %v4707 = vadd.f32 %v4498, %v4706
    %4708 = vmatmul.f32.gmra.mxu0 %v2806
    %v4709 = vpop.f32.mrf.mxu0
    %v4710 = vadd.f32 %v4501, %v4709
    %4711 = vmatmul.f32.gmra.mxu0 %v2807
    %v4712 = vpop.f32.mrf.mxu0
    %v4713 = vadd.f32 %v4504, %v4712
    %4714 = vmatmul.f32.gmra.mxu0 %v2808
    %v4715 = vpop.f32.mrf.mxu0
    %v4716 = vadd.f32 %v4507, %v4715
    %4717 = vmatmul.f32.gmra.mxu0 %v2809
    %v4718 = vpop.f32.mrf.mxu0
    %v4719 = vadd.f32 %v4510, %v4718
    %4720 = vmatmul.f32.gmra.mxu0 %v2810
    %v4721 = vpop.f32.mrf.mxu0
    %v4722 = vadd.f32 %v4513, %v4721
    %4723 = vmatmul.f32.gmra.mxu0 %v2811
    %v4724 = vpop.f32.mrf.mxu0
    %v4725 = vadd.f32 %v4516, %v4724
    %4726 = vmatmul.f32.gmra.mxu0 %v2812
    %v4727 = vpop.f32.mrf.mxu0
    %v4728 = vadd.f32 %v4519, %v4727
    %4729 = vmatmul.f32.gmra.mxu0 %v2813
    %v4730 = vpop.f32.mrf.mxu0
    %v4731 = vadd.f32 %v4522, %v4730
    %4732 = vmatmul.f32.gmra.mxu0 %v2814
    %v4733 = vpop.f32.mrf.mxu0
    %v4734 = vadd.f32 %v4525, %v4733
    %4735 = vmatmul.f32.gmra.mxu0 %v2815
    %v4736 = vpop.f32.mrf.mxu0
    %v4737 = vadd.f32 %v4528, %v4736
    %4738 = vmatmul.f32.gmra.mxu0 %v2816
    %v4739 = vpop.f32.mrf.mxu0
    %v4740 = vadd.f32 %v4531, %v4739
    %4741 = vmatmul.f32.gmra.mxu0 %v2817
    %v4742 = vpop.f32.mrf.mxu0
    %v4743 = vadd.f32 %v4534, %v4742
    %4744 = vmatmul.f32.gmra.mxu0 %v2818
    %v4745 = vpop.f32.mrf.mxu0
    %v4746 = vadd.f32 %v4537, %v4745
    %4747 = vmatmul.f32.gmra.mxu0 %v2819
    %v4748 = vpop.f32.mrf.mxu0
    %v4749 = vadd.f32 %v4540, %v4748
    %4750 = vmatmul.f32.gmra.mxu0 %v2820
    %v4751 = vpop.f32.mrf.mxu0
    %v4752 = vadd.f32 %v4543, %v4751
    %4753 = vmatmul.f32.gmra.mxu0 %v2821
    %v4754 = vpop.f32.mrf.mxu0
    %v4755 = vadd.f32 %v4546, %v4754
    %4756 = vmatmul.f32.gmra.mxu0 %v2822
    %v4757 = vpop.f32.mrf.mxu0
    %v4758 = vadd.f32 %v4549, %v4757
    %4759 = vmatmul.f32.gmra.mxu0 %v2823
    %v4760 = vpop.f32.mrf.mxu0
    %v4761 = vadd.f32 %v4552, %v4760
    %4762 = vmatmul.f32.gmra.mxu0 %v2824
    %v4763 = vpop.f32.mrf.mxu0
    %v4764 = vadd.f32 %v4555, %v4763
    %4765 = vmatmul.f32.gmra.mxu0 %v2825
    %v4766 = vpop.f32.mrf.mxu0
    %v4767 = vadd.f32 %v4558, %v4766
    %4768 = vmatmul.f32.gmra.mxu0 %v2826
    %v4769 = vpop.f32.mrf.mxu0
    %v4770 = vadd.f32 %v4561, %v4769
    %4771 = vmatmul.f32.gmra.mxu0 %v2827
    %v4772 = vpop.f32.mrf.mxu0
    %v4773 = vadd.f32 %v4564, %v4772
    %4774 = vmatmul.f32.gmra.mxu0 %v2828
    %v4775 = vpop.f32.mrf.mxu0
    %v4776 = vadd.f32 %v4567, %v4775
    %4777 = vmatmul.f32.gmra.mxu0 %v2829
    %v4778 = vpop.f32.mrf.mxu0
    %v4779 = vadd.f32 %v4570, %v4778
    %4780 = vmatmul.f32.gmra.mxu0 %v2830
    %v4781 = vpop.f32.mrf.mxu0
    %v4782 = vadd.f32 %v4573, %v4781
    %4783 = vmatmul.f32.gmra.mxu0 %v2831
    %v4784 = vpop.f32.mrf.mxu0
    %v4785 = vadd.f32 %v4576, %v4784
    %4786 = vmatmul.f32.gmra.mxu0 %v2832
    %v4787 = vpop.f32.mrf.mxu0
    %v4788 = vadd.f32 %v4579, %v4787
    %4789 = vmatmul.f32.gmra.mxu0 %v2833
    %v4790 = vpop.f32.mrf.mxu0
    %v4791 = vadd.f32 %v4582, %v4790
    %4792 = vmatmul.f32.gmra.mxu0 %v2834
    %v4793 = vpop.f32.mrf.mxu0
    %v4794 = vadd.f32 %v4585, %v4793
    %4795 = vmatmul.f32.gmra.mxu0 %v2835
    %v4796 = vpop.f32.mrf.mxu0
    %v4797 = vadd.f32 %v4588, %v4796
    %4798 = vmatmul.f32.gmra.mxu0 %v2836
    %v4799 = vpop.f32.mrf.mxu0
    %v4800 = vadd.f32 %v4591, %v4799
    %4801 = vmatmul.f32.gmra.mxu0 %v2841
    %v4802 = vpop.f32.mrf.mxu0
    %v4803 = vadd.f32 %v4594, %v4802
    %4804 = vmatmul.f32.gmra.mxu0 %v2842
    %v4805 = vpop.f32.mrf.mxu0
    %v4806 = vadd.f32 %v4597, %v4805
    %4807 = vmatmul.f32.gmra.mxu0 %v2843
    %v4808 = vpop.f32.mrf.mxu0
    %v4809 = vadd.f32 %v4600, %v4808
    %4810 = vmatmul.f32.gmra.mxu0 %v2844
    %v4811 = vpop.f32.mrf.mxu0
    %v4812 = vadd.f32 %v4603, %v4811
    %4813 = vmatmul.f32.gmra.mxu0 %v2845
    %v4814 = vpop.f32.mrf.mxu0
    %v4815 = vadd.f32 %v4606, %v4814
    %4816 = vmatmul.f32.gmra.mxu0 %v2846
    %v4817 = vpop.f32.mrf.mxu0
    %v4818 = vadd.f32 %v4609, %v4817
    %4819 = vmatmul.f32.gmra.mxu0 %v2847
    %v4820 = vpop.f32.mrf.mxu0
    %v4821 = vadd.f32 %v4612, %v4820
    %4822 = vmatmul.f32.gmra.mxu0 %v2848
    %v4823 = vpop.f32.mrf.mxu0
    %v4824 = vadd.f32 %v4615, %v4823
    %4825 = vmatmul.f32.gmra.mxu0 %v2849
    %v4826 = vpop.f32.mrf.mxu0
    %v4827 = vadd.f32 %v4618, %v4826
    %4828 = vmatmul.f32.gmra.mxu0 %v2850
    %v4829 = vpop.f32.mrf.mxu0
    %v4830 = vadd.f32 %v4621, %v4829
    %4831 = vmatmul.f32.gmra.mxu0 %v2851
    %v4832 = vpop.f32.mrf.mxu0
    %v4833 = vadd.f32 %v4624, %v4832
    %4834 = vmatmul.f32.gmra.mxu0 %v2852
    %v4835 = vpop.f32.mrf.mxu0
    %v4836 = vadd.f32 %v4627, %v4835
    %4837 = vmatmul.f32.gmra.mxu0 %v2853
    %v4838 = vpop.f32.mrf.mxu0
    %v4839 = vadd.f32 %v4630, %v4838
    %4840 = vmatmul.f32.gmra.mxu0 %v2854
    %v4841 = vpop.f32.mrf.mxu0
    %v4842 = vadd.f32 %v4633, %v4841
    %4843 = vmatmul.f32.gmra.mxu0 %v2855
    %v4844 = vpop.f32.mrf.mxu0
    %v4845 = vadd.f32 %v4636, %v4844
    %4846 = vmatmul.f32.gmra.mxu0 %v2856
    %v4847 = vpop.f32.mrf.mxu0
    %v4848 = vadd.f32 %v4639, %v4847
    %4849 = vmatmul.f32.gmra.mxu0 %v2857
    %v4850 = vpop.f32.mrf.mxu0
    %v4851 = vadd.f32 %v4642, %v4850
    %4852 = vmatmul.f32.gmra.mxu0 %v2858
    %v4853 = vpop.f32.mrf.mxu0
    %v4854 = vadd.f32 %v4645, %v4853
    %4855 = vmatmul.f32.gmra.mxu0 %v2859
    %v4856 = vpop.f32.mrf.mxu0
    %v4857 = vadd.f32 %v4648, %v4856
    %4858 = vmatmul.f32.gmra.mxu0 %v2860
    %v4859 = vpop.f32.mrf.mxu0
    %v4860 = vadd.f32 %v4651, %v4859
    %4861 = vmatmul.f32.gmra.mxu0 %v2861
    %v4862 = vpop.f32.mrf.mxu0
    %v4863 = vadd.f32 %v4654, %v4862
    %4864 = vmatmul.f32.gmra.mxu0 %v2862
    %v4865 = vpop.f32.mrf.mxu0
    %v4866 = vadd.f32 %v4657, %v4865
    %4867 = vmatmul.f32.gmra.mxu0 %v2863
    %v4868 = vpop.f32.mrf.mxu0
    %v4869 = vadd.f32 %v4660, %v4868
    %4870 = vmatmul.f32.gmra.mxu0 %v2864
    %v4871 = vpop.f32.mrf.mxu0
    %v4872 = vadd.f32 %v4663, %v4871
    %4873 = vmatmul.f32.gmra.mxu0 %v2865
    %v4874 = vpop.f32.mrf.mxu0
    %v4875 = vadd.f32 %v4666, %v4874
    %4876 = vmatmul.f32.gmra.mxu0 %v2866
    %v4877 = vpop.f32.mrf.mxu0
    %v4878 = vadd.f32 %v4669, %v4877
    %4879 = vmatmul.f32.gmra.mxu0 %v2867
    %v4880 = vpop.f32.mrf.mxu0
    %v4881 = vadd.f32 %v4672, %v4880
    %4882 = vmatmul.f32.gmra.mxu0 %v2868
    %v4883 = vpop.f32.mrf.mxu0
    %v4884 = vadd.f32 %v4675, %v4883
    %4885 = vmatmul.f32.gmra.mxu0 %v2869
    %v4886 = vpop.f32.mrf.mxu0
    %v4887 = vadd.f32 %v4678, %v4886
    %4888 = vmatmul.f32.gmra.mxu0 %v2870
    %v4889 = vpop.f32.mrf.mxu0
    %v4890 = vadd.f32 %v4681, %v4889
    %4891 = vmatmul.f32.gmra.mxu0 %v2871
    %v4892 = vpop.f32.mrf.mxu0
    %v4893 = vadd.f32 %v4684, %v4892
    %4894 = vmatmul.f32.gmra.mxu0 %v2872
    %v4895 = vpop.f32.mrf.mxu0
    %v4896 = vadd.f32 %v4687, %v4895
    %4897 = vdwg.mxu0
    %v4898 = vld [vmem:[%s5] sm:$0x1]
    %v4900 = vperm.slane %v4898, 0
    %v4902 = vmul.f32 %v4707, %v4900
    %v4903 = vmul.f32 %v4710, %v4900
    %v4904 = vmul.f32 %v4713, %v4900
    %v4905 = vmul.f32 %v4716, %v4900
    %v4906 = vmul.f32 %v4719, %v4900
    %v4907 = vmul.f32 %v4722, %v4900
    %v4908 = vmul.f32 %v4725, %v4900
    %v4909 = vmul.f32 %v4728, %v4900
    %v4910 = vmul.f32 %v4731, %v4900
    %v4911 = vmul.f32 %v4734, %v4900
    %v4912 = vmul.f32 %v4737, %v4900
    %v4913 = vmul.f32 %v4740, %v4900
    %v4914 = vmul.f32 %v4743, %v4900
    %v4915 = vmul.f32 %v4746, %v4900
    %v4916 = vmul.f32 %v4749, %v4900
    %v4917 = vmul.f32 %v4752, %v4900
    %v4918 = vmul.f32 %v4755, %v4900
    %v4919 = vmul.f32 %v4758, %v4900
    %v4920 = vmul.f32 %v4761, %v4900
    %v4921 = vmul.f32 %v4764, %v4900
    %v4922 = vmul.f32 %v4767, %v4900
    %v4923 = vmul.f32 %v4770, %v4900
    %v4924 = vmul.f32 %v4773, %v4900
    %v4925 = vmul.f32 %v4776, %v4900
    %v4926 = vmul.f32 %v4779, %v4900
    %v4927 = vmul.f32 %v4782, %v4900
    %v4928 = vmul.f32 %v4785, %v4900
    %v4929 = vmul.f32 %v4788, %v4900
    %v4930 = vmul.f32 %v4791, %v4900
    %v4931 = vmul.f32 %v4794, %v4900
    %v4932 = vmul.f32 %v4797, %v4900
    %v4933 = vmul.f32 %v4800, %v4900
    %v4934 = vmul.f32 %v4803, %v4900
    %v4935 = vmul.f32 %v4806, %v4900
    %v4936 = vmul.f32 %v4809, %v4900
    %v4937 = vmul.f32 %v4812, %v4900
    %v4938 = vmul.f32 %v4815, %v4900
    %v4939 = vmul.f32 %v4818, %v4900
    %v4940 = vmul.f32 %v4821, %v4900
    %v4941 = vmul.f32 %v4824, %v4900
    %v4942 = vmul.f32 %v4827, %v4900
    %v4943 = vmul.f32 %v4830, %v4900
    %v4944 = vmul.f32 %v4833, %v4900
    %v4945 = vmul.f32 %v4836, %v4900
    %v4946 = vmul.f32 %v4839, %v4900
    %v4947 = vmul.f32 %v4842, %v4900
    %v4948 = vmul.f32 %v4845, %v4900
    %v4949 = vmul.f32 %v4848, %v4900
    %v4950 = vmul.f32 %v4851, %v4900
    %v4951 = vmul.f32 %v4854, %v4900
    %v4952 = vmul.f32 %v4857, %v4900
    %v4953 = vmul.f32 %v4860, %v4900
    %v4954 = vmul.f32 %v4863, %v4900
    %v4955 = vmul.f32 %v4866, %v4900
    %v4956 = vmul.f32 %v4869, %v4900
    %v4957 = vmul.f32 %v4872, %v4900
    %v4958 = vmul.f32 %v4875, %v4900
    %v4959 = vmul.f32 %v4878, %v4900
    %v4960 = vmul.f32 %v4881, %v4900
    %v4961 = vmul.f32 %v4884, %v4900
    %v4962 = vmul.f32 %v4887, %v4900
    %v4963 = vmul.f32 %v4890, %v4900
    %v4964 = vmul.f32 %v4893, %v4900
    %v4965 = vmul.f32 %v4896, %v4900
    %v4966 = vld [vmem:[%s6] sm:$0x1]
    %v4968 = vperm.slane %v4966, 0
    %v4970 = vadd.f32 %v4902, %v4968
    %v4971 = vadd.f32 %v4903, %v4968
    %v4972 = vadd.f32 %v4904, %v4968
    %v4973 = vadd.f32 %v4905, %v4968
    %v4974 = vadd.f32 %v4906, %v4968
    %v4975 = vadd.f32 %v4907, %v4968
    %v4976 = vadd.f32 %v4908, %v4968
    %v4977 = vadd.f32 %v4909, %v4968
    %v4978 = vadd.f32 %v4910, %v4968
    %v4979 = vadd.f32 %v4911, %v4968
    %v4980 = vadd.f32 %v4912, %v4968
    %v4981 = vadd.f32 %v4913, %v4968
    %v4982 = vadd.f32 %v4914, %v4968
    %v4983 = vadd.f32 %v4915, %v4968
    %v4984 = vadd.f32 %v4916, %v4968
    %v4985 = vadd.f32 %v4917, %v4968
    %v4986 = vadd.f32 %v4918, %v4968
    %v4987 = vadd.f32 %v4919, %v4968
    %v4988 = vadd.f32 %v4920, %v4968
    %v4989 = vadd.f32 %v4921, %v4968
    %v4990 = vadd.f32 %v4922, %v4968
    %v4991 = vadd.f32 %v4923, %v4968
    %v4992 = vadd.f32 %v4924, %v4968
    %v4993 = vadd.f32 %v4925, %v4968
    %v4994 = vadd.f32 %v4926, %v4968
    %v4995 = vadd.f32 %v4927, %v4968
    %v4996 = vadd.f32 %v4928, %v4968
    %v4997 = vadd.f32 %v4929, %v4968
    %v4998 = vadd.f32 %v4930, %v4968
    %v4999 = vadd.f32 %v4931, %v4968
    %v5000 = vadd.f32 %v4932, %v4968
    %v5001 = vadd.f32 %v4933, %v4968
    %v5002 = vadd.f32 %v4934, %v4968
    %v5003 = vadd.f32 %v4935, %v4968
    %v5004 = vadd.f32 %v4936, %v4968
    %v5005 = vadd.f32 %v4937, %v4968
    %v5006 = vadd.f32 %v4938, %v4968
    %v5007 = vadd.f32 %v4939, %v4968
    %v5008 = vadd.f32 %v4940, %v4968
    %v5009 = vadd.f32 %v4941, %v4968
    %v5010 = vadd.f32 %v4942, %v4968
    %v5011 = vadd.f32 %v4943, %v4968
    %v5012 = vadd.f32 %v4944, %v4968
    %v5013 = vadd.f32 %v4945, %v4968
    %v5014 = vadd.f32 %v4946, %v4968
    %v5015 = vadd.f32 %v4947, %v4968
    %v5016 = vadd.f32 %v4948, %v4968
    %v5017 = vadd.f32 %v4949, %v4968
    %v5018 = vadd.f32 %v4950, %v4968
    %v5019 = vadd.f32 %v4951, %v4968
    %v5020 = vadd.f32 %v4952, %v4968
    %v5021 = vadd.f32 %v4953, %v4968
    %v5022 = vadd.f32 %v4954, %v4968
    %v5023 = vadd.f32 %v4955, %v4968
    %v5024 = vadd.f32 %v4956, %v4968
    %v5025 = vadd.f32 %v4957, %v4968
    %v5026 = vadd.f32 %v4958, %v4968
    %v5027 = vadd.f32 %v4959, %v4968
    %v5028 = vadd.f32 %v4960, %v4968
    %v5029 = vadd.f32 %v4961, %v4968
    %v5030 = vadd.f32 %v4962, %v4968
    %v5031 = vadd.f32 %v4963, %v4968
    %v5032 = vadd.f32 %v4964, %v4968
    %v5033 = vadd.f32 %v4965, %v4968
    %v5034 = vadd.f32 %v4970, %v117
    %v5035 = vadd.f32 %v4971, %v118
    %v5036 = vadd.f32 %v4972, %v119
    %v5037 = vadd.f32 %v4973, %v120
    %v5038 = vadd.f32 %v4974, %v121
    %v5039 = vadd.f32 %v4975, %v122
    %v5040 = vadd.f32 %v4976, %v123
    %v5041 = vadd.f32 %v4977, %v124
    %v5042 = vadd.f32 %v4978, %v125
    %v5043 = vadd.f32 %v4979, %v126
    %v5044 = vadd.f32 %v4980, %v127
    %v5045 = vadd.f32 %v4981, %v128
    %v5046 = vadd.f32 %v4982, %v129
    %v5047 = vadd.f32 %v4983, %v130
    %v5048 = vadd.f32 %v4984, %v131
    %v5049 = vadd.f32 %v4985, %v132
    %v5050 = vadd.f32 %v4986, %v133
    %v5051 = vadd.f32 %v4987, %v134
    %v5052 = vadd.f32 %v4988, %v135
    %v5053 = vadd.f32 %v4989, %v136
    %v5054 = vadd.f32 %v4990, %v137
    %v5055 = vadd.f32 %v4991, %v138
    %v5056 = vadd.f32 %v4992, %v139
    %v5057 = vadd.f32 %v4993, %v140
    %v5058 = vadd.f32 %v4994, %v141
    %v5059 = vadd.f32 %v4995, %v142
    %v5060 = vadd.f32 %v4996, %v143
    %v5061 = vadd.f32 %v4997, %v144
    %v5062 = vadd.f32 %v4998, %v145
    %v5063 = vadd.f32 %v4999, %v146
    %v5064 = vadd.f32 %v5000, %v147
    %v5065 = vadd.f32 %v5001, %v148
    %v5066 = vadd.f32 %v5002, %v153
    %v5067 = vadd.f32 %v5003, %v154
    %v5068 = vadd.f32 %v5004, %v155
    %v5069 = vadd.f32 %v5005, %v156
    %v5070 = vadd.f32 %v5006, %v157
    %v5071 = vadd.f32 %v5007, %v158
    %v5072 = vadd.f32 %v5008, %v159
    %v5073 = vadd.f32 %v5009, %v160
    %v5074 = vadd.f32 %v5010, %v161
    %v5075 = vadd.f32 %v5011, %v162
    %v5076 = vadd.f32 %v5012, %v163
    %v5077 = vadd.f32 %v5013, %v164
    %v5078 = vadd.f32 %v5014, %v165
    %v5079 = vadd.f32 %v5015, %v166
    %v5080 = vadd.f32 %v5016, %v167
    %v5081 = vadd.f32 %v5017, %v168
    %v5082 = vadd.f32 %v5018, %v169
    %v5083 = vadd.f32 %v5019, %v170
    %v5084 = vadd.f32 %v5020, %v171
    %v5085 = vadd.f32 %v5021, %v172
    %v5086 = vadd.f32 %v5022, %v173
    %v5087 = vadd.f32 %v5023, %v174
    %v5088 = vadd.f32 %v5024, %v175
    %v5089 = vadd.f32 %v5025, %v176
    %v5090 = vadd.f32 %v5026, %v177
    %v5091 = vadd.f32 %v5027, %v178
    %v5092 = vadd.f32 %v5028, %v179
    %v5093 = vadd.f32 %v5029, %v180
    %v5094 = vadd.f32 %v5030, %v181
    %v5095 = vadd.f32 %v5031, %v182
    %v5096 = vadd.f32 %v5032, %v183
    %v5097 = vadd.f32 %v5033, %v184
    %v5098 = vmax.f32 %v5034, 0.0
    %v5099 = vmax.f32 %v5035, 0.0
    %v5100 = vmax.f32 %v5036, 0.0
    %v5101 = vmax.f32 %v5037, 0.0
    %v5102 = vmax.f32 %v5038, 0.0
    %v5103 = vmax.f32 %v5039, 0.0
    %v5104 = vmax.f32 %v5040, 0.0
    %v5105 = vmax.f32 %v5041, 0.0
    %v5106 = vmax.f32 %v5042, 0.0
    %v5107 = vmax.f32 %v5043, 0.0
    %v5108 = vmax.f32 %v5044, 0.0
    %v5109 = vmax.f32 %v5045, 0.0
    %v5110 = vmax.f32 %v5046, 0.0
    %v5111 = vmax.f32 %v5047, 0.0
    %v5112 = vmax.f32 %v5048, 0.0
    %v5113 = vmax.f32 %v5049, 0.0
    %v5114 = vmax.f32 %v5050, 0.0
    %v5115 = vmax.f32 %v5051, 0.0
    %v5116 = vmax.f32 %v5052, 0.0
    %v5117 = vmax.f32 %v5053, 0.0
    %v5118 = vmax.f32 %v5054, 0.0
    %v5119 = vmax.f32 %v5055, 0.0
    %v5120 = vmax.f32 %v5056, 0.0
    %v5121 = vmax.f32 %v5057, 0.0
    %v5122 = vmax.f32 %v5058, 0.0
    %v5123 = vmax.f32 %v5059, 0.0
    %v5124 = vmax.f32 %v5060, 0.0
    %v5125 = vmax.f32 %v5061, 0.0
    %v5126 = vmax.f32 %v5062, 0.0
    %v5127 = vmax.f32 %v5063, 0.0
    %v5128 = vmax.f32 %v5064, 0.0
    %v5129 = vmax.f32 %v5065, 0.0
    %v5130 = vmax.f32 %v5066, 0.0
    %v5131 = vmax.f32 %v5067, 0.0
    %v5132 = vmax.f32 %v5068, 0.0
    %v5133 = vmax.f32 %v5069, 0.0
    %v5134 = vmax.f32 %v5070, 0.0
    %v5135 = vmax.f32 %v5071, 0.0
    %v5136 = vmax.f32 %v5072, 0.0
    %v5137 = vmax.f32 %v5073, 0.0
    %v5138 = vmax.f32 %v5074, 0.0
    %v5139 = vmax.f32 %v5075, 0.0
    %v5140 = vmax.f32 %v5076, 0.0
    %v5141 = vmax.f32 %v5077, 0.0
    %v5142 = vmax.f32 %v5078, 0.0
    %v5143 = vmax.f32 %v5079, 0.0
    %v5144 = vmax.f32 %v5080, 0.0
    %v5145 = vmax.f32 %v5081, 0.0
    %v5146 = vmax.f32 %v5082, 0.0
    %v5147 = vmax.f32 %v5083, 0.0
    %v5148 = vmax.f32 %v5084, 0.0
    %v5149 = vmax.f32 %v5085, 0.0
    %v5150 = vmax.f32 %v5086, 0.0
    %v5151 = vmax.f32 %v5087, 0.0
    %v5152 = vmax.f32 %v5088, 0.0
    %v5153 = vmax.f32 %v5089, 0.0
    %v5154 = vmax.f32 %v5090, 0.0
    %v5155 = vmax.f32 %v5091, 0.0
    %v5156 = vmax.f32 %v5092, 0.0
    %v5157 = vmax.f32 %v5093, 0.0
    %v5158 = vmax.f32 %v5094, 0.0
    %v5159 = vmax.f32 %v5095, 0.0
    %v5160 = vmax.f32 %v5096, 0.0
    %v5161 = vmax.f32 %v5097, 0.0
    %5162 = vst [vmem:[#allocation6] sm:$0xff] %v5098
    %5163 = vst [vmem:[#allocation6 + $0x8] sm:$0xff] %v5099
    %5164 = vst [vmem:[#allocation6 + $0x10] sm:$0xff] %v5100
    %5165 = vst [vmem:[#allocation6 + $0x18] sm:$0xff] %v5101
    %5166 = vst [vmem:[#allocation6 + $0x20] sm:$0xff] %v5102
    %5167 = vst [vmem:[#allocation6 + $0x28] sm:$0xff] %v5103
    %5168 = vst [vmem:[#allocation6 + $0x30] sm:$0xff] %v5104
    %5169 = vst [vmem:[#allocation6 + $0x38] sm:$0xff] %v5105
    %5170 = vst [vmem:[#allocation6 + $0x40] sm:$0xff] %v5106
    %5171 = vst [vmem:[#allocation6 + $0x48] sm:$0xff] %v5107
    %5172 = vst [vmem:[#allocation6 + $0x50] sm:$0xff] %v5108
    %5173 = vst [vmem:[#allocation6 + $0x58] sm:$0xff] %v5109
    %5174 = vst [vmem:[#allocation6 + $0x60] sm:$0xff] %v5110
    %5175 = vst [vmem:[#allocation6 + $0x68] sm:$0xff] %v5111
    %5176 = vst [vmem:[#allocation6 + $0x70] sm:$0xff] %v5112
    %5177 = vst [vmem:[#allocation6 + $0x78] sm:$0xff] %v5113
    %5178 = vst [vmem:[#allocation6 + $0x80] sm:$0xff] %v5114
    %5179 = vst [vmem:[#allocation6 + $0x88] sm:$0xff] %v5115
    %5180 = vst [vmem:[#allocation6 + $0x90] sm:$0xff] %v5116
    %5181 = vst [vmem:[#allocation6 + $0x98] sm:$0xff] %v5117
    %5182 = vst [vmem:[#allocation6 + $0xa0] sm:$0xff] %v5118
    %5183 = vst [vmem:[#allocation6 + $0xa8] sm:$0xff] %v5119
    %5184 = vst [vmem:[#allocation6 + $0xb0] sm:$0xff] %v5120
    %5185 = vst [vmem:[#allocation6 + $0xb8] sm:$0xff] %v5121
    %5186 = vst [vmem:[#allocation6 + $0xc0] sm:$0xff] %v5122
    %5187 = vst [vmem:[#allocation6 + $0xc8] sm:$0xff] %v5123
    %5188 = vst [vmem:[#allocation6 + $0xd0] sm:$0xff] %v5124
    %5189 = vst [vmem:[#allocation6 + $0xd8] sm:$0xff] %v5125
    %5190 = vst [vmem:[#allocation6 + $0xe0] sm:$0xff] %v5126
    %5191 = vst [vmem:[#allocation6 + $0xe8] sm:$0xff] %v5127
    %5192 = vst [vmem:[#allocation6 + $0xf0] sm:$0xff] %v5128
    %5193 = vst [vmem:[#allocation6 + $0xf8] sm:$0xff] %v5129
    %5194 = vst [vmem:[#allocation6 + $0x100] sm:$0xff] %v5130
    %5195 = vst [vmem:[#allocation6 + $0x108] sm:$0xff] %v5131
    %5196 = vst [vmem:[#allocation6 + $0x110] sm:$0xff] %v5132
    %5197 = vst [vmem:[#allocation6 + $0x118] sm:$0xff] %v5133
    %5198 = vst [vmem:[#allocation6 + $0x120] sm:$0xff] %v5134
    %5199 = vst [vmem:[#allocation6 + $0x128] sm:$0xff] %v5135
    %5200 = vst [vmem:[#allocation6 + $0x130] sm:$0xff] %v5136
    %5201 = vst [vmem:[#allocation6 + $0x138] sm:$0xff] %v5137
    %5202 = vst [vmem:[#allocation6 + $0x140] sm:$0xff] %v5138
    %5203 = vst [vmem:[#allocation6 + $0x148] sm:$0xff] %v5139
    %5204 = vst [vmem:[#allocation6 + $0x150] sm:$0xff] %v5140
    %5205 = vst [vmem:[#allocation6 + $0x158] sm:$0xff] %v5141
    %5206 = vst [vmem:[#allocation6 + $0x160] sm:$0xff] %v5142
    %5207 = vst [vmem:[#allocation6 + $0x168] sm:$0xff] %v5143
    %5208 = vst [vmem:[#allocation6 + $0x170] sm:$0xff] %v5144
    %5209 = vst [vmem:[#allocation6 + $0x178] sm:$0xff] %v5145
    %5210 = vst [vmem:[#allocation6 + $0x180] sm:$0xff] %v5146
    %5211 = vst [vmem:[#allocation6 + $0x188] sm:$0xff] %v5147
    %5212 = vst [vmem:[#allocation6 + $0x190] sm:$0xff] %v5148
    %5213 = vst [vmem:[#allocation6 + $0x198] sm:$0xff] %v5149
    %5214 = vst [vmem:[#allocation6 + $0x1a0] sm:$0xff] %v5150
    %5215 = vst [vmem:[#allocation6 + $0x1a8] sm:$0xff] %v5151
    %5216 = vst [vmem:[#allocation6 + $0x1b0] sm:$0xff] %v5152
    %5217 = vst [vmem:[#allocation6 + $0x1b8] sm:$0xff] %v5153
    %5218 = vst [vmem:[#allocation6 + $0x1c0] sm:$0xff] %v5154
    %5219 = vst [vmem:[#allocation6 + $0x1c8] sm:$0xff] %v5155
    %5220 = vst [vmem:[#allocation6 + $0x1d0] sm:$0xff] %v5156
    %5221 = vst [vmem:[#allocation6 + $0x1d8] sm:$0xff] %v5157
    %5222 = vst [vmem:[#allocation6 + $0x1e0] sm:$0xff] %v5158
    %5223 = vst [vmem:[#allocation6 + $0x1e8] sm:$0xff] %v5159
    %5224 = vst [vmem:[#allocation6 + $0x1f0] sm:$0xff] %v5160
    %5225 = vst [vmem:[#allocation6 + $0x1f8] sm:$0xff] %v5161
    // Predicated region
    $region34: #{tpu_custom_call.1} parent=1 // pred_check
      _
    $region35: #{tpu_custom_call.1} parent=1 // pred_check_branch
      %5227 = sbr.rel (0) target = $region37
    $region36: #{tpu_custom_call.1} parent=1 // pred_region
      %5229 = vsyncadd [#allocation5], 0
      %s5230 = sshll.u32 [#allocation6], 4
      %s5231 = int_to_ptr.vmem [resolvable:$true] %s5230
      %s5232 = sshll.u32 %s7, 4
      %s5233 = int_to_ptr.hbm [resolvable:$true] %s5232
      %5238 = dma.vmem_to_hbm [thread:$0]  %s5231, 8192, %s5233, [#allocation5], 128, 128, 8
    $region37: #{tpu_custom_call.1} parent=1 // pred_fallthru
      _
    // Predicated region
    $region38: #{tpu_custom_call.1} parent=1 // pred_check
      _
    $region39: #{tpu_custom_call.1} parent=1 // pred_check_branch
      %5240 = sbr.rel (0) target = $region41
    $region40: #{tpu_custom_call.1} parent=1 // pred_region
      %5242 = dma.done [#allocation5], 8192
    $region41: #{tpu_custom_call.1} parent=1 // pred_fallthru
      _
    %5243 = vsyncpa [#allocation4], 1
    %5244 = vsyncpa [#allocation5], 1

</llo_original>
